<compile_context>
chip_gen: v5e
topology: v5e:2x2
jax: 0.10.0
libtpu: 0.0.40
codegen_flags: <defaults>
</compile_context>

<pallas_src>
import functools

import numpy as np
import jax
import jax.numpy as jnp
from jax.experimental import pallas as pl
from jax.experimental.pallas import tpu as pltpu


# ----------------------------------------------------------------------------
# Static shape helpers
# ----------------------------------------------------------------------------
def _conv_out_hw(H, W):
    oh1, ow1 = (H - 4) // 4 + 1, (W - 4) // 4 + 1
    oh2, ow2 = (oh1 - 4) // 2 + 1, (ow1 - 4) // 2 + 1
    oh3, ow3 = oh2 - 3 + 1, ow2 - 3 + 1
    return (oh1, ow1), (oh2, ow2), (oh3, ow3)


def _gather_mats(nb, oh1, ow1, oh2, ow2, oh3, ow3):
    """Constant 0/1 matrices implementing im2col / flatten as exact MXU row gathers."""
    r1, r2, r3 = nb * oh1 * ow1, nb * oh2 * ow2, nb * oh3 * ow3
    s3 = oh3 * ow3
    s2 = np.zeros((16, r2, r1), np.float32)   # conv2 taps (k=4, stride=2)
    t3 = np.zeros((9, r3, r2), np.float32)    # conv3 taps (k=3, stride=1)
    u = np.zeros((s3, nb, r3), np.float32)    # per-sample flatten for FC1
    for n in range(nb):
        for oh in range(oh2):
            for ow in range(ow2):
                p = n * oh2 * ow2 + oh * ow2 + ow
                for ki in range(4):
                    for kj in range(4):
                        r = n * oh1 * ow1 + (2 * oh + ki) * ow1 + 2 * ow + kj
                        s2[ki * 4 + kj, p, r] = 1.0
        for oh in range(oh3):
            for ow in range(ow3):
                p = n * s3 + oh * ow3 + ow
                for ki in range(3):
                    for kj in range(3):
                        r = n * oh2 * ow2 + (oh + ki) * ow2 + ow + kj
                        t3[ki * 3 + kj, p, r] = 1.0
        for p3 in range(s3):
            u[p3, n, n * s3 + p3] = 1.0
    return (jnp.asarray(s2.reshape(16 * r2, r1), jnp.bfloat16),
            jnp.asarray(t3.reshape(9 * r3, r2), jnp.bfloat16),
            jnp.asarray(u.reshape(s3 * nb, r3), jnp.bfloat16))


def _make_col1(x_nchw, oh1, ow1):
    """conv1 (k=4, s=4, non-overlapping) im2col = one transpose + reshape, (ki,kj,c) order."""
    N, C = x_nchw.shape[0], x_nchw.shape[1]
    x = x_nchw[:, :, :oh1 * 4, :ow1 * 4].astype(jnp.bfloat16)
    x = x.reshape(N, C, oh1, 4, ow1, 4)
    x = jnp.transpose(x, (0, 2, 4, 3, 5, 1))          # (N, oh1, ow1, ki, kj, C)
    return x.reshape(N * oh1 * ow1, 16 * C)


# ----------------------------------------------------------------------------
# The fused kernel: conv1 + conv2 + conv3 + FC1 + FC2 (one grid step per batch block)
# ----------------------------------------------------------------------------
def _fused_kernel(col1_ref, w1_ref, b1_ref, s2_ref, w2_ref, b2_ref,
                  t3_ref, w3_hbm, b3_ref, u_ref, wf1_hbm, bf1_ref,
                  wf2_hbm, bf2_ref, o_ref,
                  w3_vmem, wf1_vmem, wf2_vmem, sems,
                  *, r2, r3, nb, s3):
    # Kick off HBM->VMEM DMA of the late-layer weights; they land while the
    # conv1/conv2 GEMMs below run (weight-DMA / compute overlap).
    cp_w3 = pltpu.make_async_copy(w3_hbm, w3_vmem, sems.at[0])
    cp_f1 = pltpu.make_async_copy(wf1_hbm, wf1_vmem, sems.at[1])
    cp_f2 = pltpu.make_async_copy(wf2_hbm, wf2_vmem, sems.at[2])
    cp_w3.start()
    cp_f1.start()
    cp_f2.start()

    # ---- conv1 (space-to-depth GEMM; output channels padded to 128 lanes) ----
    h1 = jnp.dot(col1_ref[...], w1_ref[...], preferred_element_type=jnp.float32)
    h1 = jnp.maximum(h1 + b1_ref[...], 0.0).astype(jnp.bfloat16)        # (R1, 128)

    # ---- conv2: im2col as 16 exact 0/1 row-gather GEMMs + lane concat ----
    col2 = jnp.concatenate(
        [jnp.dot(s2_ref[kk * r2:(kk + 1) * r2, :], h1,
                 preferred_element_type=jnp.float32).astype(jnp.bfloat16)
         for kk in range(16)], axis=-1)                                  # (R2, 2048)
    h2 = jnp.dot(col2, w2_ref[...], preferred_element_type=jnp.float32)
    h2 = jnp.maximum(h2 + b2_ref[...], 0.0).astype(jnp.bfloat16)        # (R2, 128)

    # ---- conv3: im2col as 9 gather GEMMs + lane concat ----
    col3 = jnp.concatenate(
        [jnp.dot(t3_ref[q * r3:(q + 1) * r3, :], h2,
                 preferred_element_type=jnp.float32).astype(jnp.bfloat16)
         for q in range(9)], axis=-1)                                    # (R3, 1152)
    cp_w3.wait()
    h3 = jnp.dot(col3, w3_vmem[...], preferred_element_type=jnp.float32)
    h3 = jnp.maximum(h3 + b3_ref[...], 0.0).astype(jnp.bfloat16)        # (R3, 128)

    # ---- per-sample flatten in (h, w, c) order (wf1 was pre-permuted to match) ----
    if s3 == 1:
        fc_in = h3                                                       # (NB, 128)
    else:
        fc_in = jnp.concatenate(
            [jnp.dot(u_ref[p * nb:(p + 1) * nb, :], h3,
                     preferred_element_type=jnp.float32).astype(jnp.bfloat16)
             for p in range(s3)], axis=-1)                               # (NB, S3*128)

    # ---- FC1 + ReLU, FC2 (padded to lane-dense widths) ----
    cp_f1.wait()
    h4 = jnp.dot(fc_in, wf1_vmem[...], preferred_element_type=jnp.float32)
    h4 = jnp.maximum(h4 + bf1_ref[...], 0.0).astype(jnp.bfloat16)       # (NB, 896)
    cp_f2.wait()
    out = jnp.dot(h4, wf2_vmem[...], preferred_element_type=jnp.float32)
    o_ref[...] = (out + bf2_ref[...]).astype(o_ref.dtype)               # (NB, NPAD)


# ----------------------------------------------------------------------------
# Parameter init (torch layouts) + one-time GEMM-ready layout prep (hoisted)
# ----------------------------------------------------------------------------
def init_params(key, input_shape, n_actions):
    c_in, H, W = input_shape

    def uniform(k, shape, fan_in):
        bound = 1.0 / float(fan_in) ** 0.5
        return jax.random.uniform(k, shape, jnp.float32, -bound, bound)

    ks = jax.random.split(key, 10)
    p = {}
    p["w1"] = uniform(ks[0], (64, c_in, 4, 4), c_in * 16)
    p["b1"] = uniform(ks[1], (64,), c_in * 16)
    p["w2"] = uniform(ks[2], (128, 64, 4, 4), 64 * 16)
    p["b2"] = uniform(ks[3], (128,), 64 * 16)
    p["w3"] = uniform(ks[4], (128, 128, 3, 3), 128 * 9)
    p["b3"] = uniform(ks[5], (128,), 128 * 9)
    (_, _), (_, _), (oh3, ow3) = _conv_out_hw(H, W)
    conv_out = 128 * oh3 * ow3                      # equivalent of _get_conv_out
    p["wf1"] = uniform(ks[6], (800, conv_out), conv_out)
    p["bf1"] = uniform(ks[7], (800,), conv_out)
    p["wf2"] = uniform(ks[8], (n_actions, 800), 800)
    p["bf2"] = uniform(ks[9], (n_actions,), 800)
    return p


def prepare_params(p, input_shape, n_actions):
    """One-time re-layout: GEMM-ready, lane-dense-padded bf16 weights + (1,N) f32 biases."""
    C, H, W = input_shape
    (_, _), (_, _), (oh3, ow3) = _conv_out_hw(H, W)
    s3 = oh3 * ow3
    q = {}

    # conv1: (64, C, 4, 4) -> (ki, kj, c, o) -> (16*C, 64); pad out channels to 128.
    w1 = jnp.transpose(p["w1"], (2, 3, 1, 0)).reshape(16 * C, 64)
    q["w1"] = jnp.pad(w1, ((0, 0), (0, 64))).astype(jnp.bfloat16)
    q["b1"] = jnp.pad(p["b1"], (0, 64)).reshape(1, 128).astype(jnp.float32)

    # conv2: (128, 64, 4, 4) -> (ki, kj, i, o); pad i 64->128 (matches padded conv1 out).
    w2 = jnp.transpose(p["w2"], (2, 3, 1, 0))
    w2 = jnp.pad(w2, ((0, 0), (0, 0), (0, 64), (0, 0))).reshape(16 * 128, 128)
    q["w2"] = w2.astype(jnp.bfloat16)
    q["b2"] = p["b2"].reshape(1, 128).astype(jnp.float32)

    # conv3: (128, 128, 3, 3) -> (9*128, 128).
    q["w3"] = jnp.transpose(p["w3"], (2, 3, 1, 0)).reshape(9 * 128, 128).astype(jnp.bfloat16)
    q["b3"] = p["b3"].reshape(1, 128).astype(jnp.float32)

    # FC1: fold torch's (c, h, w) flatten into (h*w, c) row order; pad 800 -> 896 lanes.
    f1, conv_out = p["wf1"].shape
    assert conv_out == 128 * s3
    f1p = ((f1 + 127) // 128) * 128
    wf1 = jnp.transpose(p["wf1"].reshape(f1, 128, s3), (2, 1, 0)).reshape(s3 * 128, f1)
    q["wf1"] = jnp.pad(wf1, ((0, 0), (0, f1p - f1))).astype(jnp.bfloat16)
    q["bf1"] = jnp.pad(p["bf1"], (0, f1p - f1)).reshape(1, f1p).astype(jnp.float32)

    # FC2: transpose, zero-pad K 800 -> 896 and output n_actions -> 128 lanes.
    npad = ((n_actions + 127) // 128) * 128
    wf2 = jnp.pad(p["wf2"].T, ((0, f1p - f1), (0, npad - n_actions)))
    q["wf2"] = wf2.astype(jnp.bfloat16)
    q["bf2"] = jnp.pad(p["bf2"], (0, npad - n_actions)).reshape(1, npad).astype(jnp.float32)
    return q


# ----------------------------------------------------------------------------
# Forward pass (single pallas_call) and pure-JAX reference
# ----------------------------------------------------------------------------
def custom_solver_forward(q, x_nchw, n_actions, batch_block=None):
    N, C, H, W = x_nchw.shape
    (oh1, ow1), (oh2, ow2), (oh3, ow3) = _conv_out_hw(H, W)
    s3 = oh3 * ow3
    nb = N if batch_block is None else batch_block
    assert N % nb == 0 and (nb == N or nb % 8 == 0)
    assert q["wf1"].shape[0] == 128 * s3

    col1 = _make_col1(x_nchw, oh1, ow1)                     # (N*oh1*ow1, 16*C) bf16
    s2, t3, u = _gather_mats(nb, oh1, ow1, oh2, ow2, oh3, ow3)

    r1, r2, r3 = nb * oh1 * ow1, nb * oh2 * ow2, nb * s3
    k1 = 16 * C
    f1p = q["wf1"].shape[1]
    npad = q["wf2"].shape[1]
    steps = N // nb

    full = lambda i: (0, 0)
    batch = lambda i: (i, 0)

    args = (col1, q["w1"], q["b1"], s2, q["w2"], q["b2"], t3,
            q["w3"], q["b3"], u, q["wf1"], q["bf1"], q["wf2"], q["bf2"])
    flops = 2 * steps * (
        r1 * k1 * 128 + 16 * r2 * r1 * 128 + r2 * (16 * 128) * 128
        + 9 * r3 * r2 * 128 + r3 * (9 * 128) * 128
        + (0 if s3 == 1 else s3 * nb * r3 * 128)
        + nb * (s3 * 128) * f1p + nb * f1p * npad)
    bytes_accessed = int(sum(int(a.size) * a.dtype.itemsize for a in args)
                         + N * npad * 4)

    out = pl.pallas_call(
        functools.partial(_fused_kernel, r2=r2, r3=r3, nb=nb, s3=s3),
        out_shape=jax.ShapeDtypeStruct((N, npad), jnp.float32),
        grid=(steps,),
        in_specs=[
            pl.BlockSpec((r1, k1), batch),                  # col1 (per batch block)
            pl.BlockSpec((k1, 128), full),                  # w1  (out padded 64->128)
            pl.BlockSpec((1, 128), full),                   # b1
            pl.BlockSpec((16 * r2, r1), full),              # S2  conv2 gather mats
            pl.BlockSpec((16 * 128, 128), full),            # w2
            pl.BlockSpec((1, 128), full),                   # b2
            pl.BlockSpec((9 * r3, r2), full),               # T3  conv3 gather mats
            pl.BlockSpec(memory_space=pl.ANY),              # w3   (manual DMA)
            pl.BlockSpec((1, 128), full),                   # b3
            pl.BlockSpec((s3 * nb, r3), full),              # U   flatten gather mats
            pl.BlockSpec(memory_space=pl.ANY),              # wf1  (manual DMA)
            pl.BlockSpec((1, f1p), full),                   # bf1
            pl.BlockSpec(memory_space=pl.ANY),              # wf2  (manual DMA)
            pl.BlockSpec((1, npad), full),                  # bf2
        ],
        out_specs=pl.BlockSpec((nb, npad), batch),
        scratch_shapes=[
            pltpu.VMEM(q["w3"].shape, jnp.bfloat16),
            pltpu.VMEM(q["wf1"].shape, jnp.bfloat16),
            pltpu.VMEM(q["wf2"].shape, jnp.bfloat16),
            pltpu.SemaphoreType.DMA((3,)),
        ],
        cost_estimate=pl.CostEstimate(flops=int(flops), transcendentals=0,
                                      bytes_accessed=bytes_accessed),
        compiler_params=pltpu.CompilerParams(dimension_semantics=("parallel",)),
    )(*args)
    return out[:, :n_actions]


def reference_forward(params, x):
    def conv(x, w, b, s):
        y = jax.lax.conv_general_dilated(
            x, w, (s, s), "VALID", dimension_numbers=("NCHW", "OIHW", "NCHW"))
        return jax.nn.relu(y + b[None, :, None, None])

    h = conv(x, params["w1"], params["b1"], 4)
    h = conv(h, params["w2"], params["b2"], 2)
    h = conv(h, params["w3"], params["b3"], 1)
    h = h.reshape(h.shape[0], -1)
    h = jax.nn.relu(h @ params["wf1"].T + params["bf1"])
    return h @ params["wf2"].T + params["bf2"]


if __name__ == "__main__":
    def run_case(input_shape, n_actions, batch):
        key = jax.random.PRNGKey(0)
        kp, kx = jax.random.split(key)
        p = init_params(kp, input_shape, n_actions)
        q = prepare_params(p, input_shape, n_actions)      # layouts hoisted once
        x = jax.random.normal(kx, (batch,) + input_shape, dtype=jnp.float32)

        fwd = jax.jit(custom_solver_forward, static_argnums=(2,))
        out = jax.block_until_ready(fwd(q, x, n_actions))
        assert out.shape == (batch, n_actions), out.shape

        ref = jax.block_until_ready(reference_forward(p, x))
        err = float(jnp.max(jnp.abs(out - ref)))
        assert err < 2.5e-2, (input_shape, err)

    run_case((4, 32, 32), 6, 2)   # conv output 1x1 (primary DQN-style input)
    run_case((4, 44, 44), 6, 2)   # conv output 2x2 (exercises general flatten path)
    print("KERNEL_OK")
</pallas_src>

<mosaic_0001>
module attributes {stable_mosaic.version = 11 : i64} {
  func.func @_fused_kernel(%arg0: i32, %arg1: memref<128x64xbf16, #tpu.memory_space<vmem>>, %arg2: memref<64x128xbf16, #tpu.memory_space<vmem>>, %arg3: memref<1x128xf32, #tpu.memory_space<vmem>>, %arg4: memref<288x128xbf16, #tpu.memory_space<vmem>>, %arg5: memref<2048x128xbf16, #tpu.memory_space<vmem>>, %arg6: memref<1x128xf32, #tpu.memory_space<vmem>>, %arg7: memref<18x18xbf16, #tpu.memory_space<vmem>>, %arg8: memref<1152x128xbf16, #tpu.memory_space<any>>, %arg9: memref<1x128xf32, #tpu.memory_space<vmem>>, %arg10: memref<2x2xbf16, #tpu.memory_space<vmem>>, %arg11: memref<128x896xbf16, #tpu.memory_space<any>>, %arg12: memref<1x896xf32, #tpu.memory_space<vmem>>, %arg13: memref<896x128xbf16, #tpu.memory_space<any>>, %arg14: memref<1x128xf32, #tpu.memory_space<vmem>>, %arg15: memref<2x128xf32, #tpu.memory_space<vmem>>, %arg16: memref<1152x128xbf16, #tpu.memory_space<vmem>>, %arg17: memref<128x896xbf16, #tpu.memory_space<vmem>>, %arg18: memref<896x128xbf16, #tpu.memory_space<vmem>>, %arg19: memref<3x!tpu.dma_semaphore, #tpu.memory_space<semaphore_mem>>) attributes {dimension_semantics = [#tpu.dimension_semantics<parallel>], iteration_bounds = array<i64: 1>, scalar_prefetch = 0 : i64, scratch_operands = 4 : i64, tpu.core_type = #tpu.core_type<tc>, window_params = [{transform_indices = @transform_0, window_bounds = array<i64: 128, 64>}, {pipeline_mode = #tpu.pipeline_mode<synchronous>, transform_indices = @transform_1, window_bounds = array<i64: 64, 128>}, {pipeline_mode = #tpu.pipeline_mode<synchronous>, transform_indices = @transform_2, window_bounds = array<i64: 1, 128>}, {pipeline_mode = #tpu.pipeline_mode<synchronous>, transform_indices = @transform_3, window_bounds = array<i64: 288, 128>}, {pipeline_mode = #tpu.pipeline_mode<synchronous>, transform_indices = @transform_4, window_bounds = array<i64: 2048, 128>}, {pipeline_mode = #tpu.pipeline_mode<synchronous>, transform_indices = @transform_5, window_bounds = array<i64: 1, 128>}, {pipeline_mode = #tpu.pipeline_mode<synchronous>, transform_indices = @transform_6, window_bounds = array<i64: 18, 18>}, {}, {pipeline_mode = #tpu.pipeline_mode<synchronous>, transform_indices = @transform_8, window_bounds = array<i64: 1, 128>}, {pipeline_mode = #tpu.pipeline_mode<synchronous>, transform_indices = @transform_9, window_bounds = array<i64: 2, 2>}, {}, {pipeline_mode = #tpu.pipeline_mode<synchronous>, transform_indices = @transform_11, window_bounds = array<i64: 1, 896>}, {}, {pipeline_mode = #tpu.pipeline_mode<synchronous>, transform_indices = @transform_13, window_bounds = array<i64: 1, 128>}, {transform_indices = @transform_14, window_bounds = array<i64: 2, 128>}]} {
    %c0_i32 = arith.constant 0 : i32
    %0 = tpu.memref_slice %arg19[%c0_i32] : memref<3x!tpu.dma_semaphore, #tpu.memory_space<semaphore_mem>> -> memref<1x!tpu.dma_semaphore, #tpu.memory_space<semaphore_mem>>
    %1 = tpu.memref_squeeze %0 : memref<1x!tpu.dma_semaphore, #tpu.memory_space<semaphore_mem>> -> memref<!tpu.dma_semaphore, #tpu.memory_space<semaphore_mem>>
    tpu.enqueue_dma source(%arg8 : memref<1152x128xbf16, #tpu.memory_space<any>>) target(%arg16 : memref<1152x128xbf16, #tpu.memory_space<vmem>>) target_semaphore(%1 : memref<!tpu.dma_semaphore, #tpu.memory_space<semaphore_mem>>)
    %c1_i32 = arith.constant 1 : i32
    %2 = tpu.memref_slice %arg19[%c1_i32] : memref<3x!tpu.dma_semaphore, #tpu.memory_space<semaphore_mem>> -> memref<1x!tpu.dma_semaphore, #tpu.memory_space<semaphore_mem>>
    %3 = tpu.memref_squeeze %2 : memref<1x!tpu.dma_semaphore, #tpu.memory_space<semaphore_mem>> -> memref<!tpu.dma_semaphore, #tpu.memory_space<semaphore_mem>>
    tpu.enqueue_dma source(%arg11 : memref<128x896xbf16, #tpu.memory_space<any>>) target(%arg17 : memref<128x896xbf16, #tpu.memory_space<vmem>>) target_semaphore(%3 : memref<!tpu.dma_semaphore, #tpu.memory_space<semaphore_mem>>)
    %c2_i32 = arith.constant 2 : i32
    %4 = tpu.memref_slice %arg19[%c2_i32] : memref<3x!tpu.dma_semaphore, #tpu.memory_space<semaphore_mem>> -> memref<1x!tpu.dma_semaphore, #tpu.memory_space<semaphore_mem>>
    %5 = tpu.memref_squeeze %4 : memref<1x!tpu.dma_semaphore, #tpu.memory_space<semaphore_mem>> -> memref<!tpu.dma_semaphore, #tpu.memory_space<semaphore_mem>>
    tpu.enqueue_dma source(%arg13 : memref<896x128xbf16, #tpu.memory_space<any>>) target(%arg18 : memref<896x128xbf16, #tpu.memory_space<vmem>>) target_semaphore(%5 : memref<!tpu.dma_semaphore, #tpu.memory_space<semaphore_mem>>)
    %c0 = arith.constant 0 : index
    %c0_0 = arith.constant 0 : index
    %6 = vector.load %arg1[%c0, %c0_0] : memref<128x64xbf16, #tpu.memory_space<vmem>>, vector<128x64xbf16>
    %c0_1 = arith.constant 0 : index
    %c0_2 = arith.constant 0 : index
    %7 = vector.load %arg2[%c0_1, %c0_2] : memref<64x128xbf16, #tpu.memory_space<vmem>>, vector<64x128xbf16>
    %cst = arith.constant dense<0.000000e+00> : vector<128x128xf32>
    %8 = tpu.matmul %6, %7, %cst {dimension_numbers = #tpu.dot_dimension_numbers<[1], [0], [0], [1], [0, 0, 1, 1], [], []>} : vector<128x64xbf16>, vector<64x128xbf16>, vector<128x128xf32> -> vector<128x128xf32>
    %c0_3 = arith.constant 0 : index
    %c0_4 = arith.constant 0 : index
    %9 = vector.load %arg3[%c0_3, %c0_4] : memref<1x128xf32, #tpu.memory_space<vmem>>, vector<1x128xf32>
    %10 = vector.broadcast %9 : vector<1x128xf32> to vector<128x128xf32>
    %11 = arith.addf %8, %10 : vector<128x128xf32>
    %cst_5 = arith.constant 0.000000e+00 : f32
    %12 = vector.broadcast %cst_5 : f32 to vector<128x128xf32>
    %13 = arith.maximumf %11, %12 : vector<128x128xf32>
    %14 = arith.truncf %13 : vector<128x128xf32> to vector<128x128xbf16>
    %c0_6 = arith.constant 0 : index
    %c0_7 = arith.constant 0 : index
    %15 = vector.load %arg4[%c0_6, %c0_7] : memref<288x128xbf16, #tpu.memory_space<vmem>>, vector<18x128xbf16>
    %cst_8 = arith.constant dense<0.000000e+00> : vector<18x128xf32>
    %16 = tpu.matmul %15, %14, %cst_8 {dimension_numbers = #tpu.dot_dimension_numbers<[1], [0], [0], [1], [0, 0, 1, 1], [], []>} : vector<18x128xbf16>, vector<128x128xbf16>, vector<18x128xf32> -> vector<18x128xf32>
    %17 = arith.truncf %16 : vector<18x128xf32> to vector<18x128xbf16>
    %c18 = arith.constant 18 : index
    %c0_9 = arith.constant 0 : index
    %18 = vector.load %arg4[%c18, %c0_9] : memref<288x128xbf16, #tpu.memory_space<vmem>>, vector<18x128xbf16>
    %cst_10 = arith.constant dense<0.000000e+00> : vector<18x128xf32>
    %19 = tpu.matmul %18, %14, %cst_10 {dimension_numbers = #tpu.dot_dimension_numbers<[1], [0], [0], [1], [0, 0, 1, 1], [], []>} : vector<18x128xbf16>, vector<128x128xbf16>, vector<18x128xf32> -> vector<18x128xf32>
    %20 = arith.truncf %19 : vector<18x128xf32> to vector<18x128xbf16>
    %c36 = arith.constant 36 : index
    %c0_11 = arith.constant 0 : index
    %21 = vector.load %arg4[%c36, %c0_11] : memref<288x128xbf16, #tpu.memory_space<vmem>>, vector<18x128xbf16>
    %cst_12 = arith.constant dense<0.000000e+00> : vector<18x128xf32>
    %22 = tpu.matmul %21, %14, %cst_12 {dimension_numbers = #tpu.dot_dimension_numbers<[1], [0], [0], [1], [0, 0, 1, 1], [], []>} : vector<18x128xbf16>, vector<128x128xbf16>, vector<18x128xf32> -> vector<18x128xf32>
    %23 = arith.truncf %22 : vector<18x128xf32> to vector<18x128xbf16>
    %c54 = arith.constant 54 : index
    %c0_13 = arith.constant 0 : index
    %24 = vector.load %arg4[%c54, %c0_13] : memref<288x128xbf16, #tpu.memory_space<vmem>>, vector<18x128xbf16>
    %cst_14 = arith.constant dense<0.000000e+00> : vector<18x128xf32>
    %25 = tpu.matmul %24, %14, %cst_14 {dimension_numbers = #tpu.dot_dimension_numbers<[1], [0], [0], [1], [0, 0, 1, 1], [], []>} : vector<18x128xbf16>, vector<128x128xbf16>, vector<18x128xf32> -> vector<18x128xf32>
    %26 = arith.truncf %25 : vector<18x128xf32> to vector<18x128xbf16>
    %c72 = arith.constant 72 : index
    %c0_15 = arith.constant 0 : index
    %27 = vector.load %arg4[%c72, %c0_15] : memref<288x128xbf16, #tpu.memory_space<vmem>>, vector<18x128xbf16>
    %cst_16 = arith.constant dense<0.000000e+00> : vector<18x128xf32>
    %28 = tpu.matmul %27, %14, %cst_16 {dimension_numbers = #tpu.dot_dimension_numbers<[1], [0], [0], [1], [0, 0, 1, 1], [], []>} : vector<18x128xbf16>, vector<128x128xbf16>, vector<18x128xf32> -> vector<18x128xf32>
    %29 = arith.truncf %28 : vector<18x128xf32> to vector<18x128xbf16>
    %c90 = arith.constant 90 : index
    %c0_17 = arith.constant 0 : index
    %30 = vector.load %arg4[%c90, %c0_17] : memref<288x128xbf16, #tpu.memory_space<vmem>>, vector<18x128xbf16>
    %cst_18 = arith.constant dense<0.000000e+00> : vector<18x128xf32>
    %31 = tpu.matmul %30, %14, %cst_18 {dimension_numbers = #tpu.dot_dimension_numbers<[1], [0], [0], [1], [0, 0, 1, 1], [], []>} : vector<18x128xbf16>, vector<128x128xbf16>, vector<18x128xf32> -> vector<18x128xf32>
    %32 = arith.truncf %31 : vector<18x128xf32> to vector<18x128xbf16>
    %c108 = arith.constant 108 : index
    %c0_19 = arith.constant 0 : index
    %33 = vector.load %arg4[%c108, %c0_19] : memref<288x128xbf16, #tpu.memory_space<vmem>>, vector<18x128xbf16>
    %cst_20 = arith.constant dense<0.000000e+00> : vector<18x128xf32>
    %34 = tpu.matmul %33, %14, %cst_20 {dimension_numbers = #tpu.dot_dimension_numbers<[1], [0], [0], [1], [0, 0, 1, 1], [], []>} : vector<18x128xbf16>, vector<128x128xbf16>, vector<18x128xf32> -> vector<18x128xf32>
    %35 = arith.truncf %34 : vector<18x128xf32> to vector<18x128xbf16>
    %c126 = arith.constant 126 : index
    %c0_21 = arith.constant 0 : index
    %36 = vector.load %arg4[%c126, %c0_21] : memref<288x128xbf16, #tpu.memory_space<vmem>>, vector<18x128xbf16>
    %cst_22 = arith.constant dense<0.000000e+00> : vector<18x128xf32>
    %37 = tpu.matmul %36, %14, %cst_22 {dimension_numbers = #tpu.dot_dimension_numbers<[1], [0], [0], [1], [0, 0, 1, 1], [], []>} : vector<18x128xbf16>, vector<128x128xbf16>, vector<18x128xf32> -> vector<18x128xf32>
    %38 = arith.truncf %37 : vector<18x128xf32> to vector<18x128xbf16>
    %c144 = arith.constant 144 : index
    %c0_23 = arith.constant 0 : index
    %39 = vector.load %arg4[%c144, %c0_23] : memref<288x128xbf16, #tpu.memory_space<vmem>>, vector<18x128xbf16>
    %cst_24 = arith.constant dense<0.000000e+00> : vector<18x128xf32>
    %40 = tpu.matmul %39, %14, %cst_24 {dimension_numbers = #tpu.dot_dimension_numbers<[1], [0], [0], [1], [0, 0, 1, 1], [], []>} : vector<18x128xbf16>, vector<128x128xbf16>, vector<18x128xf32> -> vector<18x128xf32>
    %41 = arith.truncf %40 : vector<18x128xf32> to vector<18x128xbf16>
    %c162 = arith.constant 162 : index
    %c0_25 = arith.constant 0 : index
    %42 = vector.load %arg4[%c162, %c0_25] : memref<288x128xbf16, #tpu.memory_space<vmem>>, vector<18x128xbf16>
    %cst_26 = arith.constant dense<0.000000e+00> : vector<18x128xf32>
    %43 = tpu.matmul %42, %14, %cst_26 {dimension_numbers = #tpu.dot_dimension_numbers<[1], [0], [0], [1], [0, 0, 1, 1], [], []>} : vector<18x128xbf16>, vector<128x128xbf16>, vector<18x128xf32> -> vector<18x128xf32>
    %44 = arith.truncf %43 : vector<18x128xf32> to vector<18x128xbf16>
    %c180 = arith.constant 180 : index
    %c0_27 = arith.constant 0 : index
    %45 = vector.load %arg4[%c180, %c0_27] : memref<288x128xbf16, #tpu.memory_space<vmem>>, vector<18x128xbf16>
    %cst_28 = arith.constant dense<0.000000e+00> : vector<18x128xf32>
    %46 = tpu.matmul %45, %14, %cst_28 {dimension_numbers = #tpu.dot_dimension_numbers<[1], [0], [0], [1], [0, 0, 1, 1], [], []>} : vector<18x128xbf16>, vector<128x128xbf16>, vector<18x128xf32> -> vector<18x128xf32>
    %47 = arith.truncf %46 : vector<18x128xf32> to vector<18x128xbf16>
    %c198 = arith.constant 198 : index
    %c0_29 = arith.constant 0 : index
    %48 = vector.load %arg4[%c198, %c0_29] : memref<288x128xbf16, #tpu.memory_space<vmem>>, vector<18x128xbf16>
    %cst_30 = arith.constant dense<0.000000e+00> : vector<18x128xf32>
    %49 = tpu.matmul %48, %14, %cst_30 {dimension_numbers = #tpu.dot_dimension_numbers<[1], [0], [0], [1], [0, 0, 1, 1], [], []>} : vector<18x128xbf16>, vector<128x128xbf16>, vector<18x128xf32> -> vector<18x128xf32>
    %50 = arith.truncf %49 : vector<18x128xf32> to vector<18x128xbf16>
    %c216 = arith.constant 216 : index
    %c0_31 = arith.constant 0 : index
    %51 = vector.load %arg4[%c216, %c0_31] : memref<288x128xbf16, #tpu.memory_space<vmem>>, vector<18x128xbf16>
    %cst_32 = arith.constant dense<0.000000e+00> : vector<18x128xf32>
    %52 = tpu.matmul %51, %14, %cst_32 {dimension_numbers = #tpu.dot_dimension_numbers<[1], [0], [0], [1], [0, 0, 1, 1], [], []>} : vector<18x128xbf16>, vector<128x128xbf16>, vector<18x128xf32> -> vector<18x128xf32>
    %53 = arith.truncf %52 : vector<18x128xf32> to vector<18x128xbf16>
    %c234 = arith.constant 234 : index
    %c0_33 = arith.constant 0 : index
    %54 = vector.load %arg4[%c234, %c0_33] : memref<288x128xbf16, #tpu.memory_space<vmem>>, vector<18x128xbf16>
    %cst_34 = arith.constant dense<0.000000e+00> : vector<18x128xf32>
    %55 = tpu.matmul %54, %14, %cst_34 {dimension_numbers = #tpu.dot_dimension_numbers<[1], [0], [0], [1], [0, 0, 1, 1], [], []>} : vector<18x128xbf16>, vector<128x128xbf16>, vector<18x128xf32> -> vector<18x128xf32>
    %56 = arith.truncf %55 : vector<18x128xf32> to vector<18x128xbf16>
    %c252 = arith.constant 252 : index
    %c0_35 = arith.constant 0 : index
    %57 = vector.load %arg4[%c252, %c0_35] : memref<288x128xbf16, #tpu.memory_space<vmem>>, vector<18x128xbf16>
    %cst_36 = arith.constant dense<0.000000e+00> : vector<18x128xf32>
    %58 = tpu.matmul %57, %14, %cst_36 {dimension_numbers = #tpu.dot_dimension_numbers<[1], [0], [0], [1], [0, 0, 1, 1], [], []>} : vector<18x128xbf16>, vector<128x128xbf16>, vector<18x128xf32> -> vector<18x128xf32>
    %59 = arith.truncf %58 : vector<18x128xf32> to vector<18x128xbf16>
    %c270 = arith.constant 270 : index
    %c0_37 = arith.constant 0 : index
    %60 = vector.load %arg4[%c270, %c0_37] : memref<288x128xbf16, #tpu.memory_space<vmem>>, vector<18x128xbf16>
    %cst_38 = arith.constant dense<0.000000e+00> : vector<18x128xf32>
    %61 = tpu.matmul %60, %14, %cst_38 {dimension_numbers = #tpu.dot_dimension_numbers<[1], [0], [0], [1], [0, 0, 1, 1], [], []>} : vector<18x128xbf16>, vector<128x128xbf16>, vector<18x128xf32> -> vector<18x128xf32>
    %62 = arith.truncf %61 : vector<18x128xf32> to vector<18x128xbf16>
    %63 = tpu.concatenate %17, %20, %23, %26, %29, %32, %35, %38, %41, %44, %47, %50, %53, %56, %59, %62 in 1 : vector<18x128xbf16>, vector<18x128xbf16>, vector<18x128xbf16>, vector<18x128xbf16>, vector<18x128xbf16>, vector<18x128xbf16>, vector<18x128xbf16>, vector<18x128xbf16>, vector<18x128xbf16>, vector<18x128xbf16>, vector<18x128xbf16>, vector<18x128xbf16>, vector<18x128xbf16>, vector<18x128xbf16>, vector<18x128xbf16>, vector<18x128xbf16> -> vector<18x2048xbf16>
    %c0_39 = arith.constant 0 : index
    %c0_40 = arith.constant 0 : index
    %64 = vector.load %arg5[%c0_39, %c0_40] : memref<2048x128xbf16, #tpu.memory_space<vmem>>, vector<2048x128xbf16>
    %cst_41 = arith.constant dense<0.000000e+00> : vector<18x128xf32>
    %65 = tpu.matmul %63, %64, %cst_41 {dimension_numbers = #tpu.dot_dimension_numbers<[1], [0], [0], [1], [0, 0, 1, 1], [], []>} : vector<18x2048xbf16>, vector<2048x128xbf16>, vector<18x128xf32> -> vector<18x128xf32>
    %c0_42 = arith.constant 0 : index
    %c0_43 = arith.constant 0 : index
    %66 = vector.load %arg6[%c0_42, %c0_43] : memref<1x128xf32, #tpu.memory_space<vmem>>, vector<1x128xf32>
    %67 = vector.broadcast %66 : vector<1x128xf32> to vector<18x128xf32>
    %68 = arith.addf %65, %67 : vector<18x128xf32>
    %cst_44 = arith.constant 0.000000e+00 : f32
    %69 = vector.broadcast %cst_44 : f32 to vector<18x128xf32>
    %70 = arith.maximumf %68, %69 : vector<18x128xf32>
    %71 = arith.truncf %70 : vector<18x128xf32> to vector<18x128xbf16>
    %c0_45 = arith.constant 0 : index
    %c0_46 = arith.constant 0 : index
    %72 = vector.load %arg7[%c0_45, %c0_46] : memref<18x18xbf16, #tpu.memory_space<vmem>>, vector<2x18xbf16>
    %cst_47 = arith.constant dense<0.000000e+00> : vector<2x128xf32>
    %73 = tpu.matmul %72, %71, %cst_47 {dimension_numbers = #tpu.dot_dimension_numbers<[1], [0], [0], [1], [0, 0, 1, 1], [], []>} : vector<2x18xbf16>, vector<18x128xbf16>, vector<2x128xf32> -> vector<2x128xf32>
    %74 = arith.truncf %73 : vector<2x128xf32> to vector<2x128xbf16>
    %c2 = arith.constant 2 : index
    %c0_48 = arith.constant 0 : index
    %75 = vector.load %arg7[%c2, %c0_48] : memref<18x18xbf16, #tpu.memory_space<vmem>>, vector<2x18xbf16>
    %cst_49 = arith.constant dense<0.000000e+00> : vector<2x128xf32>
    %76 = tpu.matmul %75, %71, %cst_49 {dimension_numbers = #tpu.dot_dimension_numbers<[1], [0], [0], [1], [0, 0, 1, 1], [], []>} : vector<2x18xbf16>, vector<18x128xbf16>, vector<2x128xf32> -> vector<2x128xf32>
    %77 = arith.truncf %76 : vector<2x128xf32> to vector<2x128xbf16>
    %c4 = arith.constant 4 : index
    %c0_50 = arith.constant 0 : index
    %78 = vector.load %arg7[%c4, %c0_50] : memref<18x18xbf16, #tpu.memory_space<vmem>>, vector<2x18xbf16>
    %cst_51 = arith.constant dense<0.000000e+00> : vector<2x128xf32>
    %79 = tpu.matmul %78, %71, %cst_51 {dimension_numbers = #tpu.dot_dimension_numbers<[1], [0], [0], [1], [0, 0, 1, 1], [], []>} : vector<2x18xbf16>, vector<18x128xbf16>, vector<2x128xf32> -> vector<2x128xf32>
    %80 = arith.truncf %79 : vector<2x128xf32> to vector<2x128xbf16>
    %c6 = arith.constant 6 : index
    %c0_52 = arith.constant 0 : index
    %81 = vector.load %arg7[%c6, %c0_52] : memref<18x18xbf16, #tpu.memory_space<vmem>>, vector<2x18xbf16>
    %cst_53 = arith.constant dense<0.000000e+00> : vector<2x128xf32>
    %82 = tpu.matmul %81, %71, %cst_53 {dimension_numbers = #tpu.dot_dimension_numbers<[1], [0], [0], [1], [0, 0, 1, 1], [], []>} : vector<2x18xbf16>, vector<18x128xbf16>, vector<2x128xf32> -> vector<2x128xf32>
    %83 = arith.truncf %82 : vector<2x128xf32> to vector<2x128xbf16>
    %c8 = arith.constant 8 : index
    %c0_54 = arith.constant 0 : index
    %84 = vector.load %arg7[%c8, %c0_54] : memref<18x18xbf16, #tpu.memory_space<vmem>>, vector<2x18xbf16>
    %cst_55 = arith.constant dense<0.000000e+00> : vector<2x128xf32>
    %85 = tpu.matmul %84, %71, %cst_55 {dimension_numbers = #tpu.dot_dimension_numbers<[1], [0], [0], [1], [0, 0, 1, 1], [], []>} : vector<2x18xbf16>, vector<18x128xbf16>, vector<2x128xf32> -> vector<2x128xf32>
    %86 = arith.truncf %85 : vector<2x128xf32> to vector<2x128xbf16>
    %c10 = arith.constant 10 : index
    %c0_56 = arith.constant 0 : index
    %87 = vector.load %arg7[%c10, %c0_56] : memref<18x18xbf16, #tpu.memory_space<vmem>>, vector<2x18xbf16>
    %cst_57 = arith.constant dense<0.000000e+00> : vector<2x128xf32>
    %88 = tpu.matmul %87, %71, %cst_57 {dimension_numbers = #tpu.dot_dimension_numbers<[1], [0], [0], [1], [0, 0, 1, 1], [], []>} : vector<2x18xbf16>, vector<18x128xbf16>, vector<2x128xf32> -> vector<2x128xf32>
    %89 = arith.truncf %88 : vector<2x128xf32> to vector<2x128xbf16>
    %c12 = arith.constant 12 : index
    %c0_58 = arith.constant 0 : index
    %90 = vector.load %arg7[%c12, %c0_58] : memref<18x18xbf16, #tpu.memory_space<vmem>>, vector<2x18xbf16>
    %cst_59 = arith.constant dense<0.000000e+00> : vector<2x128xf32>
    %91 = tpu.matmul %90, %71, %cst_59 {dimension_numbers = #tpu.dot_dimension_numbers<[1], [0], [0], [1], [0, 0, 1, 1], [], []>} : vector<2x18xbf16>, vector<18x128xbf16>, vector<2x128xf32> -> vector<2x128xf32>
    %92 = arith.truncf %91 : vector<2x128xf32> to vector<2x128xbf16>
    %c14 = arith.constant 14 : index
    %c0_60 = arith.constant 0 : index
    %93 = vector.load %arg7[%c14, %c0_60] : memref<18x18xbf16, #tpu.memory_space<vmem>>, vector<2x18xbf16>
    %cst_61 = arith.constant dense<0.000000e+00> : vector<2x128xf32>
    %94 = tpu.matmul %93, %71, %cst_61 {dimension_numbers = #tpu.dot_dimension_numbers<[1], [0], [0], [1], [0, 0, 1, 1], [], []>} : vector<2x18xbf16>, vector<18x128xbf16>, vector<2x128xf32> -> vector<2x128xf32>
    %95 = arith.truncf %94 : vector<2x128xf32> to vector<2x128xbf16>
    %c16 = arith.constant 16 : index
    %c0_62 = arith.constant 0 : index
    %96 = vector.load %arg7[%c16, %c0_62] : memref<18x18xbf16, #tpu.memory_space<vmem>>, vector<2x18xbf16>
    %cst_63 = arith.constant dense<0.000000e+00> : vector<2x128xf32>
    %97 = tpu.matmul %96, %71, %cst_63 {dimension_numbers = #tpu.dot_dimension_numbers<[1], [0], [0], [1], [0, 0, 1, 1], [], []>} : vector<2x18xbf16>, vector<18x128xbf16>, vector<2x128xf32> -> vector<2x128xf32>
    %98 = arith.truncf %97 : vector<2x128xf32> to vector<2x128xbf16>
    %99 = tpu.concatenate %74, %77, %80, %83, %86, %89, %92, %95, %98 in 1 : vector<2x128xbf16>, vector<2x128xbf16>, vector<2x128xbf16>, vector<2x128xbf16>, vector<2x128xbf16>, vector<2x128xbf16>, vector<2x128xbf16>, vector<2x128xbf16>, vector<2x128xbf16> -> vector<2x1152xbf16>
    %c0_i32_64 = arith.constant 0 : i32
    %100 = tpu.memref_slice %arg19[%c0_i32_64] : memref<3x!tpu.dma_semaphore, #tpu.memory_space<semaphore_mem>> -> memref<1x!tpu.dma_semaphore, #tpu.memory_space<semaphore_mem>>
    %101 = tpu.memref_squeeze %100 : memref<1x!tpu.dma_semaphore, #tpu.memory_space<semaphore_mem>> -> memref<!tpu.dma_semaphore, #tpu.memory_space<semaphore_mem>>
    tpu.wait_dma2 semaphore(%101 : memref<!tpu.dma_semaphore, #tpu.memory_space<semaphore_mem>>) src(%arg8 : memref<1152x128xbf16, #tpu.memory_space<any>>) dst(%arg16 : memref<1152x128xbf16, #tpu.memory_space<vmem>>)
    %c0_65 = arith.constant 0 : index
    %c0_66 = arith.constant 0 : index
    %102 = vector.load %arg16[%c0_65, %c0_66] : memref<1152x128xbf16, #tpu.memory_space<vmem>>, vector<1152x128xbf16>
    %cst_67 = arith.constant dense<0.000000e+00> : vector<2x128xf32>
    %103 = tpu.matmul %99, %102, %cst_67 {dimension_numbers = #tpu.dot_dimension_numbers<[1], [0], [0], [1], [0, 0, 1, 1], [], []>} : vector<2x1152xbf16>, vector<1152x128xbf16>, vector<2x128xf32> -> vector<2x128xf32>
    %c0_68 = arith.constant 0 : index
    %c0_69 = arith.constant 0 : index
    %104 = vector.load %arg9[%c0_68, %c0_69] : memref<1x128xf32, #tpu.memory_space<vmem>>, vector<1x128xf32>
    %105 = vector.broadcast %104 : vector<1x128xf32> to vector<2x128xf32>
    %106 = arith.addf %103, %105 : vector<2x128xf32>
    %cst_70 = arith.constant 0.000000e+00 : f32
    %107 = vector.broadcast %cst_70 : f32 to vector<2x128xf32>
    %108 = arith.maximumf %106, %107 : vector<2x128xf32>
    %109 = arith.truncf %108 : vector<2x128xf32> to vector<2x128xbf16>
    %c1_i32_71 = arith.constant 1 : i32
    %110 = tpu.memref_slice %arg19[%c1_i32_71] : memref<3x!tpu.dma_semaphore, #tpu.memory_space<semaphore_mem>> -> memref<1x!tpu.dma_semaphore, #tpu.memory_space<semaphore_mem>>
    %111 = tpu.memref_squeeze %110 : memref<1x!tpu.dma_semaphore, #tpu.memory_space<semaphore_mem>> -> memref<!tpu.dma_semaphore, #tpu.memory_space<semaphore_mem>>
    tpu.wait_dma2 semaphore(%111 : memref<!tpu.dma_semaphore, #tpu.memory_space<semaphore_mem>>) src(%arg11 : memref<128x896xbf16, #tpu.memory_space<any>>) dst(%arg17 : memref<128x896xbf16, #tpu.memory_space<vmem>>)
    %c0_72 = arith.constant 0 : index
    %c0_73 = arith.constant 0 : index
    %112 = vector.load %arg17[%c0_72, %c0_73] : memref<128x896xbf16, #tpu.memory_space<vmem>>, vector<128x896xbf16>
    %cst_74 = arith.constant dense<0.000000e+00> : vector<2x896xf32>
    %113 = tpu.matmul %109, %112, %cst_74 {dimension_numbers = #tpu.dot_dimension_numbers<[1], [0], [0], [1], [0, 0, 1, 1], [], []>} : vector<2x128xbf16>, vector<128x896xbf16>, vector<2x896xf32> -> vector<2x896xf32>
    %c0_75 = arith.constant 0 : index
    %c0_76 = arith.constant 0 : index
    %114 = vector.load %arg12[%c0_75, %c0_76] : memref<1x896xf32, #tpu.memory_space<vmem>>, vector<1x896xf32>
    %115 = vector.broadcast %114 : vector<1x896xf32> to vector<2x896xf32>
    %116 = arith.addf %113, %115 : vector<2x896xf32>
    %cst_77 = arith.constant 0.000000e+00 : f32
    %117 = vector.broadcast %cst_77 : f32 to vector<2x896xf32>
    %118 = arith.maximumf %116, %117 : vector<2x896xf32>
    %119 = arith.truncf %118 : vector<2x896xf32> to vector<2x896xbf16>
    %c2_i32_78 = arith.constant 2 : i32
    %120 = tpu.memref_slice %arg19[%c2_i32_78] : memref<3x!tpu.dma_semaphore, #tpu.memory_space<semaphore_mem>> -> memref<1x!tpu.dma_semaphore, #tpu.memory_space<semaphore_mem>>
    %121 = tpu.memref_squeeze %120 : memref<1x!tpu.dma_semaphore, #tpu.memory_space<semaphore_mem>> -> memref<!tpu.dma_semaphore, #tpu.memory_space<semaphore_mem>>
    tpu.wait_dma2 semaphore(%121 : memref<!tpu.dma_semaphore, #tpu.memory_space<semaphore_mem>>) src(%arg13 : memref<896x128xbf16, #tpu.memory_space<any>>) dst(%arg18 : memref<896x128xbf16, #tpu.memory_space<vmem>>)
    %c0_79 = arith.constant 0 : index
    %c0_80 = arith.constant 0 : index
    %122 = vector.load %arg18[%c0_79, %c0_80] : memref<896x128xbf16, #tpu.memory_space<vmem>>, vector<896x128xbf16>
    %cst_81 = arith.constant dense<0.000000e+00> : vector<2x128xf32>
    %123 = tpu.matmul %119, %122, %cst_81 {dimension_numbers = #tpu.dot_dimension_numbers<[1], [0], [0], [1], [0, 0, 1, 1], [], []>} : vector<2x896xbf16>, vector<896x128xbf16>, vector<2x128xf32> -> vector<2x128xf32>
    %c0_82 = arith.constant 0 : index
    %c0_83 = arith.constant 0 : index
    %124 = vector.load %arg14[%c0_82, %c0_83] : memref<1x128xf32, #tpu.memory_space<vmem>>, vector<1x128xf32>
    %125 = vector.broadcast %124 : vector<1x128xf32> to vector<2x128xf32>
    %126 = arith.addf %123, %125 : vector<2x128xf32>
    %c0_84 = arith.constant 0 : index
    %c0_85 = arith.constant 0 : index
    %127 = vector.load %arg15[%c0_84, %c0_85] : memref<2x128xf32, #tpu.memory_space<vmem>>, vector<2x128xf32>
    tpu.vector_store %arg15[%c0_84, %c0_85], %126 {strides = array<i32>} : memref<2x128xf32, #tpu.memory_space<vmem>>, vector<2x128xf32>,
    return
  }
  func.func @transform_0(%arg0: i32) -> (i32, i32) {
    %c0_i32 = arith.constant 0 : i32
    %c0_i32_0 = arith.constant 0 : i32
    return %arg0, %c0_i32 : i32, i32
  }
  func.func @transform_1(%arg0: i32) -> (i32, i32) {
    %c0_i32 = arith.constant 0 : i32
    %c0_i32_0 = arith.constant 0 : i32
    %c0_i32_1 = arith.constant 0 : i32
    return %c0_i32, %c0_i32_0 : i32, i32
  }
  func.func @transform_2(%arg0: i32) -> (i32, i32) {
    %c0_i32 = arith.constant 0 : i32
    %c0_i32_0 = arith.constant 0 : i32
    %c0_i32_1 = arith.constant 0 : i32
    return %c0_i32, %c0_i32_0 : i32, i32
  }
  func.func @transform_3(%arg0: i32) -> (i32, i32) {
    %c0_i32 = arith.constant 0 : i32
    %c0_i32_0 = arith.constant 0 : i32
    %c0_i32_1 = arith.constant 0 : i32
    return %c0_i32, %c0_i32_0 : i32, i32
  }
  func.func @transform_4(%arg0: i32) -> (i32, i32) {
    %c0_i32 = arith.constant 0 : i32
    %c0_i32_0 = arith.constant 0 : i32
    %c0_i32_1 = arith.constant 0 : i32
    return %c0_i32, %c0_i32_0 : i32, i32
  }
  func.func @transform_5(%arg0: i32) -> (i32, i32) {
    %c0_i32 = arith.constant 0 : i32
    %c0_i32_0 = arith.constant 0 : i32
    %c0_i32_1 = arith.constant 0 : i32
    return %c0_i32, %c0_i32_0 : i32, i32
  }
  func.func @transform_6(%arg0: i32) -> (i32, i32) {
    %c0_i32 = arith.constant 0 : i32
    %c0_i32_0 = arith.constant 0 : i32
    %c0_i32_1 = arith.constant 0 : i32
    return %c0_i32, %c0_i32_0 : i32, i32
  }
  func.func @transform_8(%arg0: i32) -> (i32, i32) {
    %c0_i32 = arith.constant 0 : i32
    %c0_i32_0 = arith.constant 0 : i32
    %c0_i32_1 = arith.constant 0 : i32
    return %c0_i32, %c0_i32_0 : i32, i32
  }
  func.func @transform_9(%arg0: i32) -> (i32, i32) {
    %c0_i32 = arith.constant 0 : i32
    %c0_i32_0 = arith.constant 0 : i32
    %c0_i32_1 = arith.constant 0 : i32
    return %c0_i32, %c0_i32_0 : i32, i32
  }
  func.func @transform_11(%arg0: i32) -> (i32, i32) {
    %c0_i32 = arith.constant 0 : i32
    %c0_i32_0 = arith.constant 0 : i32
    %c0_i32_1 = arith.constant 0 : i32
    return %c0_i32, %c0_i32_0 : i32, i32
  }
  func.func @transform_13(%arg0: i32) -> (i32, i32) {
    %c0_i32 = arith.constant 0 : i32
    %c0_i32_0 = arith.constant 0 : i32
    %c0_i32_1 = arith.constant 0 : i32
    return %c0_i32, %c0_i32_0 : i32, i32
  }
  func.func @transform_14(%arg0: i32) -> (i32, i32) {
    %c0_i32 = arith.constant 0 : i32
    %c0_i32_0 = arith.constant 0 : i32
    return %arg0, %c0_i32 : i32, i32
  }
}

</mosaic_0001>

<llo_original>
// kernel: custom_solver_forward.1
$region0: #{custom_solver_forward.1}
  #allocation0 [shape = 'u32[]', space=smem, size = 0x4, offset = 0x4, fixed_abs, tag = 'smem constant byte address 0x4 - core index']
  #allocation1 [shape = 'u32[72,128]{1,0:T(1,128)}', space=vmem, size = 0x9000, scoped, tag = 'internal scratch']
  #allocation2 [shape = 'bf16[1152,128]{1,0:T(8,128)(2,1)}', space=vmem, size = 0x48000, scoped, tag = 'scratch operand']
  #allocation3 [shape = 'bf16[128,896]{1,0:T(8,128)(2,1)}', space=vmem, size = 0x38000, scoped, tag = 'scratch operand']
  #allocation4 [shape = 'bf16[896,128]{1,0:T(8,128)(2,1)}', space=vmem, size = 0x38000, scoped, tag = 'scratch operand']
  #allocation5 [shape = 's32[3]{0}', space=sflag, size = 0xc, scoped, tag = 'scratch operand']
  #allocation8 [shape = 's32[]', space=sflag, size = 0x4, offset = 0, fixed_abs, tag = 'sflag constant byte address 0x0 - dummy sync flag']
  #allocation9 [shape = 's32[]', space=sflag, size = 0x4, offset = 0, fixed_abs, tag = 'sflag constant byte address 0x0 - dummy sync flag']
  #allocation10 [shape = 's32[]', space=sflag, size = 0x4, offset = 0, fixed_abs, tag = 'sflag constant byte address 0x0 - dummy sync flag']
  %s0 = inlined_call_operand.vmem [shape: bf16[128,64], index: 0, kind: input, shape index: {}]
  %s1 = inlined_call_operand.vmem [shape: bf16[64,128], index: 1, kind: input, shape index: {}]
  %s2 = inlined_call_operand.vmem [shape: f32[1,128], index: 2, kind: input, shape index: {}]
  %s3 = inlined_call_operand.vmem [shape: bf16[288,128], index: 3, kind: input, shape index: {}]
  %s4 = inlined_call_operand.vmem [shape: bf16[2048,128], index: 4, kind: input, shape index: {}]
  %s5 = inlined_call_operand.vmem [shape: f32[1,128], index: 5, kind: input, shape index: {}]
  %s6 = inlined_call_operand.vmem [shape: bf16[18,18], index: 6, kind: input, shape index: {}]
  %s7 = inlined_call_operand.vmem [shape: bf16[1152,128], index: 7, kind: input, shape index: {}]
  %s8 = inlined_call_operand.vmem [shape: f32[1,128], index: 8, kind: input, shape index: {}]
  %s9 = inlined_call_operand.vmem [shape: bf16[2,2], index: 9, kind: input, shape index: {}]
  %s10 = inlined_call_operand.vmem [shape: bf16[128,896], index: 10, kind: input, shape index: {}]
  %s11 = inlined_call_operand.vmem [shape: f32[1,896], index: 11, kind: input, shape index: {}]
  %s12 = inlined_call_operand.vmem [shape: bf16[896,128], index: 12, kind: input, shape index: {}]
  %s13 = inlined_call_operand.vmem [shape: f32[1,128], index: 13, kind: input, shape index: {}]
  %s14 = inlined_call_operand.hbm [shape: f32[2,128], index: 14, kind: output, shape index: {}]
  %s15 = sld [smem:[#allocation0]]
  $region111: #{custom_solver_forward.1} parent=0
    _
  %s17 = ssub.s32 1, %s15
  %s18 = scalar_select 0, %s17, %s15
  $region1: #{custom_solver_forward.1} parent=0
    #allocation6 [shape = 'u8[1024]{0}', space=vmem, size = 0x400, scoped, tag = 'output window, operand 0, single buffered']
    #allocation7 [shape = 's32[1]{0}', space=sflag, size = 0x4, scoped, tag = 'scoped memory for custom_solver_forward.1']
    %19 = vsyncpa [#allocation7], 0
    // Predicated region
    $region2: #{custom_solver_forward.1} parent=1 // pred_check
      _
    $region3: #{custom_solver_forward.1} parent=1 // pred_check_branch
      %21 = sbr.rel (0) target = $region5
    $region4: #{custom_solver_forward.1} parent=1 // pred_region
      _
    $region5: #{custom_solver_forward.1} parent=1 // pred_fallthru
      _
    // Predicated region
    $region6: #{custom_solver_forward.1} parent=1 // pred_check
      _
    $region7: #{custom_solver_forward.1} parent=1 // pred_check_branch
      %23 = sbr.rel (0) target = $region9
    $region8: #{custom_solver_forward.1} parent=1 // pred_region
      _
    $region9: #{custom_solver_forward.1} parent=1 // pred_fallthru
      _
    // Predicated region
    $region10: #{custom_solver_forward.1} parent=1 // pred_check
      _
    $region11: #{custom_solver_forward.1} parent=1 // pred_check_branch
      %25 = sbr.rel (0) target = $region13
    $region12: #{custom_solver_forward.1} parent=1 // pred_region
      _
    $region13: #{custom_solver_forward.1} parent=1 // pred_fallthru
      _
    // Predicated region
    $region14: #{custom_solver_forward.1} parent=1 // pred_check
      _
    $region15: #{custom_solver_forward.1} parent=1 // pred_check_branch
      %27 = sbr.rel (0) target = $region17
    $region16: #{custom_solver_forward.1} parent=1 // pred_region
      _
    $region17: #{custom_solver_forward.1} parent=1 // pred_fallthru
      _
    // Predicated region
    $region18: #{custom_solver_forward.1} parent=1 // pred_check
      _
    $region19: #{custom_solver_forward.1} parent=1 // pred_check_branch
      %29 = sbr.rel (0) target = $region21
    $region20: #{custom_solver_forward.1} parent=1 // pred_region
      _
    $region21: #{custom_solver_forward.1} parent=1 // pred_fallthru
      _
    // Predicated region
    $region22: #{custom_solver_forward.1} parent=1 // pred_check
      _
    $region23: #{custom_solver_forward.1} parent=1 // pred_check_branch
      %31 = sbr.rel (0) target = $region25
    $region24: #{custom_solver_forward.1} parent=1 // pred_region
      _
    $region25: #{custom_solver_forward.1} parent=1 // pred_fallthru
      _
    // Predicated region
    $region26: #{custom_solver_forward.1} parent=1 // pred_check
      _
    $region27: #{custom_solver_forward.1} parent=1 // pred_check_branch
      %33 = sbr.rel (0) target = $region29
    $region28: #{custom_solver_forward.1} parent=1 // pred_region
      _
    $region29: #{custom_solver_forward.1} parent=1 // pred_fallthru
      _
    // Predicated region
    $region30: #{custom_solver_forward.1} parent=1 // pred_check
      _
    $region31: #{custom_solver_forward.1} parent=1 // pred_check_branch
      %35 = sbr.rel (0) target = $region33
    $region32: #{custom_solver_forward.1} parent=1 // pred_region
      _
    $region33: #{custom_solver_forward.1} parent=1 // pred_fallthru
      _
    // Predicated region
    $region34: #{custom_solver_forward.1} parent=1 // pred_check
      _
    $region35: #{custom_solver_forward.1} parent=1 // pred_check_branch
      %37 = sbr.rel (0) target = $region37
    $region36: #{custom_solver_forward.1} parent=1 // pred_region
      _
    $region37: #{custom_solver_forward.1} parent=1 // pred_fallthru
      _
    // Predicated region
    $region38: #{custom_solver_forward.1} parent=1 // pred_check
      _
    $region39: #{custom_solver_forward.1} parent=1 // pred_check_branch
      %39 = sbr.rel (0) target = $region41
    $region40: #{custom_solver_forward.1} parent=1 // pred_region
      _
    $region41: #{custom_solver_forward.1} parent=1 // pred_fallthru
      _
    // Predicated region
    $region42: #{custom_solver_forward.1} parent=1 // pred_check
      _
    $region43: #{custom_solver_forward.1} parent=1 // pred_check_branch
      %41 = sbr.rel (0) target = $region45
    $region44: #{custom_solver_forward.1} parent=1 // pred_region
      _
    $region45: #{custom_solver_forward.1} parent=1 // pred_fallthru
      _
    // Predicated region
    $region46: #{custom_solver_forward.1} parent=1 // pred_check
      _
    $region47: #{custom_solver_forward.1} parent=1 // pred_check_branch
      %44 = sbr.rel (0) target = $region49
    $region48: #{custom_solver_forward.1} parent=1 // pred_region
      loop: start=0, step=1, limit=1
      $region50: #{custom_solver_forward.1} parent=48 // loop_pre_header
        _
      $region51: #{custom_solver_forward.1} parent=48 // loop_header
        %s46 = sphi 0, %s50
        %p47 = scmp.ge.s32.totalorder %s46, 1
        %s51 = sphi %s7, %s7
        %s52 = sphi [#allocation2], [#allocation2]
      $region52: #{custom_solver_forward.1} parent=48 // loop_header_branch
        %49 = sbr.rel (%p47) target = $region56
      $region53: #{custom_solver_forward.1} parent=48 // loop_body
        %v53 = vld [vmem:[%s51] sm:$0xff]
        %54 = vst [vmem:[%s52] sm:$0xff] %v53
        %v55 = vld [vmem:[%s51 + $0x8] sm:$0xff]
        %56 = vst [vmem:[%s52 + $0x8] sm:$0xff] %v55
        %v57 = vld [vmem:[%s51 + $0x10] sm:$0xff]
        %58 = vst [vmem:[%s52 + $0x10] sm:$0xff] %v57
        %v59 = vld [vmem:[%s51 + $0x18] sm:$0xff]
        %60 = vst [vmem:[%s52 + $0x18] sm:$0xff] %v59
        %v61 = vld [vmem:[%s51 + $0x20] sm:$0xff]
        %62 = vst [vmem:[%s52 + $0x20] sm:$0xff] %v61
        %v63 = vld [vmem:[%s51 + $0x28] sm:$0xff]
        %64 = vst [vmem:[%s52 + $0x28] sm:$0xff] %v63
        %v65 = vld [vmem:[%s51 + $0x30] sm:$0xff]
        %66 = vst [vmem:[%s52 + $0x30] sm:$0xff] %v65
        %v67 = vld [vmem:[%s51 + $0x38] sm:$0xff]
        %68 = vst [vmem:[%s52 + $0x38] sm:$0xff] %v67
        %v69 = vld [vmem:[%s51 + $0x40] sm:$0xff]
        %70 = vst [vmem:[%s52 + $0x40] sm:$0xff] %v69
        %v71 = vld [vmem:[%s51 + $0x48] sm:$0xff]
        %72 = vst [vmem:[%s52 + $0x48] sm:$0xff] %v71
        %v73 = vld [vmem:[%s51 + $0x50] sm:$0xff]
        %74 = vst [vmem:[%s52 + $0x50] sm:$0xff] %v73
        %v75 = vld [vmem:[%s51 + $0x58] sm:$0xff]
        %76 = vst [vmem:[%s52 + $0x58] sm:$0xff] %v75
        %v77 = vld [vmem:[%s51 + $0x60] sm:$0xff]
        %78 = vst [vmem:[%s52 + $0x60] sm:$0xff] %v77
        %v79 = vld [vmem:[%s51 + $0x68] sm:$0xff]
        %80 = vst [vmem:[%s52 + $0x68] sm:$0xff] %v79
        %v81 = vld [vmem:[%s51 + $0x70] sm:$0xff]
        %82 = vst [vmem:[%s52 + $0x70] sm:$0xff] %v81
        %v83 = vld [vmem:[%s51 + $0x78] sm:$0xff]
        %84 = vst [vmem:[%s52 + $0x78] sm:$0xff] %v83
        %v85 = vld [vmem:[%s51 + $0x80] sm:$0xff]
        %86 = vst [vmem:[%s52 + $0x80] sm:$0xff] %v85
        %v87 = vld [vmem:[%s51 + $0x88] sm:$0xff]
        %88 = vst [vmem:[%s52 + $0x88] sm:$0xff] %v87
        %v89 = vld [vmem:[%s51 + $0x90] sm:$0xff]
        %90 = vst [vmem:[%s52 + $0x90] sm:$0xff] %v89
        %v91 = vld [vmem:[%s51 + $0x98] sm:$0xff]
        %92 = vst [vmem:[%s52 + $0x98] sm:$0xff] %v91
        %v93 = vld [vmem:[%s51 + $0xa0] sm:$0xff]
        %94 = vst [vmem:[%s52 + $0xa0] sm:$0xff] %v93
        %v95 = vld [vmem:[%s51 + $0xa8] sm:$0xff]
        %96 = vst [vmem:[%s52 + $0xa8] sm:$0xff] %v95
        %v97 = vld [vmem:[%s51 + $0xb0] sm:$0xff]
        %98 = vst [vmem:[%s52 + $0xb0] sm:$0xff] %v97
        %v99 = vld [vmem:[%s51 + $0xb8] sm:$0xff]
        %100 = vst [vmem:[%s52 + $0xb8] sm:$0xff] %v99
        %v101 = vld [vmem:[%s51 + $0xc0] sm:$0xff]
        %102 = vst [vmem:[%s52 + $0xc0] sm:$0xff] %v101
        %v103 = vld [vmem:[%s51 + $0xc8] sm:$0xff]
        %104 = vst [vmem:[%s52 + $0xc8] sm:$0xff] %v103
        %v105 = vld [vmem:[%s51 + $0xd0] sm:$0xff]
        %106 = vst [vmem:[%s52 + $0xd0] sm:$0xff] %v105
        %v107 = vld [vmem:[%s51 + $0xd8] sm:$0xff]
        %108 = vst [vmem:[%s52 + $0xd8] sm:$0xff] %v107
        %v109 = vld [vmem:[%s51 + $0xe0] sm:$0xff]
        %110 = vst [vmem:[%s52 + $0xe0] sm:$0xff] %v109
        %v111 = vld [vmem:[%s51 + $0xe8] sm:$0xff]
        %112 = vst [vmem:[%s52 + $0xe8] sm:$0xff] %v111
        %v113 = vld [vmem:[%s51 + $0xf0] sm:$0xff]
        %114 = vst [vmem:[%s52 + $0xf0] sm:$0xff] %v113
        %v115 = vld [vmem:[%s51 + $0xf8] sm:$0xff]
        %116 = vst [vmem:[%s52 + $0xf8] sm:$0xff] %v115
        %v117 = vld [vmem:[%s51 + $0x100] sm:$0xff]
        %118 = vst [vmem:[%s52 + $0x100] sm:$0xff] %v117
        %v119 = vld [vmem:[%s51 + $0x108] sm:$0xff]
        %120 = vst [vmem:[%s52 + $0x108] sm:$0xff] %v119
        %v121 = vld [vmem:[%s51 + $0x110] sm:$0xff]
        %122 = vst [vmem:[%s52 + $0x110] sm:$0xff] %v121
        %v123 = vld [vmem:[%s51 + $0x118] sm:$0xff]
        %124 = vst [vmem:[%s52 + $0x118] sm:$0xff] %v123
        %v125 = vld [vmem:[%s51 + $0x120] sm:$0xff]
        %126 = vst [vmem:[%s52 + $0x120] sm:$0xff] %v125
        %v127 = vld [vmem:[%s51 + $0x128] sm:$0xff]
        %128 = vst [vmem:[%s52 + $0x128] sm:$0xff] %v127
        %v129 = vld [vmem:[%s51 + $0x130] sm:$0xff]
        %130 = vst [vmem:[%s52 + $0x130] sm:$0xff] %v129
        %v131 = vld [vmem:[%s51 + $0x138] sm:$0xff]
        %132 = vst [vmem:[%s52 + $0x138] sm:$0xff] %v131
        %v133 = vld [vmem:[%s51 + $0x140] sm:$0xff]
        %134 = vst [vmem:[%s52 + $0x140] sm:$0xff] %v133
        %v135 = vld [vmem:[%s51 + $0x148] sm:$0xff]
        %136 = vst [vmem:[%s52 + $0x148] sm:$0xff] %v135
        %v137 = vld [vmem:[%s51 + $0x150] sm:$0xff]
        %138 = vst [vmem:[%s52 + $0x150] sm:$0xff] %v137
        %v139 = vld [vmem:[%s51 + $0x158] sm:$0xff]
        %140 = vst [vmem:[%s52 + $0x158] sm:$0xff] %v139
        %v141 = vld [vmem:[%s51 + $0x160] sm:$0xff]
        %142 = vst [vmem:[%s52 + $0x160] sm:$0xff] %v141
        %v143 = vld [vmem:[%s51 + $0x168] sm:$0xff]
        %144 = vst [vmem:[%s52 + $0x168] sm:$0xff] %v143
        %v145 = vld [vmem:[%s51 + $0x170] sm:$0xff]
        %146 = vst [vmem:[%s52 + $0x170] sm:$0xff] %v145
        %v147 = vld [vmem:[%s51 + $0x178] sm:$0xff]
        %148 = vst [vmem:[%s52 + $0x178] sm:$0xff] %v147
        %v149 = vld [vmem:[%s51 + $0x180] sm:$0xff]
        %150 = vst [vmem:[%s52 + $0x180] sm:$0xff] %v149
        %v151 = vld [vmem:[%s51 + $0x188] sm:$0xff]
        %152 = vst [vmem:[%s52 + $0x188] sm:$0xff] %v151
        %v153 = vld [vmem:[%s51 + $0x190] sm:$0xff]
        %154 = vst [vmem:[%s52 + $0x190] sm:$0xff] %v153
        %v155 = vld [vmem:[%s51 + $0x198] sm:$0xff]
        %156 = vst [vmem:[%s52 + $0x198] sm:$0xff] %v155
        %v157 = vld [vmem:[%s51 + $0x1a0] sm:$0xff]
        %158 = vst [vmem:[%s52 + $0x1a0] sm:$0xff] %v157
        %v159 = vld [vmem:[%s51 + $0x1a8] sm:$0xff]
        %160 = vst [vmem:[%s52 + $0x1a8] sm:$0xff] %v159
        %v161 = vld [vmem:[%s51 + $0x1b0] sm:$0xff]
        %162 = vst [vmem:[%s52 + $0x1b0] sm:$0xff] %v161
        %v163 = vld [vmem:[%s51 + $0x1b8] sm:$0xff]
        %164 = vst [vmem:[%s52 + $0x1b8] sm:$0xff] %v163
        %v165 = vld [vmem:[%s51 + $0x1c0] sm:$0xff]
        %166 = vst [vmem:[%s52 + $0x1c0] sm:$0xff] %v165
        %v167 = vld [vmem:[%s51 + $0x1c8] sm:$0xff]
        %168 = vst [vmem:[%s52 + $0x1c8] sm:$0xff] %v167
        %v169 = vld [vmem:[%s51 + $0x1d0] sm:$0xff]
        %170 = vst [vmem:[%s52 + $0x1d0] sm:$0xff] %v169
        %v171 = vld [vmem:[%s51 + $0x1d8] sm:$0xff]
        %172 = vst [vmem:[%s52 + $0x1d8] sm:$0xff] %v171
        %v173 = vld [vmem:[%s51 + $0x1e0] sm:$0xff]
        %174 = vst [vmem:[%s52 + $0x1e0] sm:$0xff] %v173
        %v175 = vld [vmem:[%s51 + $0x1e8] sm:$0xff]
        %176 = vst [vmem:[%s52 + $0x1e8] sm:$0xff] %v175
        %v177 = vld [vmem:[%s51 + $0x1f0] sm:$0xff]
        %178 = vst [vmem:[%s52 + $0x1f0] sm:$0xff] %v177
        %v179 = vld [vmem:[%s51 + $0x1f8] sm:$0xff]
        %180 = vst [vmem:[%s52 + $0x1f8] sm:$0xff] %v179
        %v181 = vld [vmem:[%s51 + $0x200] sm:$0xff]
        %182 = vst [vmem:[%s52 + $0x200] sm:$0xff] %v181
        %v183 = vld [vmem:[%s51 + $0x208] sm:$0xff]
        %184 = vst [vmem:[%s52 + $0x208] sm:$0xff] %v183
        %v185 = vld [vmem:[%s51 + $0x210] sm:$0xff]
        %186 = vst [vmem:[%s52 + $0x210] sm:$0xff] %v185
        %v187 = vld [vmem:[%s51 + $0x218] sm:$0xff]
        %188 = vst [vmem:[%s52 + $0x218] sm:$0xff] %v187
        %v189 = vld [vmem:[%s51 + $0x220] sm:$0xff]
        %190 = vst [vmem:[%s52 + $0x220] sm:$0xff] %v189
        %v191 = vld [vmem:[%s51 + $0x228] sm:$0xff]
        %192 = vst [vmem:[%s52 + $0x228] sm:$0xff] %v191
        %v193 = vld [vmem:[%s51 + $0x230] sm:$0xff]
        %194 = vst [vmem:[%s52 + $0x230] sm:$0xff] %v193
        %v195 = vld [vmem:[%s51 + $0x238] sm:$0xff]
        %196 = vst [vmem:[%s52 + $0x238] sm:$0xff] %v195
      $region54: #{custom_solver_forward.1} parent=48 // loop_footer
        %s50 = sadd.s32 1, %s46
      $region55: #{custom_solver_forward.1} parent=48 // loop_footer_branch
        %45 = sbr.rel target = $region51
      $region56: #{custom_solver_forward.1} parent=48 // loop_exit
        _
    $region49: #{custom_solver_forward.1} parent=1 // pred_fallthru
      _
    // Predicated region
    $region57: #{custom_solver_forward.1} parent=1 // pred_check
      _
    $region58: #{custom_solver_forward.1} parent=1 // pred_check_branch
      %198 = sbr.rel target = $region60
    $region59: #{custom_solver_forward.1} parent=1 // pred_region
      _
    $region60: #{custom_solver_forward.1} parent=1 // pred_fallthru
      _
    // Predicated region
    $region61: #{custom_solver_forward.1} parent=1 // pred_check
      _
    $region62: #{custom_solver_forward.1} parent=1 // pred_check_branch
      %201 = sbr.rel (0) target = $region64
    $region63: #{custom_solver_forward.1} parent=1 // pred_region
      %202 = vsyncadd [#allocation5], 9216
    $region64: #{custom_solver_forward.1} parent=1 // pred_fallthru
      _
    %s203 = scalar_lea.sflag [#allocation5], 1
    // Predicated region
    $region65: #{custom_solver_forward.1} parent=1 // pred_check
      _
    $region66: #{custom_solver_forward.1} parent=1 // pred_check_branch
      %205 = sbr.rel (0) target = $region68
    $region67: #{custom_solver_forward.1} parent=1 // pred_region
      loop: start=0, step=1, limit=1
      $region69: #{custom_solver_forward.1} parent=67 // loop_pre_header
        _
      $region70: #{custom_solver_forward.1} parent=67 // loop_header
        %s207 = sphi 0, %s211
        %p208 = scmp.ge.s32.totalorder %s207, 1
        %s212 = sphi %s10, %s10
        %s213 = sphi [#allocation3], [#allocation3]
      $region71: #{custom_solver_forward.1} parent=67 // loop_header_branch
        %210 = sbr.rel (%p208) target = $region75
      $region72: #{custom_solver_forward.1} parent=67 // loop_body
        %v214 = vld [vmem:[%s212] sm:$0xff]
        %215 = vst [vmem:[%s213] sm:$0xff] %v214
        %v216 = vld [vmem:[%s212 + $0x8] sm:$0xff]
        %217 = vst [vmem:[%s213 + $0x8] sm:$0xff] %v216
        %v218 = vld [vmem:[%s212 + $0x10] sm:$0xff]
        %219 = vst [vmem:[%s213 + $0x10] sm:$0xff] %v218
        %v220 = vld [vmem:[%s212 + $0x18] sm:$0xff]
        %221 = vst [vmem:[%s213 + $0x18] sm:$0xff] %v220
        %v222 = vld [vmem:[%s212 + $0x20] sm:$0xff]
        %223 = vst [vmem:[%s213 + $0x20] sm:$0xff] %v222
        %v224 = vld [vmem:[%s212 + $0x28] sm:$0xff]
        %225 = vst [vmem:[%s213 + $0x28] sm:$0xff] %v224
        %v226 = vld [vmem:[%s212 + $0x30] sm:$0xff]
        %227 = vst [vmem:[%s213 + $0x30] sm:$0xff] %v226
        %v228 = vld [vmem:[%s212 + $0x38] sm:$0xff]
        %229 = vst [vmem:[%s213 + $0x38] sm:$0xff] %v228
        %v230 = vld [vmem:[%s212 + $0x40] sm:$0xff]
        %231 = vst [vmem:[%s213 + $0x40] sm:$0xff] %v230
        %v232 = vld [vmem:[%s212 + $0x48] sm:$0xff]
        %233 = vst [vmem:[%s213 + $0x48] sm:$0xff] %v232
        %v234 = vld [vmem:[%s212 + $0x50] sm:$0xff]
        %235 = vst [vmem:[%s213 + $0x50] sm:$0xff] %v234
        %v236 = vld [vmem:[%s212 + $0x58] sm:$0xff]
        %237 = vst [vmem:[%s213 + $0x58] sm:$0xff] %v236
        %v238 = vld [vmem:[%s212 + $0x60] sm:$0xff]
        %239 = vst [vmem:[%s213 + $0x60] sm:$0xff] %v238
        %v240 = vld [vmem:[%s212 + $0x68] sm:$0xff]
        %241 = vst [vmem:[%s213 + $0x68] sm:$0xff] %v240
        %v242 = vld [vmem:[%s212 + $0x70] sm:$0xff]
        %243 = vst [vmem:[%s213 + $0x70] sm:$0xff] %v242
        %v244 = vld [vmem:[%s212 + $0x78] sm:$0xff]
        %245 = vst [vmem:[%s213 + $0x78] sm:$0xff] %v244
        %v246 = vld [vmem:[%s212 + $0x80] sm:$0xff]
        %247 = vst [vmem:[%s213 + $0x80] sm:$0xff] %v246
        %v248 = vld [vmem:[%s212 + $0x88] sm:$0xff]
        %249 = vst [vmem:[%s213 + $0x88] sm:$0xff] %v248
        %v250 = vld [vmem:[%s212 + $0x90] sm:$0xff]
        %251 = vst [vmem:[%s213 + $0x90] sm:$0xff] %v250
        %v252 = vld [vmem:[%s212 + $0x98] sm:$0xff]
        %253 = vst [vmem:[%s213 + $0x98] sm:$0xff] %v252
        %v254 = vld [vmem:[%s212 + $0xa0] sm:$0xff]
        %255 = vst [vmem:[%s213 + $0xa0] sm:$0xff] %v254
        %v256 = vld [vmem:[%s212 + $0xa8] sm:$0xff]
        %257 = vst [vmem:[%s213 + $0xa8] sm:$0xff] %v256
        %v258 = vld [vmem:[%s212 + $0xb0] sm:$0xff]
        %259 = vst [vmem:[%s213 + $0xb0] sm:$0xff] %v258
        %v260 = vld [vmem:[%s212 + $0xb8] sm:$0xff]
        %261 = vst [vmem:[%s213 + $0xb8] sm:$0xff] %v260
        %v262 = vld [vmem:[%s212 + $0xc0] sm:$0xff]
        %263 = vst [vmem:[%s213 + $0xc0] sm:$0xff] %v262
        %v264 = vld [vmem:[%s212 + $0xc8] sm:$0xff]
        %265 = vst [vmem:[%s213 + $0xc8] sm:$0xff] %v264
        %v266 = vld [vmem:[%s212 + $0xd0] sm:$0xff]
        %267 = vst [vmem:[%s213 + $0xd0] sm:$0xff] %v266
        %v268 = vld [vmem:[%s212 + $0xd8] sm:$0xff]
        %269 = vst [vmem:[%s213 + $0xd8] sm:$0xff] %v268
        %v270 = vld [vmem:[%s212 + $0xe0] sm:$0xff]
        %271 = vst [vmem:[%s213 + $0xe0] sm:$0xff] %v270
        %v272 = vld [vmem:[%s212 + $0xe8] sm:$0xff]
        %273 = vst [vmem:[%s213 + $0xe8] sm:$0xff] %v272
        %v274 = vld [vmem:[%s212 + $0xf0] sm:$0xff]
        %275 = vst [vmem:[%s213 + $0xf0] sm:$0xff] %v274
        %v276 = vld [vmem:[%s212 + $0xf8] sm:$0xff]
        %277 = vst [vmem:[%s213 + $0xf8] sm:$0xff] %v276
        %v278 = vld [vmem:[%s212 + $0x100] sm:$0xff]
        %279 = vst [vmem:[%s213 + $0x100] sm:$0xff] %v278
        %v280 = vld [vmem:[%s212 + $0x108] sm:$0xff]
        %281 = vst [vmem:[%s213 + $0x108] sm:$0xff] %v280
        %v282 = vld [vmem:[%s212 + $0x110] sm:$0xff]
        %283 = vst [vmem:[%s213 + $0x110] sm:$0xff] %v282
        %v284 = vld [vmem:[%s212 + $0x118] sm:$0xff]
        %285 = vst [vmem:[%s213 + $0x118] sm:$0xff] %v284
        %v286 = vld [vmem:[%s212 + $0x120] sm:$0xff]
        %287 = vst [vmem:[%s213 + $0x120] sm:$0xff] %v286
        %v288 = vld [vmem:[%s212 + $0x128] sm:$0xff]
        %289 = vst [vmem:[%s213 + $0x128] sm:$0xff] %v288
        %v290 = vld [vmem:[%s212 + $0x130] sm:$0xff]
        %291 = vst [vmem:[%s213 + $0x130] sm:$0xff] %v290
        %v292 = vld [vmem:[%s212 + $0x138] sm:$0xff]
        %293 = vst [vmem:[%s213 + $0x138] sm:$0xff] %v292
        %v294 = vld [vmem:[%s212 + $0x140] sm:$0xff]
        %295 = vst [vmem:[%s213 + $0x140] sm:$0xff] %v294
        %v296 = vld [vmem:[%s212 + $0x148] sm:$0xff]
        %297 = vst [vmem:[%s213 + $0x148] sm:$0xff] %v296
        %v298 = vld [vmem:[%s212 + $0x150] sm:$0xff]
        %299 = vst [vmem:[%s213 + $0x150] sm:$0xff] %v298
        %v300 = vld [vmem:[%s212 + $0x158] sm:$0xff]
        %301 = vst [vmem:[%s213 + $0x158] sm:$0xff] %v300
        %v302 = vld [vmem:[%s212 + $0x160] sm:$0xff]
        %303 = vst [vmem:[%s213 + $0x160] sm:$0xff] %v302
        %v304 = vld [vmem:[%s212 + $0x168] sm:$0xff]
        %305 = vst [vmem:[%s213 + $0x168] sm:$0xff] %v304
        %v306 = vld [vmem:[%s212 + $0x170] sm:$0xff]
        %307 = vst [vmem:[%s213 + $0x170] sm:$0xff] %v306
        %v308 = vld [vmem:[%s212 + $0x178] sm:$0xff]
        %309 = vst [vmem:[%s213 + $0x178] sm:$0xff] %v308
        %v310 = vld [vmem:[%s212 + $0x180] sm:$0xff]
        %311 = vst [vmem:[%s213 + $0x180] sm:$0xff] %v310
        %v312 = vld [vmem:[%s212 + $0x188] sm:$0xff]
        %313 = vst [vmem:[%s213 + $0x188] sm:$0xff] %v312
        %v314 = vld [vmem:[%s212 + $0x190] sm:$0xff]
        %315 = vst [vmem:[%s213 + $0x190] sm:$0xff] %v314
        %v316 = vld [vmem:[%s212 + $0x198] sm:$0xff]
        %317 = vst [vmem:[%s213 + $0x198] sm:$0xff] %v316
        %v318 = vld [vmem:[%s212 + $0x1a0] sm:$0xff]
        %319 = vst [vmem:[%s213 + $0x1a0] sm:$0xff] %v318
        %v320 = vld [vmem:[%s212 + $0x1a8] sm:$0xff]
        %321 = vst [vmem:[%s213 + $0x1a8] sm:$0xff] %v320
        %v322 = vld [vmem:[%s212 + $0x1b0] sm:$0xff]
        %323 = vst [vmem:[%s213 + $0x1b0] sm:$0xff] %v322
        %v324 = vld [vmem:[%s212 + $0x1b8] sm:$0xff]
        %325 = vst [vmem:[%s213 + $0x1b8] sm:$0xff] %v324
      $region73: #{custom_solver_forward.1} parent=67 // loop_footer
        %s211 = sadd.s32 1, %s207
      $region74: #{custom_solver_forward.1} parent=67 // loop_footer_branch
        %206 = sbr.rel target = $region70
      $region75: #{custom_solver_forward.1} parent=67 // loop_exit
        _
    $region68: #{custom_solver_forward.1} parent=1 // pred_fallthru
      _
    // Predicated region
    $region76: #{custom_solver_forward.1} parent=1 // pred_check
      _
    $region77: #{custom_solver_forward.1} parent=1 // pred_check_branch
      %327 = sbr.rel target = $region79
    $region78: #{custom_solver_forward.1} parent=1 // pred_region
      _
    $region79: #{custom_solver_forward.1} parent=1 // pred_fallthru
      _
    // Predicated region
    $region80: #{custom_solver_forward.1} parent=1 // pred_check
      _
    $region81: #{custom_solver_forward.1} parent=1 // pred_check_branch
      %330 = sbr.rel (0) target = $region83
    $region82: #{custom_solver_forward.1} parent=1 // pred_region
      %331 = vsyncadd %s203, 7168
    $region83: #{custom_solver_forward.1} parent=1 // pred_fallthru
      _
    %s332 = scalar_lea.sflag [#allocation5], 2
    // Predicated region
    $region84: #{custom_solver_forward.1} parent=1 // pred_check
      _
    $region85: #{custom_solver_forward.1} parent=1 // pred_check_branch
      %334 = sbr.rel (0) target = $region87
    $region86: #{custom_solver_forward.1} parent=1 // pred_region
      loop: start=0, step=1, limit=1
      $region88: #{custom_solver_forward.1} parent=86 // loop_pre_header
        _
      $region89: #{custom_solver_forward.1} parent=86 // loop_header
        %s336 = sphi 0, %s340
        %p337 = scmp.ge.s32.totalorder %s336, 1
        %s341 = sphi %s12, %s12
        %s342 = sphi [#allocation4], [#allocation4]
      $region90: #{custom_solver_forward.1} parent=86 // loop_header_branch
        %339 = sbr.rel (%p337) target = $region94
      $region91: #{custom_solver_forward.1} parent=86 // loop_body
        %v343 = vld [vmem:[%s341] sm:$0xff]
        %344 = vst [vmem:[%s342] sm:$0xff] %v343
        %v345 = vld [vmem:[%s341 + $0x8] sm:$0xff]
        %346 = vst [vmem:[%s342 + $0x8] sm:$0xff] %v345
        %v347 = vld [vmem:[%s341 + $0x10] sm:$0xff]
        %348 = vst [vmem:[%s342 + $0x10] sm:$0xff] %v347
        %v349 = vld [vmem:[%s341 + $0x18] sm:$0xff]
        %350 = vst [vmem:[%s342 + $0x18] sm:$0xff] %v349
        %v351 = vld [vmem:[%s341 + $0x20] sm:$0xff]
        %352 = vst [vmem:[%s342 + $0x20] sm:$0xff] %v351
        %v353 = vld [vmem:[%s341 + $0x28] sm:$0xff]
        %354 = vst [vmem:[%s342 + $0x28] sm:$0xff] %v353
        %v355 = vld [vmem:[%s341 + $0x30] sm:$0xff]
        %356 = vst [vmem:[%s342 + $0x30] sm:$0xff] %v355
        %v357 = vld [vmem:[%s341 + $0x38] sm:$0xff]
        %358 = vst [vmem:[%s342 + $0x38] sm:$0xff] %v357
        %v359 = vld [vmem:[%s341 + $0x40] sm:$0xff]
        %360 = vst [vmem:[%s342 + $0x40] sm:$0xff] %v359
        %v361 = vld [vmem:[%s341 + $0x48] sm:$0xff]
        %362 = vst [vmem:[%s342 + $0x48] sm:$0xff] %v361
        %v363 = vld [vmem:[%s341 + $0x50] sm:$0xff]
        %364 = vst [vmem:[%s342 + $0x50] sm:$0xff] %v363
        %v365 = vld [vmem:[%s341 + $0x58] sm:$0xff]
        %366 = vst [vmem:[%s342 + $0x58] sm:$0xff] %v365
        %v367 = vld [vmem:[%s341 + $0x60] sm:$0xff]
        %368 = vst [vmem:[%s342 + $0x60] sm:$0xff] %v367
        %v369 = vld [vmem:[%s341 + $0x68] sm:$0xff]
        %370 = vst [vmem:[%s342 + $0x68] sm:$0xff] %v369
        %v371 = vld [vmem:[%s341 + $0x70] sm:$0xff]
        %372 = vst [vmem:[%s342 + $0x70] sm:$0xff] %v371
        %v373 = vld [vmem:[%s341 + $0x78] sm:$0xff]
        %374 = vst [vmem:[%s342 + $0x78] sm:$0xff] %v373
        %v375 = vld [vmem:[%s341 + $0x80] sm:$0xff]
        %376 = vst [vmem:[%s342 + $0x80] sm:$0xff] %v375
        %v377 = vld [vmem:[%s341 + $0x88] sm:$0xff]
        %378 = vst [vmem:[%s342 + $0x88] sm:$0xff] %v377
        %v379 = vld [vmem:[%s341 + $0x90] sm:$0xff]
        %380 = vst [vmem:[%s342 + $0x90] sm:$0xff] %v379
        %v381 = vld [vmem:[%s341 + $0x98] sm:$0xff]
        %382 = vst [vmem:[%s342 + $0x98] sm:$0xff] %v381
        %v383 = vld [vmem:[%s341 + $0xa0] sm:$0xff]
        %384 = vst [vmem:[%s342 + $0xa0] sm:$0xff] %v383
        %v385 = vld [vmem:[%s341 + $0xa8] sm:$0xff]
        %386 = vst [vmem:[%s342 + $0xa8] sm:$0xff] %v385
        %v387 = vld [vmem:[%s341 + $0xb0] sm:$0xff]
        %388 = vst [vmem:[%s342 + $0xb0] sm:$0xff] %v387
        %v389 = vld [vmem:[%s341 + $0xb8] sm:$0xff]
        %390 = vst [vmem:[%s342 + $0xb8] sm:$0xff] %v389
        %v391 = vld [vmem:[%s341 + $0xc0] sm:$0xff]
        %392 = vst [vmem:[%s342 + $0xc0] sm:$0xff] %v391
        %v393 = vld [vmem:[%s341 + $0xc8] sm:$0xff]
        %394 = vst [vmem:[%s342 + $0xc8] sm:$0xff] %v393
        %v395 = vld [vmem:[%s341 + $0xd0] sm:$0xff]
        %396 = vst [vmem:[%s342 + $0xd0] sm:$0xff] %v395
        %v397 = vld [vmem:[%s341 + $0xd8] sm:$0xff]
        %398 = vst [vmem:[%s342 + $0xd8] sm:$0xff] %v397
        %v399 = vld [vmem:[%s341 + $0xe0] sm:$0xff]
        %400 = vst [vmem:[%s342 + $0xe0] sm:$0xff] %v399
        %v401 = vld [vmem:[%s341 + $0xe8] sm:$0xff]
        %402 = vst [vmem:[%s342 + $0xe8] sm:$0xff] %v401
        %v403 = vld [vmem:[%s341 + $0xf0] sm:$0xff]
        %404 = vst [vmem:[%s342 + $0xf0] sm:$0xff] %v403
        %v405 = vld [vmem:[%s341 + $0xf8] sm:$0xff]
        %406 = vst [vmem:[%s342 + $0xf8] sm:$0xff] %v405
        %v407 = vld [vmem:[%s341 + $0x100] sm:$0xff]
        %408 = vst [vmem:[%s342 + $0x100] sm:$0xff] %v407
        %v409 = vld [vmem:[%s341 + $0x108] sm:$0xff]
        %410 = vst [vmem:[%s342 + $0x108] sm:$0xff] %v409
        %v411 = vld [vmem:[%s341 + $0x110] sm:$0xff]
        %412 = vst [vmem:[%s342 + $0x110] sm:$0xff] %v411
        %v413 = vld [vmem:[%s341 + $0x118] sm:$0xff]
        %414 = vst [vmem:[%s342 + $0x118] sm:$0xff] %v413
        %v415 = vld [vmem:[%s341 + $0x120] sm:$0xff]
        %416 = vst [vmem:[%s342 + $0x120] sm:$0xff] %v415
        %v417 = vld [vmem:[%s341 + $0x128] sm:$0xff]
        %418 = vst [vmem:[%s342 + $0x128] sm:$0xff] %v417
        %v419 = vld [vmem:[%s341 + $0x130] sm:$0xff]
        %420 = vst [vmem:[%s342 + $0x130] sm:$0xff] %v419
        %v421 = vld [vmem:[%s341 + $0x138] sm:$0xff]
        %422 = vst [vmem:[%s342 + $0x138] sm:$0xff] %v421
        %v423 = vld [vmem:[%s341 + $0x140] sm:$0xff]
        %424 = vst [vmem:[%s342 + $0x140] sm:$0xff] %v423
        %v425 = vld [vmem:[%s341 + $0x148] sm:$0xff]
        %426 = vst [vmem:[%s342 + $0x148] sm:$0xff] %v425
        %v427 = vld [vmem:[%s341 + $0x150] sm:$0xff]
        %428 = vst [vmem:[%s342 + $0x150] sm:$0xff] %v427
        %v429 = vld [vmem:[%s341 + $0x158] sm:$0xff]
        %430 = vst [vmem:[%s342 + $0x158] sm:$0xff] %v429
        %v431 = vld [vmem:[%s341 + $0x160] sm:$0xff]
        %432 = vst [vmem:[%s342 + $0x160] sm:$0xff] %v431
        %v433 = vld [vmem:[%s341 + $0x168] sm:$0xff]
        %434 = vst [vmem:[%s342 + $0x168] sm:$0xff] %v433
        %v435 = vld [vmem:[%s341 + $0x170] sm:$0xff]
        %436 = vst [vmem:[%s342 + $0x170] sm:$0xff] %v435
        %v437 = vld [vmem:[%s341 + $0x178] sm:$0xff]
        %438 = vst [vmem:[%s342 + $0x178] sm:$0xff] %v437
        %v439 = vld [vmem:[%s341 + $0x180] sm:$0xff]
        %440 = vst [vmem:[%s342 + $0x180] sm:$0xff] %v439
        %v441 = vld [vmem:[%s341 + $0x188] sm:$0xff]
        %442 = vst [vmem:[%s342 + $0x188] sm:$0xff] %v441
        %v443 = vld [vmem:[%s341 + $0x190] sm:$0xff]
        %444 = vst [vmem:[%s342 + $0x190] sm:$0xff] %v443
        %v445 = vld [vmem:[%s341 + $0x198] sm:$0xff]
        %446 = vst [vmem:[%s342 + $0x198] sm:$0xff] %v445
        %v447 = vld [vmem:[%s341 + $0x1a0] sm:$0xff]
        %448 = vst [vmem:[%s342 + $0x1a0] sm:$0xff] %v447
        %v449 = vld [vmem:[%s341 + $0x1a8] sm:$0xff]
        %450 = vst [vmem:[%s342 + $0x1a8] sm:$0xff] %v449
        %v451 = vld [vmem:[%s341 + $0x1b0] sm:$0xff]
        %452 = vst [vmem:[%s342 + $0x1b0] sm:$0xff] %v451
        %v453 = vld [vmem:[%s341 + $0x1b8] sm:$0xff]
        %454 = vst [vmem:[%s342 + $0x1b8] sm:$0xff] %v453
      $region92: #{custom_solver_forward.1} parent=86 // loop_footer
        %s340 = sadd.s32 1, %s336
      $region93: #{custom_solver_forward.1} parent=86 // loop_footer_branch
        %335 = sbr.rel target = $region89
      $region94: #{custom_solver_forward.1} parent=86 // loop_exit
        _
    $region87: #{custom_solver_forward.1} parent=1 // pred_fallthru
      _
    // Predicated region
    $region95: #{custom_solver_forward.1} parent=1 // pred_check
      _
    $region96: #{custom_solver_forward.1} parent=1 // pred_check_branch
      %456 = sbr.rel target = $region98
    $region97: #{custom_solver_forward.1} parent=1 // pred_region
      _
    $region98: #{custom_solver_forward.1} parent=1 // pred_fallthru
      _
    // Predicated region
    $region99: #{custom_solver_forward.1} parent=1 // pred_check
      _
    $region100: #{custom_solver_forward.1} parent=1 // pred_check_branch
      %459 = sbr.rel (0) target = $region102
    $region101: #{custom_solver_forward.1} parent=1 // pred_region
      %460 = vsyncadd %s332, 7168
    $region102: #{custom_solver_forward.1} parent=1 // pred_fallthru
      _
    %v461 = vld [vmem:[%s0] sm:$0xf]
    %v462 = vld [vmem:[%s0 + $0x4] sm:$0xf]
    %v463 = vld [vmem:[%s0 + $0x8] sm:$0xf]
    %v464 = vld [vmem:[%s0 + $0xc] sm:$0xf]
    %v465 = vld [vmem:[%s0 + $0x10] sm:$0xf]
    %v466 = vld [vmem:[%s0 + $0x14] sm:$0xf]
    %v467 = vld [vmem:[%s0 + $0x18] sm:$0xf]
    %v468 = vld [vmem:[%s0 + $0x1c] sm:$0xf]
    %v469 = vld [vmem:[%s0 + $0x20] sm:$0xf]
    %v470 = vld [vmem:[%s0 + $0x24] sm:$0xf]
    %v471 = vld [vmem:[%s0 + $0x28] sm:$0xf]
    %v472 = vld [vmem:[%s0 + $0x2c] sm:$0xf]
    %v473 = vld [vmem:[%s0 + $0x30] sm:$0xf]
    %v474 = vld [vmem:[%s0 + $0x34] sm:$0xf]
    %v475 = vld [vmem:[%s0 + $0x38] sm:$0xf]
    %v476 = vld [vmem:[%s0 + $0x3c] sm:$0xf]
    %v477 = vld [vmem:[%s1] sm:$0xf]
    %v478 = vld [vmem:[%s1 + $0x4] sm:$0xf]
    %v479 = vld [vmem:[%s1 + $0x8] sm:$0xf]
    %v480 = vld [vmem:[%s1 + $0xc] sm:$0xf]
    %v481 = vld [vmem:[%s1 + $0x10] sm:$0xf]
    %v482 = vld [vmem:[%s1 + $0x14] sm:$0xf]
    %v483 = vld [vmem:[%s1 + $0x18] sm:$0xf]
    %v484 = vld [vmem:[%s1 + $0x1c] sm:$0xf]
    %v485 = vld [vmem:[%s2] sm:$0x1]
    %v487 = vperm.slane %v485, 0
    %v505 = vunpack.c.l.b16 %v461
    %v506 = vunpack.c.l.b16 %v462
    %v507 = vunpack.c.l.b16 %v463
    %v508 = vunpack.c.l.b16 %v464
    %v509 = vunpack.c.l.b16 %v465
    %v510 = vunpack.c.l.b16 %v466
    %v511 = vunpack.c.l.b16 %v467
    %v512 = vunpack.c.l.b16 %v468
    %v513 = vunpack.c.l.b16 %v469
    %v514 = vunpack.c.l.b16 %v470
    %v515 = vunpack.c.l.b16 %v471
    %v516 = vunpack.c.l.b16 %v472
    %v517 = vunpack.c.l.b16 %v473
    %v518 = vunpack.c.l.b16 %v474
    %v519 = vunpack.c.l.b16 %v475
    %v520 = vunpack.c.l.b16 %v476
    %v521 = vpack.c.b16 %v506, %v505
    %v522 = vpack.c.b16 %v508, %v507
    %v523 = vpack.c.b16 %v510, %v509
    %v524 = vpack.c.b16 %v512, %v511
    %v525 = vpack.c.b16 %v514, %v513
    %v526 = vpack.c.b16 %v516, %v515
    %v527 = vpack.c.b16 %v518, %v517
    %v528 = vpack.c.b16 %v520, %v519
    %v537 = vunpack.c.l.b16 %v477
    %v538 = vunpack.c.l.b16 %v478
    %v539 = vunpack.c.l.b16 %v479
    %v540 = vunpack.c.l.b16 %v480
    %v541 = vunpack.c.l.b16 %v481
    %v542 = vunpack.c.l.b16 %v482
    %v543 = vunpack.c.l.b16 %v483
    %v544 = vunpack.c.l.b16 %v484
    %v545 = vpack.c.b16 %v538, %v537
    %v546 = vpack.c.b16 %v540, %v539
    %v547 = vpack.c.b16 %v542, %v541
    %v548 = vpack.c.b16 %v544, %v543
    %vm553 = vcmask 523264
    %v555 = vsel %vm553, %v521, 0
    %v558 = vsel %vm553, %v522, 0
    %v561 = vsel %vm553, %v523, 0
    %v564 = vsel %vm553, %v524, 0
    %v567 = vsel %vm553, %v525, 0
    %v570 = vsel %vm553, %v526, 0
    %v573 = vsel %vm553, %v527, 0
    %v576 = vsel %vm553, %v528, 0
    %578 = vmatpush.bf16.msra.mxu0 0
    %579 = vmatpush.bf16.msra.mxu0 0
    %580 = vmatpush.bf16.msra.mxu0 0
    %581 = vmatpush.bf16.msra.mxu0 0
    %582 = vmatpush.bf16.msra.mxu0 %v548
    %583 = vmatpush.bf16.msra.mxu0 %v547
    %584 = vmatpush.bf16.msra.mxu0 %v546
    %585 = vmatpush.bf16.msra.mxu0 %v545
    %586 = vmatmul.bf16.gmra.mxu0 %v555
    %v587 = vpop.f32.mrf.mxu0
    %v588 = vadd.f32 %v487, %v587
    %v589 = vpop.f32.mrf.mxu0
    %v590 = vadd.f32 %v487, %v589
    %591 = vmatmul.bf16.gmra.mxu0 %v558
    %v592 = vpop.f32.mrf.mxu0
    %v593 = vadd.f32 %v487, %v592
    %v594 = vpop.f32.mrf.mxu0
    %v595 = vadd.f32 %v487, %v594
    %596 = vmatmul.bf16.gmra.mxu0 %v561
    %v597 = vpop.f32.mrf.mxu0
    %v598 = vadd.f32 %v487, %v597
    %v599 = vpop.f32.mrf.mxu0
    %v600 = vadd.f32 %v487, %v599
    %601 = vmatmul.bf16.gmra.mxu0 %v564
    %v602 = vpop.f32.mrf.mxu0
    %v603 = vadd.f32 %v487, %v602
    %v604 = vpop.f32.mrf.mxu0
    %v605 = vadd.f32 %v487, %v604
    %606 = vmatmul.bf16.gmra.mxu0 %v567
    %v607 = vpop.f32.mrf.mxu0
    %v608 = vadd.f32 %v487, %v607
    %v609 = vpop.f32.mrf.mxu0
    %v610 = vadd.f32 %v487, %v609
    %611 = vmatmul.bf16.gmra.mxu0 %v570
    %v612 = vpop.f32.mrf.mxu0
    %v613 = vadd.f32 %v487, %v612
    %v614 = vpop.f32.mrf.mxu0
    %v615 = vadd.f32 %v487, %v614
    %616 = vmatmul.bf16.gmra.mxu0 %v573
    %v617 = vpop.f32.mrf.mxu0
    %v618 = vadd.f32 %v487, %v617
    %v619 = vpop.f32.mrf.mxu0
    %v620 = vadd.f32 %v487, %v619
    %621 = vmatmul.bf16.gmra.mxu0 %v576
    %v622 = vpop.f32.mrf.mxu0
    %v623 = vadd.f32 %v487, %v622
    %v624 = vpop.f32.mrf.mxu0
    %v625 = vadd.f32 %v487, %v624
    %626 = vdwg.mxu0
    %v627 = vmax.f32 %v588, 0.0
    %v628 = vmax.f32 %v590, 0.0
    %v629 = vmax.f32 %v593, 0.0
    %v630 = vmax.f32 %v595, 0.0
    %v631 = vmax.f32 %v598, 0.0
    %v632 = vmax.f32 %v600, 0.0
    %v633 = vmax.f32 %v603, 0.0
    %v634 = vmax.f32 %v605, 0.0
    %v635 = vmax.f32 %v608, 0.0
    %v636 = vmax.f32 %v610, 0.0
    %v637 = vmax.f32 %v613, 0.0
    %v638 = vmax.f32 %v615, 0.0
    %v639 = vmax.f32 %v618, 0.0
    %v640 = vmax.f32 %v620, 0.0
    %v641 = vmax.f32 %v623, 0.0
    %v642 = vmax.f32 %v625, 0.0
    %v643 = vpack.c.bf16 %v628, %v627
    %v644 = vpack.c.bf16 %v630, %v629
    %v645 = vpack.c.bf16 %v632, %v631
    %v646 = vpack.c.bf16 %v634, %v633
    %v647 = vpack.c.bf16 %v636, %v635
    %v648 = vpack.c.bf16 %v638, %v637
    %v649 = vpack.c.bf16 %v640, %v639
    %v650 = vpack.c.bf16 %v642, %v641
    %v651 = vld [vmem:[%s3] sm:$0xf]
    %v652 = vld [vmem:[%s3 + $0x4] sm:$0xf]
    %v653 = vld [vmem:[%s3 + $0x8] sm:$0x1]
    %v657 = vunpack.c.l.b16 %v651
    %v658 = vunpack.c.l.b16 %v652
    %v659 = vunpack.c.l.b16 %v653
    %v660 = vpack.c.b16 %v658, %v657
    %v661 = vpack.c.b16 %v659, %v659
    %664 = vmatpush.bf16.msra.mxu0 %v650
    %665 = vmatpush.bf16.msra.mxu0 %v649
    %666 = vmatpush.bf16.msra.mxu0 %v648
    %667 = vmatpush.bf16.msra.mxu0 %v647
    %668 = vmatpush.bf16.msra.mxu0 %v646
    %669 = vmatpush.bf16.msra.mxu0 %v645
    %670 = vmatpush.bf16.msra.mxu0 %v644
    %671 = vmatpush.bf16.msra.mxu0 %v643
    %672 = vmatmul.bf16.gmra.mxu0 %v660
    %v673 = vpop.f32.mrf.mxu0
    %v674 = vadd.f32 0.0, %v673
    %v675 = vpop.f32.mrf.mxu0
    %v676 = vadd.f32 0.0, %v675
    %677 = vmatmul.bf16.gmra.mxu0 %v661
    %v678 = vpop.f32.mrf.mxu0
    %v679 = vadd.f32 0.0, %v678
    %v680 = vpop.f32.mrf.mxu0
    %681 = vdwg.mxu0
    %v682 = vpack.c.bf16 %v674, %v674
    %v683 = vpack.c.bf16 %v676, %v676
    %v684 = vpack.c.bf16 %v679, %v679
    %v685 = vld [vmem:[%s3 + $0x8] sm:$0xe]
    %v686 = vld [vmem:[%s3 + $0xc] sm:$0xf]
    %v687 = vld [vmem:[%s3 + $0x10] sm:$0x3]
    %v691 = vunpack.c.l.b16 %v685
    %v692 = vunpack.c.l.b16 %v686
    %v693 = vunpack.c.l.b16 %v687
    %v694 = vpack.c.b16 %v692, %v691
    %v695 = vpack.c.b16 %v693, %v693
    %vm696 = vcmask 1046528
    %v697 = vrot.slane %v694, 1
    %v698 = vrot.slane %v695, 1
    %v699 = vsel %vm696, %v697, %v698
    %702 = vmatpush.bf16.msra.mxu0 %v650
    %703 = vmatpush.bf16.msra.mxu0 %v649
    %704 = vmatpush.bf16.msra.mxu0 %v648
    %705 = vmatpush.bf16.msra.mxu0 %v647
    %706 = vmatpush.bf16.msra.mxu0 %v646
    %707 = vmatpush.bf16.msra.mxu0 %v645
    %708 = vmatpush.bf16.msra.mxu0 %v644
    %709 = vmatpush.bf16.msra.mxu0 %v643
    %710 = vmatmul.bf16.gmra.mxu0 %v699
    %v711 = vpop.f32.mrf.mxu0
    %v712 = vadd.f32 0.0, %v711
    %v713 = vpop.f32.mrf.mxu0
    %v714 = vadd.f32 0.0, %v713
    %715 = vmatmul.bf16.gmra.mxu0 %v698
    %v716 = vpop.f32.mrf.mxu0
    %v717 = vadd.f32 0.0, %v716
    %v718 = vpop.f32.mrf.mxu0
    %719 = vdwg.mxu0
    %v720 = vpack.c.bf16 %v712, %v712
    %v721 = vpack.c.bf16 %v714, %v714
    %v722 = vpack.c.bf16 %v717, %v717
    %v723 = vld [vmem:[%s3 + $0x10] sm:$0xc]
    %v724 = vld [vmem:[%s3 + $0x14] sm:$0xf]
    %v725 = vld [vmem:[%s3 + $0x18] sm:$0x7]
    %v729 = vunpack.c.l.b16 %v723
    %v730 = vunpack.c.l.b16 %v724
    %v731 = vunpack.c.l.b16 %v725
    %v732 = vpack.c.b16 %v730, %v729
    %v733 = vpack.c.b16 %v731, %v731
    %vm734 = vcmask 1045504
    %v735 = vrot.slane %v732, 2
    %v736 = vrot.slane %v733, 2
    %v737 = vsel %vm734, %v735, %v736
    %740 = vmatpush.bf16.msra.mxu0 %v650
    %741 = vmatpush.bf16.msra.mxu0 %v649
    %742 = vmatpush.bf16.msra.mxu0 %v648
    %743 = vmatpush.bf16.msra.mxu0 %v647
    %744 = vmatpush.bf16.msra.mxu0 %v646
    %745 = vmatpush.bf16.msra.mxu0 %v645
    %746 = vmatpush.bf16.msra.mxu0 %v644
    %747 = vmatpush.bf16.msra.mxu0 %v643
    %748 = vmatmul.bf16.gmra.mxu0 %v737
    %v749 = vpop.f32.mrf.mxu0
    %v750 = vadd.f32 0.0, %v749
    %v751 = vpop.f32.mrf.mxu0
    %v752 = vadd.f32 0.0, %v751
    %753 = vmatmul.bf16.gmra.mxu0 %v736
    %v754 = vpop.f32.mrf.mxu0
    %v755 = vadd.f32 0.0, %v754
    %v756 = vpop.f32.mrf.mxu0
    %757 = vdwg.mxu0
    %v758 = vpack.c.bf16 %v750, %v750
    %v759 = vpack.c.bf16 %v752, %v752
    %v760 = vpack.c.bf16 %v755, %v755
    %v761 = vld [vmem:[%s3 + $0x18] sm:$0x8]
    %v762 = vld [vmem:[%s3 + $0x1c] sm:$0xf]
    %v763 = vld [vmem:[%s3 + $0x20] sm:$0xf]
    %v767 = vunpack.c.l.b16 %v761
    %v768 = vunpack.c.l.b16 %v762
    %v769 = vunpack.c.l.b16 %v763
    %v770 = vpack.c.b16 %v768, %v767
    %v771 = vpack.c.b16 %v769, %v769
    %vm772 = vcmask 1044480
    %v773 = vrot.slane %v770, 3
    %v774 = vrot.slane %v771, 3
    %v775 = vsel %vm772, %v773, %v774
    %778 = vmatpush.bf16.msra.mxu0 %v650
    %779 = vmatpush.bf16.msra.mxu0 %v649
    %780 = vmatpush.bf16.msra.mxu0 %v648
    %781 = vmatpush.bf16.msra.mxu0 %v647
    %782 = vmatpush.bf16.msra.mxu0 %v646
    %783 = vmatpush.bf16.msra.mxu0 %v645
    %784 = vmatpush.bf16.msra.mxu0 %v644
    %785 = vmatpush.bf16.msra.mxu0 %v643
    %786 = vmatmul.bf16.gmra.mxu0 %v775
    %v787 = vpop.f32.mrf.mxu0
    %v788 = vadd.f32 0.0, %v787
    %v789 = vpop.f32.mrf.mxu0
    %v790 = vadd.f32 0.0, %v789
    %791 = vmatmul.bf16.gmra.mxu0 %v774
    %v792 = vpop.f32.mrf.mxu0
    %v793 = vadd.f32 0.0, %v792
    %v794 = vpop.f32.mrf.mxu0
    %795 = vdwg.mxu0
    %v796 = vpack.c.bf16 %v788, %v788
    %v797 = vpack.c.bf16 %v790, %v790
    %v798 = vpack.c.bf16 %v793, %v793
    %v799 = vld [vmem:[%s3 + $0x24] sm:$0xf]
    %v800 = vld [vmem:[%s3 + $0x28] sm:$0xf]
    %v801 = vld [vmem:[%s3 + $0x2c] sm:$0x1]
    %v805 = vunpack.c.l.b16 %v799
    %v806 = vunpack.c.l.b16 %v800
    %v807 = vunpack.c.l.b16 %v801
    %v808 = vpack.c.b16 %v806, %v805
    %v809 = vpack.c.b16 %v807, %v807
    %812 = vmatpush.bf16.msra.mxu0 %v650
    %813 = vmatpush.bf16.msra.mxu0 %v649
    %814 = vmatpush.bf16.msra.mxu0 %v648
    %815 = vmatpush.bf16.msra.mxu0 %v647
    %816 = vmatpush.bf16.msra.mxu0 %v646
    %817 = vmatpush.bf16.msra.mxu0 %v645
    %818 = vmatpush.bf16.msra.mxu0 %v644
    %819 = vmatpush.bf16.msra.mxu0 %v643
    %820 = vmatmul.bf16.gmra.mxu0 %v808
    %v821 = vpop.f32.mrf.mxu0
    %v822 = vadd.f32 0.0, %v821
    %v823 = vpop.f32.mrf.mxu0
    %v824 = vadd.f32 0.0, %v823
    %825 = vmatmul.bf16.gmra.mxu0 %v809
    %v826 = vpop.f32.mrf.mxu0
    %v827 = vadd.f32 0.0, %v826
    %v828 = vpop.f32.mrf.mxu0
    %829 = vdwg.mxu0
    %v830 = vpack.c.bf16 %v822, %v822
    %v831 = vpack.c.bf16 %v824, %v824
    %v832 = vpack.c.bf16 %v827, %v827
    %v833 = vld [vmem:[%s3 + $0x2c] sm:$0xe]
    %v834 = vld [vmem:[%s3 + $0x30] sm:$0xf]
    %v835 = vld [vmem:[%s3 + $0x34] sm:$0x3]
    %v839 = vunpack.c.l.b16 %v833
    %v840 = vunpack.c.l.b16 %v834
    %v841 = vunpack.c.l.b16 %v835
    %v842 = vpack.c.b16 %v840, %v839
    %v843 = vpack.c.b16 %v841, %v841
    %v844 = vrot.slane %v842, 1
    %v845 = vrot.slane %v843, 1
    %v846 = vsel %vm696, %v844, %v845
    %849 = vmatpush.bf16.msra.mxu0 %v650
    %850 = vmatpush.bf16.msra.mxu0 %v649
    %851 = vmatpush.bf16.msra.mxu0 %v648
    %852 = vmatpush.bf16.msra.mxu0 %v647
    %853 = vmatpush.bf16.msra.mxu0 %v646
    %854 = vmatpush.bf16.msra.mxu0 %v645
    %855 = vmatpush.bf16.msra.mxu0 %v644
    %856 = vmatpush.bf16.msra.mxu0 %v643
    %857 = vmatmul.bf16.gmra.mxu0 %v846
    %v858 = vpop.f32.mrf.mxu0
    %v859 = vadd.f32 0.0, %v858
    %v860 = vpop.f32.mrf.mxu0
    %v861 = vadd.f32 0.0, %v860
    %862 = vmatmul.bf16.gmra.mxu0 %v845
    %v863 = vpop.f32.mrf.mxu0
    %v864 = vadd.f32 0.0, %v863
    %v865 = vpop.f32.mrf.mxu0
    %866 = vdwg.mxu0
    %v867 = vpack.c.bf16 %v859, %v859
    %v868 = vpack.c.bf16 %v861, %v861
    %v869 = vpack.c.bf16 %v864, %v864
    %v870 = vld [vmem:[%s3 + $0x34] sm:$0xc]
    %v871 = vld [vmem:[%s3 + $0x38] sm:$0xf]
    %v872 = vld [vmem:[%s3 + $0x3c] sm:$0x7]
    %v876 = vunpack.c.l.b16 %v870
    %v877 = vunpack.c.l.b16 %v871
    %v878 = vunpack.c.l.b16 %v872
    %v879 = vpack.c.b16 %v877, %v876
    %v880 = vpack.c.b16 %v878, %v878
    %v881 = vrot.slane %v879, 2
    %v882 = vrot.slane %v880, 2
    %v883 = vsel %vm734, %v881, %v882
    %886 = vmatpush.bf16.msra.mxu0 %v650
    %887 = vmatpush.bf16.msra.mxu0 %v649
    %888 = vmatpush.bf16.msra.mxu0 %v648
    %889 = vmatpush.bf16.msra.mxu0 %v647
    %890 = vmatpush.bf16.msra.mxu0 %v646
    %891 = vmatpush.bf16.msra.mxu0 %v645
    %892 = vmatpush.bf16.msra.mxu0 %v644
    %893 = vmatpush.bf16.msra.mxu0 %v643
    %894 = vmatmul.bf16.gmra.mxu0 %v883
    %v895 = vpop.f32.mrf.mxu0
    %v896 = vadd.f32 0.0, %v895
    %v897 = vpop.f32.mrf.mxu0
    %v898 = vadd.f32 0.0, %v897
    %899 = vmatmul.bf16.gmra.mxu0 %v882
    %v900 = vpop.f32.mrf.mxu0
    %v901 = vadd.f32 0.0, %v900
    %v902 = vpop.f32.mrf.mxu0
    %903 = vdwg.mxu0
    %v904 = vpack.c.bf16 %v896, %v896
    %v905 = vpack.c.bf16 %v898, %v898
    %v906 = vpack.c.bf16 %v901, %v901
    %v907 = vld [vmem:[%s3 + $0x3c] sm:$0x8]
    %v908 = vld [vmem:[%s3 + $0x40] sm:$0xf]
    %v909 = vld [vmem:[%s3 + $0x44] sm:$0xf]
    %v913 = vunpack.c.l.b16 %v907
    %v914 = vunpack.c.l.b16 %v908
    %v915 = vunpack.c.l.b16 %v909
    %v916 = vpack.c.b16 %v914, %v913
    %v917 = vpack.c.b16 %v915, %v915
    %v918 = vrot.slane %v916, 3
    %v919 = vrot.slane %v917, 3
    %v920 = vsel %vm772, %v918, %v919
    %923 = vmatpush.bf16.msra.mxu0 %v650
    %924 = vmatpush.bf16.msra.mxu0 %v649
    %925 = vmatpush.bf16.msra.mxu0 %v648
    %926 = vmatpush.bf16.msra.mxu0 %v647
    %927 = vmatpush.bf16.msra.mxu0 %v646
    %928 = vmatpush.bf16.msra.mxu0 %v645
    %929 = vmatpush.bf16.msra.mxu0 %v644
    %930 = vmatpush.bf16.msra.mxu0 %v643
    %931 = vmatmul.bf16.gmra.mxu0 %v920
    %v932 = vpop.f32.mrf.mxu0
    %v933 = vadd.f32 0.0, %v932
    %v934 = vpop.f32.mrf.mxu0
    %v935 = vadd.f32 0.0, %v934
    %936 = vmatmul.bf16.gmra.mxu0 %v919
    %v937 = vpop.f32.mrf.mxu0
    %v938 = vadd.f32 0.0, %v937
    %v939 = vpop.f32.mrf.mxu0
    %940 = vdwg.mxu0
    %v941 = vpack.c.bf16 %v933, %v933
    %v942 = vpack.c.bf16 %v935, %v935
    %v943 = vpack.c.bf16 %v938, %v938
    %v944 = vld [vmem:[%s3 + $0x48] sm:$0xf]
    %v945 = vld [vmem:[%s3 + $0x4c] sm:$0xf]
    %v946 = vld [vmem:[%s3 + $0x50] sm:$0x1]
    %v950 = vunpack.c.l.b16 %v944
    %v951 = vunpack.c.l.b16 %v945
    %v952 = vunpack.c.l.b16 %v946
    %v953 = vpack.c.b16 %v951, %v950
    %v954 = vpack.c.b16 %v952, %v952
    %957 = vmatpush.bf16.msra.mxu0 %v650
    %958 = vmatpush.bf16.msra.mxu0 %v649
    %959 = vmatpush.bf16.msra.mxu0 %v648
    %960 = vmatpush.bf16.msra.mxu0 %v647
    %961 = vmatpush.bf16.msra.mxu0 %v646
    %962 = vmatpush.bf16.msra.mxu0 %v645
    %963 = vmatpush.bf16.msra.mxu0 %v644
    %964 = vmatpush.bf16.msra.mxu0 %v643
    %965 = vmatmul.bf16.gmra.mxu0 %v953
    %v966 = vpop.f32.mrf.mxu0
    %v967 = vadd.f32 0.0, %v966
    %v968 = vpop.f32.mrf.mxu0
    %v969 = vadd.f32 0.0, %v968
    %970 = vmatmul.bf16.gmra.mxu0 %v954
    %v971 = vpop.f32.mrf.mxu0
    %v972 = vadd.f32 0.0, %v971
    %v973 = vpop.f32.mrf.mxu0
    %974 = vdwg.mxu0
    %v975 = vpack.c.bf16 %v967, %v967
    %v976 = vpack.c.bf16 %v969, %v969
    %v977 = vpack.c.bf16 %v972, %v972
    %v978 = vld [vmem:[%s3 + $0x50] sm:$0xe]
    %v979 = vld [vmem:[%s3 + $0x54] sm:$0xf]
    %v980 = vld [vmem:[%s3 + $0x58] sm:$0x3]
    %v984 = vunpack.c.l.b16 %v978
    %v985 = vunpack.c.l.b16 %v979
    %v986 = vunpack.c.l.b16 %v980
    %v987 = vpack.c.b16 %v985, %v984
    %v988 = vpack.c.b16 %v986, %v986
    %v989 = vrot.slane %v987, 1
    %v990 = vrot.slane %v988, 1
    %v991 = vsel %vm696, %v989, %v990
    %994 = vmatpush.bf16.msra.mxu0 %v650
    %995 = vmatpush.bf16.msra.mxu0 %v649
    %996 = vmatpush.bf16.msra.mxu0 %v648
    %997 = vmatpush.bf16.msra.mxu0 %v647
    %998 = vmatpush.bf16.msra.mxu0 %v646
    %999 = vmatpush.bf16.msra.mxu0 %v645
    %1000 = vmatpush.bf16.msra.mxu0 %v644
    %1001 = vmatpush.bf16.msra.mxu0 %v643
    %1002 = vmatmul.bf16.gmra.mxu0 %v991
    %v1003 = vpop.f32.mrf.mxu0
    %v1004 = vadd.f32 0.0, %v1003
    %v1005 = vpop.f32.mrf.mxu0
    %v1006 = vadd.f32 0.0, %v1005
    %1007 = vmatmul.bf16.gmra.mxu0 %v990
    %v1008 = vpop.f32.mrf.mxu0
    %v1009 = vadd.f32 0.0, %v1008
    %v1010 = vpop.f32.mrf.mxu0
    %1011 = vdwg.mxu0
    %v1012 = vpack.c.bf16 %v1004, %v1004
    %v1013 = vpack.c.bf16 %v1006, %v1006
    %v1014 = vpack.c.bf16 %v1009, %v1009
    %v1015 = vld [vmem:[%s3 + $0x58] sm:$0xc]
    %v1016 = vld [vmem:[%s3 + $0x5c] sm:$0xf]
    %v1017 = vld [vmem:[%s3 + $0x60] sm:$0x7]
    %v1021 = vunpack.c.l.b16 %v1015
    %v1022 = vunpack.c.l.b16 %v1016
    %v1023 = vunpack.c.l.b16 %v1017
    %v1024 = vpack.c.b16 %v1022, %v1021
    %v1025 = vpack.c.b16 %v1023, %v1023
    %v1026 = vrot.slane %v1024, 2
    %v1027 = vrot.slane %v1025, 2
    %v1028 = vsel %vm734, %v1026, %v1027
    %1031 = vmatpush.bf16.msra.mxu0 %v650
    %1032 = vmatpush.bf16.msra.mxu0 %v649
    %1033 = vmatpush.bf16.msra.mxu0 %v648
    %1034 = vmatpush.bf16.msra.mxu0 %v647
    %1035 = vmatpush.bf16.msra.mxu0 %v646
    %1036 = vmatpush.bf16.msra.mxu0 %v645
    %1037 = vmatpush.bf16.msra.mxu0 %v644
    %1038 = vmatpush.bf16.msra.mxu0 %v643
    %1039 = vmatmul.bf16.gmra.mxu0 %v1028
    %v1040 = vpop.f32.mrf.mxu0
    %v1041 = vadd.f32 0.0, %v1040
    %v1042 = vpop.f32.mrf.mxu0
    %v1043 = vadd.f32 0.0, %v1042
    %1044 = vmatmul.bf16.gmra.mxu0 %v1027
    %v1045 = vpop.f32.mrf.mxu0
    %v1046 = vadd.f32 0.0, %v1045
    %v1047 = vpop.f32.mrf.mxu0
    %1048 = vdwg.mxu0
    %v1049 = vpack.c.bf16 %v1041, %v1041
    %v1050 = vpack.c.bf16 %v1043, %v1043
    %v1051 = vpack.c.bf16 %v1046, %v1046
    %v1052 = vld [vmem:[%s3 + $0x60] sm:$0x8]
    %v1053 = vld [vmem:[%s3 + $0x64] sm:$0xf]
    %v1054 = vld [vmem:[%s3 + $0x68] sm:$0xf]
    %v1058 = vunpack.c.l.b16 %v1052
    %v1059 = vunpack.c.l.b16 %v1053
    %v1060 = vunpack.c.l.b16 %v1054
    %v1061 = vpack.c.b16 %v1059, %v1058
    %v1062 = vpack.c.b16 %v1060, %v1060
    %v1063 = vrot.slane %v1061, 3
    %v1064 = vrot.slane %v1062, 3
    %v1065 = vsel %vm772, %v1063, %v1064
    %1068 = vmatpush.bf16.msra.mxu0 %v650
    %1069 = vmatpush.bf16.msra.mxu0 %v649
    %1070 = vmatpush.bf16.msra.mxu0 %v648
    %1071 = vmatpush.bf16.msra.mxu0 %v647
    %1072 = vmatpush.bf16.msra.mxu0 %v646
    %1073 = vmatpush.bf16.msra.mxu0 %v645
    %1074 = vmatpush.bf16.msra.mxu0 %v644
    %1075 = vmatpush.bf16.msra.mxu0 %v643
    %1076 = vmatmul.bf16.gmra.mxu0 %v1065
    %v1077 = vpop.f32.mrf.mxu0
    %v1078 = vadd.f32 0.0, %v1077
    %v1079 = vpop.f32.mrf.mxu0
    %v1080 = vadd.f32 0.0, %v1079
    %1081 = vmatmul.bf16.gmra.mxu0 %v1064
    %v1082 = vpop.f32.mrf.mxu0
    %v1083 = vadd.f32 0.0, %v1082
    %v1084 = vpop.f32.mrf.mxu0
    %1085 = vdwg.mxu0
    %v1086 = vpack.c.bf16 %v1078, %v1078
    %v1087 = vpack.c.bf16 %v1080, %v1080
    %v1088 = vpack.c.bf16 %v1083, %v1083
    %v1089 = vld [vmem:[%s3 + $0x6c] sm:$0xf]
    %v1090 = vld [vmem:[%s3 + $0x70] sm:$0xf]
    %v1091 = vld [vmem:[%s3 + $0x74] sm:$0x1]
    %v1095 = vunpack.c.l.b16 %v1089
    %v1096 = vunpack.c.l.b16 %v1090
    %v1097 = vunpack.c.l.b16 %v1091
    %v1098 = vpack.c.b16 %v1096, %v1095
    %v1099 = vpack.c.b16 %v1097, %v1097
    %1102 = vmatpush.bf16.msra.mxu0 %v650
    %1103 = vmatpush.bf16.msra.mxu0 %v649
    %1104 = vmatpush.bf16.msra.mxu0 %v648
    %1105 = vmatpush.bf16.msra.mxu0 %v647
    %1106 = vmatpush.bf16.msra.mxu0 %v646
    %1107 = vmatpush.bf16.msra.mxu0 %v645
    %1108 = vmatpush.bf16.msra.mxu0 %v644
    %1109 = vmatpush.bf16.msra.mxu0 %v643
    %1110 = vmatmul.bf16.gmra.mxu0 %v1098
    %v1111 = vpop.f32.mrf.mxu0
    %v1112 = vadd.f32 0.0, %v1111
    %v1113 = vpop.f32.mrf.mxu0
    %v1114 = vadd.f32 0.0, %v1113
    %1115 = vmatmul.bf16.gmra.mxu0 %v1099
    %v1116 = vpop.f32.mrf.mxu0
    %v1117 = vadd.f32 0.0, %v1116
    %v1118 = vpop.f32.mrf.mxu0
    %1119 = vdwg.mxu0
    %v1120 = vpack.c.bf16 %v1112, %v1112
    %v1121 = vpack.c.bf16 %v1114, %v1114
    %v1122 = vpack.c.bf16 %v1117, %v1117
    %v1123 = vld [vmem:[%s3 + $0x74] sm:$0xe]
    %v1124 = vld [vmem:[%s3 + $0x78] sm:$0xf]
    %v1125 = vld [vmem:[%s3 + $0x7c] sm:$0x3]
    %v1129 = vunpack.c.l.b16 %v1123
    %v1130 = vunpack.c.l.b16 %v1124
    %v1131 = vunpack.c.l.b16 %v1125
    %v1132 = vpack.c.b16 %v1130, %v1129
    %v1133 = vpack.c.b16 %v1131, %v1131
    %v1134 = vrot.slane %v1132, 1
    %v1135 = vrot.slane %v1133, 1
    %v1136 = vsel %vm696, %v1134, %v1135
    %1139 = vmatpush.bf16.msra.mxu0 %v650
    %1140 = vmatpush.bf16.msra.mxu0 %v649
    %1141 = vmatpush.bf16.msra.mxu0 %v648
    %1142 = vmatpush.bf16.msra.mxu0 %v647
    %1143 = vmatpush.bf16.msra.mxu0 %v646
    %1144 = vmatpush.bf16.msra.mxu0 %v645
    %1145 = vmatpush.bf16.msra.mxu0 %v644
    %1146 = vmatpush.bf16.msra.mxu0 %v643
    %1147 = vmatmul.bf16.gmra.mxu0 %v1136
    %v1148 = vpop.f32.mrf.mxu0
    %v1149 = vadd.f32 0.0, %v1148
    %v1150 = vpop.f32.mrf.mxu0
    %v1151 = vadd.f32 0.0, %v1150
    %1152 = vmatmul.bf16.gmra.mxu0 %v1135
    %v1153 = vpop.f32.mrf.mxu0
    %v1154 = vadd.f32 0.0, %v1153
    %v1155 = vpop.f32.mrf.mxu0
    %1156 = vdwg.mxu0
    %v1157 = vpack.c.bf16 %v1149, %v1149
    %v1158 = vpack.c.bf16 %v1151, %v1151
    %v1159 = vpack.c.bf16 %v1154, %v1154
    %v1160 = vld [vmem:[%s3 + $0x7c] sm:$0xc]
    %v1161 = vld [vmem:[%s3 + $0x80] sm:$0xf]
    %v1162 = vld [vmem:[%s3 + $0x84] sm:$0x7]
    %v1166 = vunpack.c.l.b16 %v1160
    %v1167 = vunpack.c.l.b16 %v1161
    %v1168 = vunpack.c.l.b16 %v1162
    %v1169 = vpack.c.b16 %v1167, %v1166
    %v1170 = vpack.c.b16 %v1168, %v1168
    %v1171 = vrot.slane %v1169, 2
    %v1172 = vrot.slane %v1170, 2
    %v1173 = vsel %vm734, %v1171, %v1172
    %1176 = vmatpush.bf16.msra.mxu0 %v650
    %1177 = vmatpush.bf16.msra.mxu0 %v649
    %1178 = vmatpush.bf16.msra.mxu0 %v648
    %1179 = vmatpush.bf16.msra.mxu0 %v647
    %1180 = vmatpush.bf16.msra.mxu0 %v646
    %1181 = vmatpush.bf16.msra.mxu0 %v645
    %1182 = vmatpush.bf16.msra.mxu0 %v644
    %1183 = vmatpush.bf16.msra.mxu0 %v643
    %1184 = vmatmul.bf16.gmra.mxu0 %v1173
    %v1185 = vpop.f32.mrf.mxu0
    %v1186 = vadd.f32 0.0, %v1185
    %v1187 = vpop.f32.mrf.mxu0
    %v1188 = vadd.f32 0.0, %v1187
    %1189 = vmatmul.bf16.gmra.mxu0 %v1172
    %v1190 = vpop.f32.mrf.mxu0
    %v1191 = vadd.f32 0.0, %v1190
    %v1192 = vpop.f32.mrf.mxu0
    %1193 = vdwg.mxu0
    %v1194 = vpack.c.bf16 %v1186, %v1186
    %v1195 = vpack.c.bf16 %v1188, %v1188
    %v1196 = vpack.c.bf16 %v1191, %v1191
    %v1197 = vld [vmem:[%s3 + $0x84] sm:$0x8]
    %v1198 = vld [vmem:[%s3 + $0x88] sm:$0xf]
    %v1199 = vld [vmem:[%s3 + $0x8c] sm:$0xf]
    %v1203 = vunpack.c.l.b16 %v1197
    %v1204 = vunpack.c.l.b16 %v1198
    %v1205 = vunpack.c.l.b16 %v1199
    %v1206 = vpack.c.b16 %v1204, %v1203
    %v1207 = vpack.c.b16 %v1205, %v1205
    %v1208 = vrot.slane %v1206, 3
    %v1209 = vrot.slane %v1207, 3
    %v1210 = vsel %vm772, %v1208, %v1209
    %1213 = vmatpush.bf16.msra.mxu0 %v650
    %1214 = vmatpush.bf16.msra.mxu0 %v649
    %1215 = vmatpush.bf16.msra.mxu0 %v648
    %1216 = vmatpush.bf16.msra.mxu0 %v647
    %1217 = vmatpush.bf16.msra.mxu0 %v646
    %1218 = vmatpush.bf16.msra.mxu0 %v645
    %1219 = vmatpush.bf16.msra.mxu0 %v644
    %1220 = vmatpush.bf16.msra.mxu0 %v643
    %1221 = vmatmul.bf16.gmra.mxu0 %v1210
    %v1222 = vpop.f32.mrf.mxu0
    %v1223 = vadd.f32 0.0, %v1222
    %v1224 = vpop.f32.mrf.mxu0
    %v1225 = vadd.f32 0.0, %v1224
    %1226 = vmatmul.bf16.gmra.mxu0 %v1209
    %v1227 = vpop.f32.mrf.mxu0
    %v1228 = vadd.f32 0.0, %v1227
    %v1229 = vpop.f32.mrf.mxu0
    %1230 = vdwg.mxu0
    %v1231 = vpack.c.bf16 %v1223, %v1223
    %v1232 = vpack.c.bf16 %v1225, %v1225
    %v1233 = vpack.c.bf16 %v1228, %v1228
    %v1237 = vunpack.c.l.b16 %v682
    %v1238 = vunpack.c.l.b16 %v683
    %v1239 = vunpack.c.l.b16 %v684
    %v1240 = vpack.c.b16 %v1238, %v1237
    %v1241 = vpack.c.b16 %v1239, %v1239
    %v1247 = vunpack.c.l.b16 %v720
    %v1248 = vunpack.c.l.b16 %v721
    %v1249 = vunpack.c.l.b16 %v722
    %v1250 = vpack.c.b16 %v1248, %v1247
    %v1251 = vpack.c.b16 %v1249, %v1249
    %v1257 = vunpack.c.l.b16 %v758
    %v1258 = vunpack.c.l.b16 %v759
    %v1259 = vunpack.c.l.b16 %v760
    %v1260 = vpack.c.b16 %v1258, %v1257
    %v1261 = vpack.c.b16 %v1259, %v1259
    %v1267 = vunpack.c.l.b16 %v796
    %v1268 = vunpack.c.l.b16 %v797
    %v1269 = vunpack.c.l.b16 %v798
    %v1270 = vpack.c.b16 %v1268, %v1267
    %v1271 = vpack.c.b16 %v1269, %v1269
    %v1277 = vunpack.c.l.b16 %v830
    %v1278 = vunpack.c.l.b16 %v831
    %v1279 = vunpack.c.l.b16 %v832
    %v1280 = vpack.c.b16 %v1278, %v1277
    %v1281 = vpack.c.b16 %v1279, %v1279
    %v1287 = vunpack.c.l.b16 %v867
    %v1288 = vunpack.c.l.b16 %v868
    %v1289 = vunpack.c.l.b16 %v869
    %v1290 = vpack.c.b16 %v1288, %v1287
    %v1291 = vpack.c.b16 %v1289, %v1289
    %v1297 = vunpack.c.l.b16 %v904
    %v1298 = vunpack.c.l.b16 %v905
    %v1299 = vunpack.c.l.b16 %v906
    %v1300 = vpack.c.b16 %v1298, %v1297
    %v1301 = vpack.c.b16 %v1299, %v1299
    %v1307 = vunpack.c.l.b16 %v941
    %v1308 = vunpack.c.l.b16 %v942
    %v1309 = vunpack.c.l.b16 %v943
    %v1310 = vpack.c.b16 %v1308, %v1307
    %v1311 = vpack.c.b16 %v1309, %v1309
    %v1317 = vunpack.c.l.b16 %v975
    %v1318 = vunpack.c.l.b16 %v976
    %v1319 = vunpack.c.l.b16 %v977
    %v1320 = vpack.c.b16 %v1318, %v1317
    %v1321 = vpack.c.b16 %v1319, %v1319
    %v1327 = vunpack.c.l.b16 %v1012
    %v1328 = vunpack.c.l.b16 %v1013
    %v1329 = vunpack.c.l.b16 %v1014
    %v1330 = vpack.c.b16 %v1328, %v1327
    %v1331 = vpack.c.b16 %v1329, %v1329
    %v1337 = vunpack.c.l.b16 %v1049
    %v1338 = vunpack.c.l.b16 %v1050
    %v1339 = vunpack.c.l.b16 %v1051
    %v1340 = vpack.c.b16 %v1338, %v1337
    %v1341 = vpack.c.b16 %v1339, %v1339
    %v1347 = vunpack.c.l.b16 %v1086
    %v1348 = vunpack.c.l.b16 %v1087
    %v1349 = vunpack.c.l.b16 %v1088
    %v1350 = vpack.c.b16 %v1348, %v1347
    %v1351 = vpack.c.b16 %v1349, %v1349
    %v1357 = vunpack.c.l.b16 %v1120
    %v1358 = vunpack.c.l.b16 %v1121
    %v1359 = vunpack.c.l.b16 %v1122
    %v1360 = vpack.c.b16 %v1358, %v1357
    %v1361 = vpack.c.b16 %v1359, %v1359
    %v1367 = vunpack.c.l.b16 %v1157
    %v1368 = vunpack.c.l.b16 %v1158
    %v1369 = vunpack.c.l.b16 %v1159
    %v1370 = vpack.c.b16 %v1368, %v1367
    %v1371 = vpack.c.b16 %v1369, %v1369
    %v1377 = vunpack.c.l.b16 %v1194
    %v1378 = vunpack.c.l.b16 %v1195
    %v1379 = vunpack.c.l.b16 %v1196
    %v1380 = vpack.c.b16 %v1378, %v1377
    %v1381 = vpack.c.b16 %v1379, %v1379
    %v1387 = vunpack.c.l.b16 %v1231
    %v1388 = vunpack.c.l.b16 %v1232
    %v1389 = vunpack.c.l.b16 %v1233
    %v1390 = vpack.c.b16 %v1388, %v1387
    %v1391 = vpack.c.b16 %v1389, %v1389
    %v1394 = vld [vmem:[%s4] sm:$0xf]
    %v1395 = vld [vmem:[%s4 + $0x4] sm:$0xf]
    %v1396 = vld [vmem:[%s4 + $0x8] sm:$0xf]
    %v1397 = vld [vmem:[%s4 + $0xc] sm:$0xf]
    %v1398 = vld [vmem:[%s4 + $0x10] sm:$0xf]
    %v1399 = vld [vmem:[%s4 + $0x14] sm:$0xf]
    %v1400 = vld [vmem:[%s4 + $0x18] sm:$0xf]
    %v1401 = vld [vmem:[%s4 + $0x1c] sm:$0xf]
    %v1402 = vld [vmem:[%s4 + $0x20] sm:$0xf]
    %v1403 = vld [vmem:[%s4 + $0x24] sm:$0xf]
    %v1404 = vld [vmem:[%s4 + $0x28] sm:$0xf]
    %v1405 = vld [vmem:[%s4 + $0x2c] sm:$0xf]
    %v1406 = vld [vmem:[%s4 + $0x30] sm:$0xf]
    %v1407 = vld [vmem:[%s4 + $0x34] sm:$0xf]
    %v1408 = vld [vmem:[%s4 + $0x38] sm:$0xf]
    %v1409 = vld [vmem:[%s4 + $0x3c] sm:$0xf]
    %v1410 = vld [vmem:[%s4 + $0x40] sm:$0xf]
    %v1411 = vld [vmem:[%s4 + $0x44] sm:$0xf]
    %v1412 = vld [vmem:[%s4 + $0x48] sm:$0xf]
    %v1413 = vld [vmem:[%s4 + $0x4c] sm:$0xf]
    %v1414 = vld [vmem:[%s4 + $0x50] sm:$0xf]
    %v1415 = vld [vmem:[%s4 + $0x54] sm:$0xf]
    %v1416 = vld [vmem:[%s4 + $0x58] sm:$0xf]
    %v1417 = vld [vmem:[%s4 + $0x5c] sm:$0xf]
    %v1418 = vld [vmem:[%s4 + $0x60] sm:$0xf]
    %v1419 = vld [vmem:[%s4 + $0x64] sm:$0xf]
    %v1420 = vld [vmem:[%s4 + $0x68] sm:$0xf]
    %v1421 = vld [vmem:[%s4 + $0x6c] sm:$0xf]
    %v1422 = vld [vmem:[%s4 + $0x70] sm:$0xf]
    %v1423 = vld [vmem:[%s4 + $0x74] sm:$0xf]
    %v1424 = vld [vmem:[%s4 + $0x78] sm:$0xf]
    %v1425 = vld [vmem:[%s4 + $0x7c] sm:$0xf]
    %v1426 = vld [vmem:[%s4 + $0x80] sm:$0xf]
    %v1427 = vld [vmem:[%s4 + $0x84] sm:$0xf]
    %v1428 = vld [vmem:[%s4 + $0x88] sm:$0xf]
    %v1429 = vld [vmem:[%s4 + $0x8c] sm:$0xf]
    %v1430 = vld [vmem:[%s4 + $0x90] sm:$0xf]
    %v1431 = vld [vmem:[%s4 + $0x94] sm:$0xf]
    %v1432 = vld [vmem:[%s4 + $0x98] sm:$0xf]
    %v1433 = vld [vmem:[%s4 + $0x9c] sm:$0xf]
    %v1434 = vld [vmem:[%s4 + $0xa0] sm:$0xf]
    %v1435 = vld [vmem:[%s4 + $0xa4] sm:$0xf]
    %v1436 = vld [vmem:[%s4 + $0xa8] sm:$0xf]
    %v1437 = vld [vmem:[%s4 + $0xac] sm:$0xf]
    %v1438 = vld [vmem:[%s4 + $0xb0] sm:$0xf]
    %v1439 = vld [vmem:[%s4 + $0xb4] sm:$0xf]
    %v1440 = vld [vmem:[%s4 + $0xb8] sm:$0xf]
    %v1441 = vld [vmem:[%s4 + $0xbc] sm:$0xf]
    %v1442 = vld [vmem:[%s4 + $0xc0] sm:$0xf]
    %v1443 = vld [vmem:[%s4 + $0xc4] sm:$0xf]
    %v1444 = vld [vmem:[%s4 + $0xc8] sm:$0xf]
    %v1445 = vld [vmem:[%s4 + $0xcc] sm:$0xf]
    %v1446 = vld [vmem:[%s4 + $0xd0] sm:$0xf]
    %v1447 = vld [vmem:[%s4 + $0xd4] sm:$0xf]
    %v1448 = vld [vmem:[%s4 + $0xd8] sm:$0xf]
    %v1449 = vld [vmem:[%s4 + $0xdc] sm:$0xf]
    %v1450 = vld [vmem:[%s4 + $0xe0] sm:$0xf]
    %v1451 = vld [vmem:[%s4 + $0xe4] sm:$0xf]
    %v1452 = vld [vmem:[%s4 + $0xe8] sm:$0xf]
    %v1453 = vld [vmem:[%s4 + $0xec] sm:$0xf]
    %v1454 = vld [vmem:[%s4 + $0xf0] sm:$0xf]
    %v1455 = vld [vmem:[%s4 + $0xf4] sm:$0xf]
    %v1456 = vld [vmem:[%s4 + $0xf8] sm:$0xf]
    %v1457 = vld [vmem:[%s4 + $0xfc] sm:$0xf]
    %v1458 = vld [vmem:[%s4 + $0x100] sm:$0xf]
    %v1459 = vld [vmem:[%s4 + $0x104] sm:$0xf]
    %v1460 = vld [vmem:[%s4 + $0x108] sm:$0xf]
    %v1461 = vld [vmem:[%s4 + $0x10c] sm:$0xf]
    %v1462 = vld [vmem:[%s4 + $0x110] sm:$0xf]
    %v1463 = vld [vmem:[%s4 + $0x114] sm:$0xf]
    %v1464 = vld [vmem:[%s4 + $0x118] sm:$0xf]
    %v1465 = vld [vmem:[%s4 + $0x11c] sm:$0xf]
    %v1466 = vld [vmem:[%s4 + $0x120] sm:$0xf]
    %v1467 = vld [vmem:[%s4 + $0x124] sm:$0xf]
    %v1468 = vld [vmem:[%s4 + $0x128] sm:$0xf]
    %v1469 = vld [vmem:[%s4 + $0x12c] sm:$0xf]
    %v1470 = vld [vmem:[%s4 + $0x130] sm:$0xf]
    %v1471 = vld [vmem:[%s4 + $0x134] sm:$0xf]
    %v1472 = vld [vmem:[%s4 + $0x138] sm:$0xf]
    %v1473 = vld [vmem:[%s4 + $0x13c] sm:$0xf]
    %v1474 = vld [vmem:[%s4 + $0x140] sm:$0xf]
    %v1475 = vld [vmem:[%s4 + $0x144] sm:$0xf]
    %v1476 = vld [vmem:[%s4 + $0x148] sm:$0xf]
    %v1477 = vld [vmem:[%s4 + $0x14c] sm:$0xf]
    %v1478 = vld [vmem:[%s4 + $0x150] sm:$0xf]
    %v1479 = vld [vmem:[%s4 + $0x154] sm:$0xf]
    %v1480 = vld [vmem:[%s4 + $0x158] sm:$0xf]
    %v1481 = vld [vmem:[%s4 + $0x15c] sm:$0xf]
    %v1482 = vld [vmem:[%s4 + $0x160] sm:$0xf]
    %v1483 = vld [vmem:[%s4 + $0x164] sm:$0xf]
    %v1484 = vld [vmem:[%s4 + $0x168] sm:$0xf]
    %v1485 = vld [vmem:[%s4 + $0x16c] sm:$0xf]
    %v1486 = vld [vmem:[%s4 + $0x170] sm:$0xf]
    %v1487 = vld [vmem:[%s4 + $0x174] sm:$0xf]
    %v1488 = vld [vmem:[%s4 + $0x178] sm:$0xf]
    %v1489 = vld [vmem:[%s4 + $0x17c] sm:$0xf]
    %v1490 = vld [vmem:[%s4 + $0x180] sm:$0xf]
    %v1491 = vld [vmem:[%s4 + $0x184] sm:$0xf]
    %v1492 = vld [vmem:[%s4 + $0x188] sm:$0xf]
    %v1493 = vld [vmem:[%s4 + $0x18c] sm:$0xf]
    %v1494 = vld [vmem:[%s4 + $0x190] sm:$0xf]
    %v1495 = vld [vmem:[%s4 + $0x194] sm:$0xf]
    %v1496 = vld [vmem:[%s4 + $0x198] sm:$0xf]
    %v1497 = vld [vmem:[%s4 + $0x19c] sm:$0xf]
    %v1498 = vld [vmem:[%s4 + $0x1a0] sm:$0xf]
    %v1499 = vld [vmem:[%s4 + $0x1a4] sm:$0xf]
    %v1500 = vld [vmem:[%s4 + $0x1a8] sm:$0xf]
    %v1501 = vld [vmem:[%s4 + $0x1ac] sm:$0xf]
    %v1502 = vld [vmem:[%s4 + $0x1b0] sm:$0xf]
    %v1503 = vld [vmem:[%s4 + $0x1b4] sm:$0xf]
    %v1504 = vld [vmem:[%s4 + $0x1b8] sm:$0xf]
    %v1505 = vld [vmem:[%s4 + $0x1bc] sm:$0xf]
    %v1506 = vld [vmem:[%s4 + $0x1c0] sm:$0xf]
    %v1507 = vld [vmem:[%s4 + $0x1c4] sm:$0xf]
    %v1508 = vld [vmem:[%s4 + $0x1c8] sm:$0xf]
    %v1509 = vld [vmem:[%s4 + $0x1cc] sm:$0xf]
    %v1510 = vld [vmem:[%s4 + $0x1d0] sm:$0xf]
    %v1511 = vld [vmem:[%s4 + $0x1d4] sm:$0xf]
    %v1512 = vld [vmem:[%s4 + $0x1d8] sm:$0xf]
    %v1513 = vld [vmem:[%s4 + $0x1dc] sm:$0xf]
    %v1514 = vld [vmem:[%s4 + $0x1e0] sm:$0xf]
    %v1515 = vld [vmem:[%s4 + $0x1e4] sm:$0xf]
    %v1516 = vld [vmem:[%s4 + $0x1e8] sm:$0xf]
    %v1517 = vld [vmem:[%s4 + $0x1ec] sm:$0xf]
    %v1518 = vld [vmem:[%s4 + $0x1f0] sm:$0xf]
    %v1519 = vld [vmem:[%s4 + $0x1f4] sm:$0xf]
    %v1520 = vld [vmem:[%s4 + $0x1f8] sm:$0xf]
    %v1521 = vld [vmem:[%s4 + $0x1fc] sm:$0xf]
    %v1522 = vld [vmem:[%s4 + $0x200] sm:$0xf]
    %v1523 = vld [vmem:[%s4 + $0x204] sm:$0xf]
    %v1524 = vld [vmem:[%s4 + $0x208] sm:$0xf]
    %v1525 = vld [vmem:[%s4 + $0x20c] sm:$0xf]
    %v1526 = vld [vmem:[%s4 + $0x210] sm:$0xf]
    %v1527 = vld [vmem:[%s4 + $0x214] sm:$0xf]
    %v1528 = vld [vmem:[%s4 + $0x218] sm:$0xf]
    %v1529 = vld [vmem:[%s4 + $0x21c] sm:$0xf]
    %v1530 = vld [vmem:[%s4 + $0x220] sm:$0xf]
    %v1531 = vld [vmem:[%s4 + $0x224] sm:$0xf]
    %v1532 = vld [vmem:[%s4 + $0x228] sm:$0xf]
    %v1533 = vld [vmem:[%s4 + $0x22c] sm:$0xf]
    %v1534 = vld [vmem:[%s4 + $0x230] sm:$0xf]
    %v1535 = vld [vmem:[%s4 + $0x234] sm:$0xf]
    %v1536 = vld [vmem:[%s4 + $0x238] sm:$0xf]
    %v1537 = vld [vmem:[%s4 + $0x23c] sm:$0xf]
    %v1538 = vld [vmem:[%s4 + $0x240] sm:$0xf]
    %v1539 = vld [vmem:[%s4 + $0x244] sm:$0xf]
    %v1540 = vld [vmem:[%s4 + $0x248] sm:$0xf]
    %v1541 = vld [vmem:[%s4 + $0x24c] sm:$0xf]
    %v1542 = vld [vmem:[%s4 + $0x250] sm:$0xf]
    %v1543 = vld [vmem:[%s4 + $0x254] sm:$0xf]
    %v1544 = vld [vmem:[%s4 + $0x258] sm:$0xf]
    %v1545 = vld [vmem:[%s4 + $0x25c] sm:$0xf]
    %v1546 = vld [vmem:[%s4 + $0x260] sm:$0xf]
    %v1547 = vld [vmem:[%s4 + $0x264] sm:$0xf]
    %v1548 = vld [vmem:[%s4 + $0x268] sm:$0xf]
    %v1549 = vld [vmem:[%s4 + $0x26c] sm:$0xf]
    %v1550 = vld [vmem:[%s4 + $0x270] sm:$0xf]
    %v1551 = vld [vmem:[%s4 + $0x274] sm:$0xf]
    %v1552 = vld [vmem:[%s4 + $0x278] sm:$0xf]
    %v1553 = vld [vmem:[%s4 + $0x27c] sm:$0xf]
    %v1554 = vld [vmem:[%s4 + $0x280] sm:$0xf]
    %v1555 = vld [vmem:[%s4 + $0x284] sm:$0xf]
    %v1556 = vld [vmem:[%s4 + $0x288] sm:$0xf]
    %v1557 = vld [vmem:[%s4 + $0x28c] sm:$0xf]
    %v1558 = vld [vmem:[%s4 + $0x290] sm:$0xf]
    %v1559 = vld [vmem:[%s4 + $0x294] sm:$0xf]
    %v1560 = vld [vmem:[%s4 + $0x298] sm:$0xf]
    %v1561 = vld [vmem:[%s4 + $0x29c] sm:$0xf]
    %v1562 = vld [vmem:[%s4 + $0x2a0] sm:$0xf]
    %v1563 = vld [vmem:[%s4 + $0x2a4] sm:$0xf]
    %v1564 = vld [vmem:[%s4 + $0x2a8] sm:$0xf]
    %v1565 = vld [vmem:[%s4 + $0x2ac] sm:$0xf]
    %v1566 = vld [vmem:[%s4 + $0x2b0] sm:$0xf]
    %v1567 = vld [vmem:[%s4 + $0x2b4] sm:$0xf]
    %v1568 = vld [vmem:[%s4 + $0x2b8] sm:$0xf]
    %v1569 = vld [vmem:[%s4 + $0x2bc] sm:$0xf]
    %v1570 = vld [vmem:[%s4 + $0x2c0] sm:$0xf]
    %v1571 = vld [vmem:[%s4 + $0x2c4] sm:$0xf]
    %v1572 = vld [vmem:[%s4 + $0x2c8] sm:$0xf]
    %v1573 = vld [vmem:[%s4 + $0x2cc] sm:$0xf]
    %v1574 = vld [vmem:[%s4 + $0x2d0] sm:$0xf]
    %v1575 = vld [vmem:[%s4 + $0x2d4] sm:$0xf]
    %v1576 = vld [vmem:[%s4 + $0x2d8] sm:$0xf]
    %v1577 = vld [vmem:[%s4 + $0x2dc] sm:$0xf]
    %v1578 = vld [vmem:[%s4 + $0x2e0] sm:$0xf]
    %v1579 = vld [vmem:[%s4 + $0x2e4] sm:$0xf]
    %v1580 = vld [vmem:[%s4 + $0x2e8] sm:$0xf]
    %v1581 = vld [vmem:[%s4 + $0x2ec] sm:$0xf]
    %v1582 = vld [vmem:[%s4 + $0x2f0] sm:$0xf]
    %v1583 = vld [vmem:[%s4 + $0x2f4] sm:$0xf]
    %v1584 = vld [vmem:[%s4 + $0x2f8] sm:$0xf]
    %v1585 = vld [vmem:[%s4 + $0x2fc] sm:$0xf]
    %v1586 = vld [vmem:[%s4 + $0x300] sm:$0xf]
    %v1587 = vld [vmem:[%s4 + $0x304] sm:$0xf]
    %v1588 = vld [vmem:[%s4 + $0x308] sm:$0xf]
    %v1589 = vld [vmem:[%s4 + $0x30c] sm:$0xf]
    %v1590 = vld [vmem:[%s4 + $0x310] sm:$0xf]
    %v1591 = vld [vmem:[%s4 + $0x314] sm:$0xf]
    %v1592 = vld [vmem:[%s4 + $0x318] sm:$0xf]
    %v1593 = vld [vmem:[%s4 + $0x31c] sm:$0xf]
    %v1594 = vld [vmem:[%s4 + $0x320] sm:$0xf]
    %v1595 = vld [vmem:[%s4 + $0x324] sm:$0xf]
    %v1596 = vld [vmem:[%s4 + $0x328] sm:$0xf]
    %v1597 = vld [vmem:[%s4 + $0x32c] sm:$0xf]
    %v1598 = vld [vmem:[%s4 + $0x330] sm:$0xf]
    %v1599 = vld [vmem:[%s4 + $0x334] sm:$0xf]
    %v1600 = vld [vmem:[%s4 + $0x338] sm:$0xf]
    %v1601 = vld [vmem:[%s4 + $0x33c] sm:$0xf]
    %v1602 = vld [vmem:[%s4 + $0x340] sm:$0xf]
    %v1603 = vld [vmem:[%s4 + $0x344] sm:$0xf]
    %v1604 = vld [vmem:[%s4 + $0x348] sm:$0xf]
    %v1605 = vld [vmem:[%s4 + $0x34c] sm:$0xf]
    %v1606 = vld [vmem:[%s4 + $0x350] sm:$0xf]
    %v1607 = vld [vmem:[%s4 + $0x354] sm:$0xf]
    %v1608 = vld [vmem:[%s4 + $0x358] sm:$0xf]
    %v1609 = vld [vmem:[%s4 + $0x35c] sm:$0xf]
    %v1610 = vld [vmem:[%s4 + $0x360] sm:$0xf]
    %v1611 = vld [vmem:[%s4 + $0x364] sm:$0xf]
    %v1612 = vld [vmem:[%s4 + $0x368] sm:$0xf]
    %v1613 = vld [vmem:[%s4 + $0x36c] sm:$0xf]
    %v1614 = vld [vmem:[%s4 + $0x370] sm:$0xf]
    %v1615 = vld [vmem:[%s4 + $0x374] sm:$0xf]
    %v1616 = vld [vmem:[%s4 + $0x378] sm:$0xf]
    %v1617 = vld [vmem:[%s4 + $0x37c] sm:$0xf]
    %v1618 = vld [vmem:[%s4 + $0x380] sm:$0xf]
    %v1619 = vld [vmem:[%s4 + $0x384] sm:$0xf]
    %v1620 = vld [vmem:[%s4 + $0x388] sm:$0xf]
    %v1621 = vld [vmem:[%s4 + $0x38c] sm:$0xf]
    %v1622 = vld [vmem:[%s4 + $0x390] sm:$0xf]
    %v1623 = vld [vmem:[%s4 + $0x394] sm:$0xf]
    %v1624 = vld [vmem:[%s4 + $0x398] sm:$0xf]
    %v1625 = vld [vmem:[%s4 + $0x39c] sm:$0xf]
    %v1626 = vld [vmem:[%s4 + $0x3a0] sm:$0xf]
    %v1627 = vld [vmem:[%s4 + $0x3a4] sm:$0xf]
    %v1628 = vld [vmem:[%s4 + $0x3a8] sm:$0xf]
    %v1629 = vld [vmem:[%s4 + $0x3ac] sm:$0xf]
    %v1630 = vld [vmem:[%s4 + $0x3b0] sm:$0xf]
    %v1631 = vld [vmem:[%s4 + $0x3b4] sm:$0xf]
    %v1632 = vld [vmem:[%s4 + $0x3b8] sm:$0xf]
    %v1633 = vld [vmem:[%s4 + $0x3bc] sm:$0xf]
    %v1634 = vld [vmem:[%s4 + $0x3c0] sm:$0xf]
    %v1635 = vld [vmem:[%s4 + $0x3c4] sm:$0xf]
    %v1636 = vld [vmem:[%s4 + $0x3c8] sm:$0xf]
    %v1637 = vld [vmem:[%s4 + $0x3cc] sm:$0xf]
    %v1638 = vld [vmem:[%s4 + $0x3d0] sm:$0xf]
    %v1639 = vld [vmem:[%s4 + $0x3d4] sm:$0xf]
    %v1640 = vld [vmem:[%s4 + $0x3d8] sm:$0xf]
    %v1641 = vld [vmem:[%s4 + $0x3dc] sm:$0xf]
    %v1642 = vld [vmem:[%s4 + $0x3e0] sm:$0xf]
    %v1643 = vld [vmem:[%s4 + $0x3e4] sm:$0xf]
    %v1644 = vld [vmem:[%s4 + $0x3e8] sm:$0xf]
    %v1645 = vld [vmem:[%s4 + $0x3ec] sm:$0xf]
    %v1646 = vld [vmem:[%s4 + $0x3f0] sm:$0xf]
    %v1647 = vld [vmem:[%s4 + $0x3f4] sm:$0xf]
    %v1648 = vld [vmem:[%s4 + $0x3f8] sm:$0xf]
    %v1649 = vld [vmem:[%s4 + $0x3fc] sm:$0xf]
    %v1650 = vld [vmem:[%s5] sm:$0x1]
    %v1652 = vperm.slane %v1650, 0
    %v1910 = vunpack.c.l.b16 %v1394
    %v1911 = vunpack.c.l.b16 %v1395
    %v1912 = vunpack.c.l.b16 %v1396
    %v1913 = vunpack.c.l.b16 %v1397
    %v1914 = vunpack.c.l.b16 %v1398
    %v1915 = vunpack.c.l.b16 %v1399
    %v1916 = vunpack.c.l.b16 %v1400
    %v1917 = vunpack.c.l.b16 %v1401
    %v1918 = vunpack.c.l.b16 %v1402
    %v1919 = vunpack.c.l.b16 %v1403
    %v1920 = vunpack.c.l.b16 %v1404
    %v1921 = vunpack.c.l.b16 %v1405
    %v1922 = vunpack.c.l.b16 %v1406
    %v1923 = vunpack.c.l.b16 %v1407
    %v1924 = vunpack.c.l.b16 %v1408
    %v1925 = vunpack.c.l.b16 %v1409
    %v1926 = vunpack.c.l.b16 %v1410
    %v1927 = vunpack.c.l.b16 %v1411
    %v1928 = vunpack.c.l.b16 %v1412
    %v1929 = vunpack.c.l.b16 %v1413
    %v1930 = vunpack.c.l.b16 %v1414
    %v1931 = vunpack.c.l.b16 %v1415
    %v1932 = vunpack.c.l.b16 %v1416
    %v1933 = vunpack.c.l.b16 %v1417
    %v1934 = vunpack.c.l.b16 %v1418
    %v1935 = vunpack.c.l.b16 %v1419
    %v1936 = vunpack.c.l.b16 %v1420
    %v1937 = vunpack.c.l.b16 %v1421
    %v1938 = vunpack.c.l.b16 %v1422
    %v1939 = vunpack.c.l.b16 %v1423
    %v1940 = vunpack.c.l.b16 %v1424
    %v1941 = vunpack.c.l.b16 %v1425
    %v1942 = vunpack.c.l.b16 %v1426
    %v1943 = vunpack.c.l.b16 %v1427
    %v1944 = vunpack.c.l.b16 %v1428
    %v1945 = vunpack.c.l.b16 %v1429
    %v1946 = vunpack.c.l.b16 %v1430
    %v1947 = vunpack.c.l.b16 %v1431
    %v1948 = vunpack.c.l.b16 %v1432
    %v1949 = vunpack.c.l.b16 %v1433
    %v1950 = vunpack.c.l.b16 %v1434
    %v1951 = vunpack.c.l.b16 %v1435
    %v1952 = vunpack.c.l.b16 %v1436
    %v1953 = vunpack.c.l.b16 %v1437
    %v1954 = vunpack.c.l.b16 %v1438
    %v1955 = vunpack.c.l.b16 %v1439
    %v1956 = vunpack.c.l.b16 %v1440
    %v1957 = vunpack.c.l.b16 %v1441
    %v1958 = vunpack.c.l.b16 %v1442
    %v1959 = vunpack.c.l.b16 %v1443
    %v1960 = vunpack.c.l.b16 %v1444
    %v1961 = vunpack.c.l.b16 %v1445
    %v1962 = vunpack.c.l.b16 %v1446
    %v1963 = vunpack.c.l.b16 %v1447
    %v1964 = vunpack.c.l.b16 %v1448
    %v1965 = vunpack.c.l.b16 %v1449
    %v1966 = vunpack.c.l.b16 %v1450
    %v1967 = vunpack.c.l.b16 %v1451
    %v1968 = vunpack.c.l.b16 %v1452
    %v1969 = vunpack.c.l.b16 %v1453
    %v1970 = vunpack.c.l.b16 %v1454
    %v1971 = vunpack.c.l.b16 %v1455
    %v1972 = vunpack.c.l.b16 %v1456
    %v1973 = vunpack.c.l.b16 %v1457
    %v1974 = vunpack.c.l.b16 %v1458
    %v1975 = vunpack.c.l.b16 %v1459
    %v1976 = vunpack.c.l.b16 %v1460
    %v1977 = vunpack.c.l.b16 %v1461
    %v1978 = vunpack.c.l.b16 %v1462
    %v1979 = vunpack.c.l.b16 %v1463
    %v1980 = vunpack.c.l.b16 %v1464
    %v1981 = vunpack.c.l.b16 %v1465
    %v1982 = vunpack.c.l.b16 %v1466
    %v1983 = vunpack.c.l.b16 %v1467
    %v1984 = vunpack.c.l.b16 %v1468
    %v1985 = vunpack.c.l.b16 %v1469
    %v1986 = vunpack.c.l.b16 %v1470
    %v1987 = vunpack.c.l.b16 %v1471
    %v1988 = vunpack.c.l.b16 %v1472
    %v1989 = vunpack.c.l.b16 %v1473
    %v1990 = vunpack.c.l.b16 %v1474
    %v1991 = vunpack.c.l.b16 %v1475
    %v1992 = vunpack.c.l.b16 %v1476
    %v1993 = vunpack.c.l.b16 %v1477
    %v1994 = vunpack.c.l.b16 %v1478
    %v1995 = vunpack.c.l.b16 %v1479
    %v1996 = vunpack.c.l.b16 %v1480
    %v1997 = vunpack.c.l.b16 %v1481
    %v1998 = vunpack.c.l.b16 %v1482
    %v1999 = vunpack.c.l.b16 %v1483
    %v2000 = vunpack.c.l.b16 %v1484
    %v2001 = vunpack.c.l.b16 %v1485
    %v2002 = vunpack.c.l.b16 %v1486
    %v2003 = vunpack.c.l.b16 %v1487
    %v2004 = vunpack.c.l.b16 %v1488
    %v2005 = vunpack.c.l.b16 %v1489
    %v2006 = vunpack.c.l.b16 %v1490
    %v2007 = vunpack.c.l.b16 %v1491
    %v2008 = vunpack.c.l.b16 %v1492
    %v2009 = vunpack.c.l.b16 %v1493
    %v2010 = vunpack.c.l.b16 %v1494
    %v2011 = vunpack.c.l.b16 %v1495
    %v2012 = vunpack.c.l.b16 %v1496
    %v2013 = vunpack.c.l.b16 %v1497
    %v2014 = vunpack.c.l.b16 %v1498
    %v2015 = vunpack.c.l.b16 %v1499
    %v2016 = vunpack.c.l.b16 %v1500
    %v2017 = vunpack.c.l.b16 %v1501
    %v2018 = vunpack.c.l.b16 %v1502
    %v2019 = vunpack.c.l.b16 %v1503
    %v2020 = vunpack.c.l.b16 %v1504
    %v2021 = vunpack.c.l.b16 %v1505
    %v2022 = vunpack.c.l.b16 %v1506
    %v2023 = vunpack.c.l.b16 %v1507
    %v2024 = vunpack.c.l.b16 %v1508
    %v2025 = vunpack.c.l.b16 %v1509
    %v2026 = vunpack.c.l.b16 %v1510
    %v2027 = vunpack.c.l.b16 %v1511
    %v2028 = vunpack.c.l.b16 %v1512
    %v2029 = vunpack.c.l.b16 %v1513
    %v2030 = vunpack.c.l.b16 %v1514
    %v2031 = vunpack.c.l.b16 %v1515
    %v2032 = vunpack.c.l.b16 %v1516
    %v2033 = vunpack.c.l.b16 %v1517
    %v2034 = vunpack.c.l.b16 %v1518
    %v2035 = vunpack.c.l.b16 %v1519
    %v2036 = vunpack.c.l.b16 %v1520
    %v2037 = vunpack.c.l.b16 %v1521
    %v2038 = vunpack.c.l.b16 %v1522
    %v2039 = vunpack.c.l.b16 %v1523
    %v2040 = vunpack.c.l.b16 %v1524
    %v2041 = vunpack.c.l.b16 %v1525
    %v2042 = vunpack.c.l.b16 %v1526
    %v2043 = vunpack.c.l.b16 %v1527
    %v2044 = vunpack.c.l.b16 %v1528
    %v2045 = vunpack.c.l.b16 %v1529
    %v2046 = vunpack.c.l.b16 %v1530
    %v2047 = vunpack.c.l.b16 %v1531
    %v2048 = vunpack.c.l.b16 %v1532
    %v2049 = vunpack.c.l.b16 %v1533
    %v2050 = vunpack.c.l.b16 %v1534
    %v2051 = vunpack.c.l.b16 %v1535
    %v2052 = vunpack.c.l.b16 %v1536
    %v2053 = vunpack.c.l.b16 %v1537
    %v2054 = vunpack.c.l.b16 %v1538
    %v2055 = vunpack.c.l.b16 %v1539
    %v2056 = vunpack.c.l.b16 %v1540
    %v2057 = vunpack.c.l.b16 %v1541
    %v2058 = vunpack.c.l.b16 %v1542
    %v2059 = vunpack.c.l.b16 %v1543
    %v2060 = vunpack.c.l.b16 %v1544
    %v2061 = vunpack.c.l.b16 %v1545
    %v2062 = vunpack.c.l.b16 %v1546
    %v2063 = vunpack.c.l.b16 %v1547
    %v2064 = vunpack.c.l.b16 %v1548
    %v2065 = vunpack.c.l.b16 %v1549
    %v2066 = vunpack.c.l.b16 %v1550
    %v2067 = vunpack.c.l.b16 %v1551
    %v2068 = vunpack.c.l.b16 %v1552
    %v2069 = vunpack.c.l.b16 %v1553
    %v2070 = vunpack.c.l.b16 %v1554
    %v2071 = vunpack.c.l.b16 %v1555
    %v2072 = vunpack.c.l.b16 %v1556
    %v2073 = vunpack.c.l.b16 %v1557
    %v2074 = vunpack.c.l.b16 %v1558
    %v2075 = vunpack.c.l.b16 %v1559
    %v2076 = vunpack.c.l.b16 %v1560
    %v2077 = vunpack.c.l.b16 %v1561
    %v2078 = vunpack.c.l.b16 %v1562
    %v2079 = vunpack.c.l.b16 %v1563
    %v2080 = vunpack.c.l.b16 %v1564
    %v2081 = vunpack.c.l.b16 %v1565
    %v2082 = vunpack.c.l.b16 %v1566
    %v2083 = vunpack.c.l.b16 %v1567
    %v2084 = vunpack.c.l.b16 %v1568
    %v2085 = vunpack.c.l.b16 %v1569
    %v2086 = vunpack.c.l.b16 %v1570
    %v2087 = vunpack.c.l.b16 %v1571
    %v2088 = vunpack.c.l.b16 %v1572
    %v2089 = vunpack.c.l.b16 %v1573
    %v2090 = vunpack.c.l.b16 %v1574
    %v2091 = vunpack.c.l.b16 %v1575
    %v2092 = vunpack.c.l.b16 %v1576
    %v2093 = vunpack.c.l.b16 %v1577
    %v2094 = vunpack.c.l.b16 %v1578
    %v2095 = vunpack.c.l.b16 %v1579
    %v2096 = vunpack.c.l.b16 %v1580
    %v2097 = vunpack.c.l.b16 %v1581
    %v2098 = vunpack.c.l.b16 %v1582
    %v2099 = vunpack.c.l.b16 %v1583
    %v2100 = vunpack.c.l.b16 %v1584
    %v2101 = vunpack.c.l.b16 %v1585
    %v2102 = vunpack.c.l.b16 %v1586
    %v2103 = vunpack.c.l.b16 %v1587
    %v2104 = vunpack.c.l.b16 %v1588
    %v2105 = vunpack.c.l.b16 %v1589
    %v2106 = vunpack.c.l.b16 %v1590
    %v2107 = vunpack.c.l.b16 %v1591
    %v2108 = vunpack.c.l.b16 %v1592
    %v2109 = vunpack.c.l.b16 %v1593
    %v2110 = vunpack.c.l.b16 %v1594
    %v2111 = vunpack.c.l.b16 %v1595
    %v2112 = vunpack.c.l.b16 %v1596
    %v2113 = vunpack.c.l.b16 %v1597
    %v2114 = vunpack.c.l.b16 %v1598
    %v2115 = vunpack.c.l.b16 %v1599
    %v2116 = vunpack.c.l.b16 %v1600
    %v2117 = vunpack.c.l.b16 %v1601
    %v2118 = vunpack.c.l.b16 %v1602
    %v2119 = vunpack.c.l.b16 %v1603
    %v2120 = vunpack.c.l.b16 %v1604
    %v2121 = vunpack.c.l.b16 %v1605
    %v2122 = vunpack.c.l.b16 %v1606
    %v2123 = vunpack.c.l.b16 %v1607
    %v2124 = vunpack.c.l.b16 %v1608
    %v2125 = vunpack.c.l.b16 %v1609
    %v2126 = vunpack.c.l.b16 %v1610
    %v2127 = vunpack.c.l.b16 %v1611
    %v2128 = vunpack.c.l.b16 %v1612
    %v2129 = vunpack.c.l.b16 %v1613
    %v2130 = vunpack.c.l.b16 %v1614
    %v2131 = vunpack.c.l.b16 %v1615
    %v2132 = vunpack.c.l.b16 %v1616
    %v2133 = vunpack.c.l.b16 %v1617
    %v2134 = vunpack.c.l.b16 %v1618
    %v2135 = vunpack.c.l.b16 %v1619
    %v2136 = vunpack.c.l.b16 %v1620
    %v2137 = vunpack.c.l.b16 %v1621
    %v2138 = vunpack.c.l.b16 %v1622
    %v2139 = vunpack.c.l.b16 %v1623
    %v2140 = vunpack.c.l.b16 %v1624
    %v2141 = vunpack.c.l.b16 %v1625
    %v2142 = vunpack.c.l.b16 %v1626
    %v2143 = vunpack.c.l.b16 %v1627
    %v2144 = vunpack.c.l.b16 %v1628
    %v2145 = vunpack.c.l.b16 %v1629
    %v2146 = vunpack.c.l.b16 %v1630
    %v2147 = vunpack.c.l.b16 %v1631
    %v2148 = vunpack.c.l.b16 %v1632
    %v2149 = vunpack.c.l.b16 %v1633
    %v2150 = vunpack.c.l.b16 %v1634
    %v2151 = vunpack.c.l.b16 %v1635
    %v2152 = vunpack.c.l.b16 %v1636
    %v2153 = vunpack.c.l.b16 %v1637
    %v2154 = vunpack.c.l.b16 %v1638
    %v2155 = vunpack.c.l.b16 %v1639
    %v2156 = vunpack.c.l.b16 %v1640
    %v2157 = vunpack.c.l.b16 %v1641
    %v2158 = vunpack.c.l.b16 %v1642
    %v2159 = vunpack.c.l.b16 %v1643
    %v2160 = vunpack.c.l.b16 %v1644
    %v2161 = vunpack.c.l.b16 %v1645
    %v2162 = vunpack.c.l.b16 %v1646
    %v2163 = vunpack.c.l.b16 %v1647
    %v2164 = vunpack.c.l.b16 %v1648
    %v2165 = vunpack.c.l.b16 %v1649
    %v2166 = vpack.c.b16 %v1911, %v1910
    %v2167 = vpack.c.b16 %v1913, %v1912
    %v2168 = vpack.c.b16 %v1915, %v1914
    %v2169 = vpack.c.b16 %v1917, %v1916
    %v2170 = vpack.c.b16 %v1919, %v1918
    %v2171 = vpack.c.b16 %v1921, %v1920
    %v2172 = vpack.c.b16 %v1923, %v1922
    %v2173 = vpack.c.b16 %v1925, %v1924
    %v2174 = vpack.c.b16 %v1927, %v1926
    %v2175 = vpack.c.b16 %v1929, %v1928
    %v2176 = vpack.c.b16 %v1931, %v1930
    %v2177 = vpack.c.b16 %v1933, %v1932
    %v2178 = vpack.c.b16 %v1935, %v1934
    %v2179 = vpack.c.b16 %v1937, %v1936
    %v2180 = vpack.c.b16 %v1939, %v1938
    %v2181 = vpack.c.b16 %v1941, %v1940
    %v2182 = vpack.c.b16 %v1943, %v1942
    %v2183 = vpack.c.b16 %v1945, %v1944
    %v2184 = vpack.c.b16 %v1947, %v1946
    %v2185 = vpack.c.b16 %v1949, %v1948
    %v2186 = vpack.c.b16 %v1951, %v1950
    %v2187 = vpack.c.b16 %v1953, %v1952
    %v2188 = vpack.c.b16 %v1955, %v1954
    %v2189 = vpack.c.b16 %v1957, %v1956
    %v2190 = vpack.c.b16 %v1959, %v1958
    %v2191 = vpack.c.b16 %v1961, %v1960
    %v2192 = vpack.c.b16 %v1963, %v1962
    %v2193 = vpack.c.b16 %v1965, %v1964
    %v2194 = vpack.c.b16 %v1967, %v1966
    %v2195 = vpack.c.b16 %v1969, %v1968
    %v2196 = vpack.c.b16 %v1971, %v1970
    %v2197 = vpack.c.b16 %v1973, %v1972
    %v2198 = vpack.c.b16 %v1975, %v1974
    %v2199 = vpack.c.b16 %v1977, %v1976
    %v2200 = vpack.c.b16 %v1979, %v1978
    %v2201 = vpack.c.b16 %v1981, %v1980
    %v2202 = vpack.c.b16 %v1983, %v1982
    %v2203 = vpack.c.b16 %v1985, %v1984
    %v2204 = vpack.c.b16 %v1987, %v1986
    %v2205 = vpack.c.b16 %v1989, %v1988
    %v2206 = vpack.c.b16 %v1991, %v1990
    %v2207 = vpack.c.b16 %v1993, %v1992
    %v2208 = vpack.c.b16 %v1995, %v1994
    %v2209 = vpack.c.b16 %v1997, %v1996
    %v2210 = vpack.c.b16 %v1999, %v1998
    %v2211 = vpack.c.b16 %v2001, %v2000
    %v2212 = vpack.c.b16 %v2003, %v2002
    %v2213 = vpack.c.b16 %v2005, %v2004
    %v2214 = vpack.c.b16 %v2007, %v2006
    %v2215 = vpack.c.b16 %v2009, %v2008
    %v2216 = vpack.c.b16 %v2011, %v2010
    %v2217 = vpack.c.b16 %v2013, %v2012
    %v2218 = vpack.c.b16 %v2015, %v2014
    %v2219 = vpack.c.b16 %v2017, %v2016
    %v2220 = vpack.c.b16 %v2019, %v2018
    %v2221 = vpack.c.b16 %v2021, %v2020
    %v2222 = vpack.c.b16 %v2023, %v2022
    %v2223 = vpack.c.b16 %v2025, %v2024
    %v2224 = vpack.c.b16 %v2027, %v2026
    %v2225 = vpack.c.b16 %v2029, %v2028
    %v2226 = vpack.c.b16 %v2031, %v2030
    %v2227 = vpack.c.b16 %v2033, %v2032
    %v2228 = vpack.c.b16 %v2035, %v2034
    %v2229 = vpack.c.b16 %v2037, %v2036
    %v2230 = vpack.c.b16 %v2039, %v2038
    %v2231 = vpack.c.b16 %v2041, %v2040
    %v2232 = vpack.c.b16 %v2043, %v2042
    %v2233 = vpack.c.b16 %v2045, %v2044
    %v2234 = vpack.c.b16 %v2047, %v2046
    %v2235 = vpack.c.b16 %v2049, %v2048
    %v2236 = vpack.c.b16 %v2051, %v2050
    %v2237 = vpack.c.b16 %v2053, %v2052
    %v2238 = vpack.c.b16 %v2055, %v2054
    %v2239 = vpack.c.b16 %v2057, %v2056
    %v2240 = vpack.c.b16 %v2059, %v2058
    %v2241 = vpack.c.b16 %v2061, %v2060
    %v2242 = vpack.c.b16 %v2063, %v2062
    %v2243 = vpack.c.b16 %v2065, %v2064
    %v2244 = vpack.c.b16 %v2067, %v2066
    %v2245 = vpack.c.b16 %v2069, %v2068
    %v2246 = vpack.c.b16 %v2071, %v2070
    %v2247 = vpack.c.b16 %v2073, %v2072
    %v2248 = vpack.c.b16 %v2075, %v2074
    %v2249 = vpack.c.b16 %v2077, %v2076
    %v2250 = vpack.c.b16 %v2079, %v2078
    %v2251 = vpack.c.b16 %v2081, %v2080
    %v2252 = vpack.c.b16 %v2083, %v2082
    %v2253 = vpack.c.b16 %v2085, %v2084
    %v2254 = vpack.c.b16 %v2087, %v2086
    %v2255 = vpack.c.b16 %v2089, %v2088
    %v2256 = vpack.c.b16 %v2091, %v2090
    %v2257 = vpack.c.b16 %v2093, %v2092
    %v2258 = vpack.c.b16 %v2095, %v2094
    %v2259 = vpack.c.b16 %v2097, %v2096
    %v2260 = vpack.c.b16 %v2099, %v2098
    %v2261 = vpack.c.b16 %v2101, %v2100
    %v2262 = vpack.c.b16 %v2103, %v2102
    %v2263 = vpack.c.b16 %v2105, %v2104
    %v2264 = vpack.c.b16 %v2107, %v2106
    %v2265 = vpack.c.b16 %v2109, %v2108
    %v2266 = vpack.c.b16 %v2111, %v2110
    %v2267 = vpack.c.b16 %v2113, %v2112
    %v2268 = vpack.c.b16 %v2115, %v2114
    %v2269 = vpack.c.b16 %v2117, %v2116
    %v2270 = vpack.c.b16 %v2119, %v2118
    %v2271 = vpack.c.b16 %v2121, %v2120
    %v2272 = vpack.c.b16 %v2123, %v2122
    %v2273 = vpack.c.b16 %v2125, %v2124
    %v2274 = vpack.c.b16 %v2127, %v2126
    %v2275 = vpack.c.b16 %v2129, %v2128
    %v2276 = vpack.c.b16 %v2131, %v2130
    %v2277 = vpack.c.b16 %v2133, %v2132
    %v2278 = vpack.c.b16 %v2135, %v2134
    %v2279 = vpack.c.b16 %v2137, %v2136
    %v2280 = vpack.c.b16 %v2139, %v2138
    %v2281 = vpack.c.b16 %v2141, %v2140
    %v2282 = vpack.c.b16 %v2143, %v2142
    %v2283 = vpack.c.b16 %v2145, %v2144
    %v2284 = vpack.c.b16 %v2147, %v2146
    %v2285 = vpack.c.b16 %v2149, %v2148
    %v2286 = vpack.c.b16 %v2151, %v2150
    %v2287 = vpack.c.b16 %v2153, %v2152
    %v2288 = vpack.c.b16 %v2155, %v2154
    %v2289 = vpack.c.b16 %v2157, %v2156
    %v2290 = vpack.c.b16 %v2159, %v2158
    %v2291 = vpack.c.b16 %v2161, %v2160
    %v2292 = vpack.c.b16 %v2163, %v2162
    %v2293 = vpack.c.b16 %v2165, %v2164
    %2422 = vmatpush.bf16.msra.mxu0 %v2173
    %2423 = vmatpush.bf16.msra.mxu0 %v2172
    %2424 = vmatpush.bf16.msra.mxu0 %v2171
    %2425 = vmatpush.bf16.msra.mxu0 %v2170
    %2426 = vmatpush.bf16.msra.mxu0 %v2169
    %2427 = vmatpush.bf16.msra.mxu0 %v2168
    %2428 = vmatpush.bf16.msra.mxu0 %v2167
    %2429 = vmatpush.bf16.msra.mxu0 %v2166
    %2430 = vmatmul.bf16.gmra.mxu0 %v1240
    %v2431 = vpop.f32.mrf.mxu0
    %v2432 = vadd.f32 %v1652, %v2431
    %v2433 = vpop.f32.mrf.mxu0
    %v2434 = vadd.f32 %v1652, %v2433
    %2435 = vmatmul.bf16.gmra.mxu0 %v1241
    %v2436 = vpop.f32.mrf.mxu0
    %v2437 = vadd.f32 %v1652, %v2436
    %v2438 = vpop.f32.mrf.mxu0
    %2439 = vdwg.mxu0
    %2440 = vmatpush.bf16.msra.mxu0 %v2181
    %2441 = vmatpush.bf16.msra.mxu0 %v2180
    %2442 = vmatpush.bf16.msra.mxu0 %v2179
    %2443 = vmatpush.bf16.msra.mxu0 %v2178
    %2444 = vmatpush.bf16.msra.mxu0 %v2177
    %2445 = vmatpush.bf16.msra.mxu0 %v2176
    %2446 = vmatpush.bf16.msra.mxu0 %v2175
    %2447 = vmatpush.bf16.msra.mxu0 %v2174
    %2448 = vmatmul.bf16.gmra.mxu0 %v1250
    %v2449 = vpop.f32.mrf.mxu0
    %v2450 = vadd.f32 %v2432, %v2449
    %v2451 = vpop.f32.mrf.mxu0
    %v2452 = vadd.f32 %v2434, %v2451
    %2453 = vmatmul.bf16.gmra.mxu0 %v1251
    %v2454 = vpop.f32.mrf.mxu0
    %v2455 = vadd.f32 %v2437, %v2454
    %v2456 = vpop.f32.mrf.mxu0
    %2457 = vdwg.mxu0
    %2458 = vmatpush.bf16.msra.mxu0 %v2189
    %2459 = vmatpush.bf16.msra.mxu0 %v2188
    %2460 = vmatpush.bf16.msra.mxu0 %v2187
    %2461 = vmatpush.bf16.msra.mxu0 %v2186
    %2462 = vmatpush.bf16.msra.mxu0 %v2185
    %2463 = vmatpush.bf16.msra.mxu0 %v2184
    %2464 = vmatpush.bf16.msra.mxu0 %v2183
    %2465 = vmatpush.bf16.msra.mxu0 %v2182
    %2466 = vmatmul.bf16.gmra.mxu0 %v1260
    %v2467 = vpop.f32.mrf.mxu0
    %v2468 = vadd.f32 %v2450, %v2467
    %v2469 = vpop.f32.mrf.mxu0
    %v2470 = vadd.f32 %v2452, %v2469
    %2471 = vmatmul.bf16.gmra.mxu0 %v1261
    %v2472 = vpop.f32.mrf.mxu0
    %v2473 = vadd.f32 %v2455, %v2472
    %v2474 = vpop.f32.mrf.mxu0
    %2475 = vdwg.mxu0
    %2476 = vmatpush.bf16.msra.mxu0 %v2197
    %2477 = vmatpush.bf16.msra.mxu0 %v2196
    %2478 = vmatpush.bf16.msra.mxu0 %v2195
    %2479 = vmatpush.bf16.msra.mxu0 %v2194
    %2480 = vmatpush.bf16.msra.mxu0 %v2193
    %2481 = vmatpush.bf16.msra.mxu0 %v2192
    %2482 = vmatpush.bf16.msra.mxu0 %v2191
    %2483 = vmatpush.bf16.msra.mxu0 %v2190
    %2484 = vmatmul.bf16.gmra.mxu0 %v1270
    %v2485 = vpop.f32.mrf.mxu0
    %v2486 = vadd.f32 %v2468, %v2485
    %v2487 = vpop.f32.mrf.mxu0
    %v2488 = vadd.f32 %v2470, %v2487
    %2489 = vmatmul.bf16.gmra.mxu0 %v1271
    %v2490 = vpop.f32.mrf.mxu0
    %v2491 = vadd.f32 %v2473, %v2490
    %v2492 = vpop.f32.mrf.mxu0
    %2493 = vdwg.mxu0
    %2494 = vmatpush.bf16.msra.mxu0 %v2205
    %2495 = vmatpush.bf16.msra.mxu0 %v2204
    %2496 = vmatpush.bf16.msra.mxu0 %v2203
    %2497 = vmatpush.bf16.msra.mxu0 %v2202
    %2498 = vmatpush.bf16.msra.mxu0 %v2201
    %2499 = vmatpush.bf16.msra.mxu0 %v2200
    %2500 = vmatpush.bf16.msra.mxu0 %v2199
    %2501 = vmatpush.bf16.msra.mxu0 %v2198
    %2502 = vmatmul.bf16.gmra.mxu0 %v1280
    %v2503 = vpop.f32.mrf.mxu0
    %v2504 = vadd.f32 %v2486, %v2503
    %v2505 = vpop.f32.mrf.mxu0
    %v2506 = vadd.f32 %v2488, %v2505
    %2507 = vmatmul.bf16.gmra.mxu0 %v1281
    %v2508 = vpop.f32.mrf.mxu0
    %v2509 = vadd.f32 %v2491, %v2508
    %v2510 = vpop.f32.mrf.mxu0
    %2511 = vdwg.mxu0
    %2512 = vmatpush.bf16.msra.mxu0 %v2213
    %2513 = vmatpush.bf16.msra.mxu0 %v2212
    %2514 = vmatpush.bf16.msra.mxu0 %v2211
    %2515 = vmatpush.bf16.msra.mxu0 %v2210
    %2516 = vmatpush.bf16.msra.mxu0 %v2209
    %2517 = vmatpush.bf16.msra.mxu0 %v2208
    %2518 = vmatpush.bf16.msra.mxu0 %v2207
    %2519 = vmatpush.bf16.msra.mxu0 %v2206
    %2520 = vmatmul.bf16.gmra.mxu0 %v1290
    %v2521 = vpop.f32.mrf.mxu0
    %v2522 = vadd.f32 %v2504, %v2521
    %v2523 = vpop.f32.mrf.mxu0
    %v2524 = vadd.f32 %v2506, %v2523
    %2525 = vmatmul.bf16.gmra.mxu0 %v1291
    %v2526 = vpop.f32.mrf.mxu0
    %v2527 = vadd.f32 %v2509, %v2526
    %v2528 = vpop.f32.mrf.mxu0
    %2529 = vdwg.mxu0
    %2530 = vmatpush.bf16.msra.mxu0 %v2221
    %2531 = vmatpush.bf16.msra.mxu0 %v2220
    %2532 = vmatpush.bf16.msra.mxu0 %v2219
    %2533 = vmatpush.bf16.msra.mxu0 %v2218
    %2534 = vmatpush.bf16.msra.mxu0 %v2217
    %2535 = vmatpush.bf16.msra.mxu0 %v2216
    %2536 = vmatpush.bf16.msra.mxu0 %v2215
    %2537 = vmatpush.bf16.msra.mxu0 %v2214
    %2538 = vmatmul.bf16.gmra.mxu0 %v1300
    %v2539 = vpop.f32.mrf.mxu0
    %v2540 = vadd.f32 %v2522, %v2539
    %v2541 = vpop.f32.mrf.mxu0
    %v2542 = vadd.f32 %v2524, %v2541
    %2543 = vmatmul.bf16.gmra.mxu0 %v1301
    %v2544 = vpop.f32.mrf.mxu0
    %v2545 = vadd.f32 %v2527, %v2544
    %v2546 = vpop.f32.mrf.mxu0
    %2547 = vdwg.mxu0
    %2548 = vmatpush.bf16.msra.mxu0 %v2229
    %2549 = vmatpush.bf16.msra.mxu0 %v2228
    %2550 = vmatpush.bf16.msra.mxu0 %v2227
    %2551 = vmatpush.bf16.msra.mxu0 %v2226
    %2552 = vmatpush.bf16.msra.mxu0 %v2225
    %2553 = vmatpush.bf16.msra.mxu0 %v2224
    %2554 = vmatpush.bf16.msra.mxu0 %v2223
    %2555 = vmatpush.bf16.msra.mxu0 %v2222
    %2556 = vmatmul.bf16.gmra.mxu0 %v1310
    %v2557 = vpop.f32.mrf.mxu0
    %v2558 = vadd.f32 %v2540, %v2557
    %v2559 = vpop.f32.mrf.mxu0
    %v2560 = vadd.f32 %v2542, %v2559
    %2561 = vmatmul.bf16.gmra.mxu0 %v1311
    %v2562 = vpop.f32.mrf.mxu0
    %v2563 = vadd.f32 %v2545, %v2562
    %v2564 = vpop.f32.mrf.mxu0
    %2565 = vdwg.mxu0
    %2566 = vmatpush.bf16.msra.mxu0 %v2237
    %2567 = vmatpush.bf16.msra.mxu0 %v2236
    %2568 = vmatpush.bf16.msra.mxu0 %v2235
    %2569 = vmatpush.bf16.msra.mxu0 %v2234
    %2570 = vmatpush.bf16.msra.mxu0 %v2233
    %2571 = vmatpush.bf16.msra.mxu0 %v2232
    %2572 = vmatpush.bf16.msra.mxu0 %v2231
    %2573 = vmatpush.bf16.msra.mxu0 %v2230
    %2574 = vmatmul.bf16.gmra.mxu0 %v1320
    %v2575 = vpop.f32.mrf.mxu0
    %v2576 = vadd.f32 %v2558, %v2575
    %v2577 = vpop.f32.mrf.mxu0
    %v2578 = vadd.f32 %v2560, %v2577
    %2579 = vmatmul.bf16.gmra.mxu0 %v1321
    %v2580 = vpop.f32.mrf.mxu0
    %v2581 = vadd.f32 %v2563, %v2580
    %v2582 = vpop.f32.mrf.mxu0
    %2583 = vdwg.mxu0
    %2584 = vmatpush.bf16.msra.mxu0 %v2245
    %2585 = vmatpush.bf16.msra.mxu0 %v2244
    %2586 = vmatpush.bf16.msra.mxu0 %v2243
    %2587 = vmatpush.bf16.msra.mxu0 %v2242
    %2588 = vmatpush.bf16.msra.mxu0 %v2241
    %2589 = vmatpush.bf16.msra.mxu0 %v2240
    %2590 = vmatpush.bf16.msra.mxu0 %v2239
    %2591 = vmatpush.bf16.msra.mxu0 %v2238
    %2592 = vmatmul.bf16.gmra.mxu0 %v1330
    %v2593 = vpop.f32.mrf.mxu0
    %v2594 = vadd.f32 %v2576, %v2593
    %v2595 = vpop.f32.mrf.mxu0
    %v2596 = vadd.f32 %v2578, %v2595
    %2597 = vmatmul.bf16.gmra.mxu0 %v1331
    %v2598 = vpop.f32.mrf.mxu0
    %v2599 = vadd.f32 %v2581, %v2598
    %v2600 = vpop.f32.mrf.mxu0
    %2601 = vdwg.mxu0
    %2602 = vmatpush.bf16.msra.mxu0 %v2253
    %2603 = vmatpush.bf16.msra.mxu0 %v2252
    %2604 = vmatpush.bf16.msra.mxu0 %v2251
    %2605 = vmatpush.bf16.msra.mxu0 %v2250
    %2606 = vmatpush.bf16.msra.mxu0 %v2249
    %2607 = vmatpush.bf16.msra.mxu0 %v2248
    %2608 = vmatpush.bf16.msra.mxu0 %v2247
    %2609 = vmatpush.bf16.msra.mxu0 %v2246
    %2610 = vmatmul.bf16.gmra.mxu0 %v1340
    %v2611 = vpop.f32.mrf.mxu0
    %v2612 = vadd.f32 %v2594, %v2611
    %v2613 = vpop.f32.mrf.mxu0
    %v2614 = vadd.f32 %v2596, %v2613
    %2615 = vmatmul.bf16.gmra.mxu0 %v1341
    %v2616 = vpop.f32.mrf.mxu0
    %v2617 = vadd.f32 %v2599, %v2616
    %v2618 = vpop.f32.mrf.mxu0
    %2619 = vdwg.mxu0
    %2620 = vmatpush.bf16.msra.mxu0 %v2261
    %2621 = vmatpush.bf16.msra.mxu0 %v2260
    %2622 = vmatpush.bf16.msra.mxu0 %v2259
    %2623 = vmatpush.bf16.msra.mxu0 %v2258
    %2624 = vmatpush.bf16.msra.mxu0 %v2257
    %2625 = vmatpush.bf16.msra.mxu0 %v2256
    %2626 = vmatpush.bf16.msra.mxu0 %v2255
    %2627 = vmatpush.bf16.msra.mxu0 %v2254
    %2628 = vmatmul.bf16.gmra.mxu0 %v1350
    %v2629 = vpop.f32.mrf.mxu0
    %v2630 = vadd.f32 %v2612, %v2629
    %v2631 = vpop.f32.mrf.mxu0
    %v2632 = vadd.f32 %v2614, %v2631
    %2633 = vmatmul.bf16.gmra.mxu0 %v1351
    %v2634 = vpop.f32.mrf.mxu0
    %v2635 = vadd.f32 %v2617, %v2634
    %v2636 = vpop.f32.mrf.mxu0
    %2637 = vdwg.mxu0
    %2638 = vmatpush.bf16.msra.mxu0 %v2269
    %2639 = vmatpush.bf16.msra.mxu0 %v2268
    %2640 = vmatpush.bf16.msra.mxu0 %v2267
    %2641 = vmatpush.bf16.msra.mxu0 %v2266
    %2642 = vmatpush.bf16.msra.mxu0 %v2265
    %2643 = vmatpush.bf16.msra.mxu0 %v2264
    %2644 = vmatpush.bf16.msra.mxu0 %v2263
    %2645 = vmatpush.bf16.msra.mxu0 %v2262
    %2646 = vmatmul.bf16.gmra.mxu0 %v1360
    %v2647 = vpop.f32.mrf.mxu0
    %v2648 = vadd.f32 %v2630, %v2647
    %v2649 = vpop.f32.mrf.mxu0
    %v2650 = vadd.f32 %v2632, %v2649
    %2651 = vmatmul.bf16.gmra.mxu0 %v1361
    %v2652 = vpop.f32.mrf.mxu0
    %v2653 = vadd.f32 %v2635, %v2652
    %v2654 = vpop.f32.mrf.mxu0
    %2655 = vdwg.mxu0
    %2656 = vmatpush.bf16.msra.mxu0 %v2277
    %2657 = vmatpush.bf16.msra.mxu0 %v2276
    %2658 = vmatpush.bf16.msra.mxu0 %v2275
    %2659 = vmatpush.bf16.msra.mxu0 %v2274
    %2660 = vmatpush.bf16.msra.mxu0 %v2273
    %2661 = vmatpush.bf16.msra.mxu0 %v2272
    %2662 = vmatpush.bf16.msra.mxu0 %v2271
    %2663 = vmatpush.bf16.msra.mxu0 %v2270
    %2664 = vmatmul.bf16.gmra.mxu0 %v1370
    %v2665 = vpop.f32.mrf.mxu0
    %v2666 = vadd.f32 %v2648, %v2665
    %v2667 = vpop.f32.mrf.mxu0
    %v2668 = vadd.f32 %v2650, %v2667
    %2669 = vmatmul.bf16.gmra.mxu0 %v1371
    %v2670 = vpop.f32.mrf.mxu0
    %v2671 = vadd.f32 %v2653, %v2670
    %v2672 = vpop.f32.mrf.mxu0
    %2673 = vdwg.mxu0
    %2674 = vmatpush.bf16.msra.mxu0 %v2285
    %2675 = vmatpush.bf16.msra.mxu0 %v2284
    %2676 = vmatpush.bf16.msra.mxu0 %v2283
    %2677 = vmatpush.bf16.msra.mxu0 %v2282
    %2678 = vmatpush.bf16.msra.mxu0 %v2281
    %2679 = vmatpush.bf16.msra.mxu0 %v2280
    %2680 = vmatpush.bf16.msra.mxu0 %v2279
    %2681 = vmatpush.bf16.msra.mxu0 %v2278
    %2682 = vmatmul.bf16.gmra.mxu0 %v1380
    %v2683 = vpop.f32.mrf.mxu0
    %v2684 = vadd.f32 %v2666, %v2683
    %v2685 = vpop.f32.mrf.mxu0
    %v2686 = vadd.f32 %v2668, %v2685
    %2687 = vmatmul.bf16.gmra.mxu0 %v1381
    %v2688 = vpop.f32.mrf.mxu0
    %v2689 = vadd.f32 %v2671, %v2688
    %v2690 = vpop.f32.mrf.mxu0
    %2691 = vdwg.mxu0
    %2692 = vmatpush.bf16.msra.mxu0 %v2293
    %2693 = vmatpush.bf16.msra.mxu0 %v2292
    %2694 = vmatpush.bf16.msra.mxu0 %v2291
    %2695 = vmatpush.bf16.msra.mxu0 %v2290
    %2696 = vmatpush.bf16.msra.mxu0 %v2289
    %2697 = vmatpush.bf16.msra.mxu0 %v2288
    %2698 = vmatpush.bf16.msra.mxu0 %v2287
    %2699 = vmatpush.bf16.msra.mxu0 %v2286
    %2700 = vmatmul.bf16.gmra.mxu0 %v1390
    %v2701 = vpop.f32.mrf.mxu0
    %v2702 = vadd.f32 %v2684, %v2701
    %v2703 = vpop.f32.mrf.mxu0
    %v2704 = vadd.f32 %v2686, %v2703
    %2705 = vmatmul.bf16.gmra.mxu0 %v1391
    %v2706 = vpop.f32.mrf.mxu0
    %v2707 = vadd.f32 %v2689, %v2706
    %v2708 = vpop.f32.mrf.mxu0
    %2709 = vdwg.mxu0
    %v2710 = vmax.f32 %v2702, 0.0
    %v2711 = vmax.f32 %v2704, 0.0
    %v2712 = vmax.f32 %v2707, 0.0
    %v2713 = vpack.c.bf16 %v2711, %v2710
    %v2714 = vpack.c.bf16 %v2712, %v2712
    %v2715 = vld [vmem:[%s6] sm:$0x1]
    %vm2716 = vcmask 146432
    %v2718 = vsel %vm2716, %v2715, 0
    %vm2720 = vcmask 1040384
    %v2722 = vsel %vm2720, %v2714, 0
    %2724 = vmatpush.bf16.msra.mxu0 0
    %2725 = vmatpush.bf16.msra.mxu0 0
    %2726 = vmatpush.bf16.msra.mxu0 0
    %2727 = vmatpush.bf16.msra.mxu0 0
    %2728 = vmatpush.bf16.msra.mxu0 0
    %2729 = vmatpush.bf16.msra.mxu0 0
    %2730 = vmatpush.bf16.msra.mxu0 %v2722
    %2731 = vmatpush.bf16.msra.mxu0 %v2713
    %2732 = vmatmul.bf16.gmra.mxu0 %v2718
    %v2733 = vpop.f32.mrf.mxu0
    %v2734 = vadd.f32 0.0, %v2733
    %v2735 = vpop.f32.mrf.mxu0
    %2736 = vdwg.mxu0
    %v2737 = vpack.c.bf16 %v2734, %v2734
    %v2738 = vld [vmem:[%s6] sm:$0x2]
    %v2740 = vunpack.c.l.b16 %v2738
    %v2741 = vpack.c.b16 %v2740, %v2740
    %v2742 = vrot.slane %v2741, 1
    %v2744 = vsel %vm2716, %v2742, 0
    %2746 = vmatpush.bf16.msra.mxu0 0
    %2747 = vmatpush.bf16.msra.mxu0 0
    %2748 = vmatpush.bf16.msra.mxu0 0
    %2749 = vmatpush.bf16.msra.mxu0 0
    %2750 = vmatpush.bf16.msra.mxu0 0
    %2751 = vmatpush.bf16.msra.mxu0 0
    %2752 = vmatpush.bf16.msra.mxu0 %v2722
    %2753 = vmatpush.bf16.msra.mxu0 %v2713
    %2754 = vmatmul.bf16.gmra.mxu0 %v2744
    %v2755 = vpop.f32.mrf.mxu0
    %v2756 = vadd.f32 0.0, %v2755
    %v2757 = vpop.f32.mrf.mxu0
    %2758 = vdwg.mxu0
    %v2759 = vpack.c.bf16 %v2756, %v2756
    %v2760 = vld [vmem:[%s6] sm:$0x4]
    %v2762 = vunpack.c.l.b16 %v2760
    %v2763 = vpack.c.b16 %v2762, %v2762
    %v2764 = vrot.slane %v2763, 2
    %v2766 = vsel %vm2716, %v2764, 0
    %2768 = vmatpush.bf16.msra.mxu0 0
    %2769 = vmatpush.bf16.msra.mxu0 0
    %2770 = vmatpush.bf16.msra.mxu0 0
    %2771 = vmatpush.bf16.msra.mxu0 0
    %2772 = vmatpush.bf16.msra.mxu0 0
    %2773 = vmatpush.bf16.msra.mxu0 0
    %2774 = vmatpush.bf16.msra.mxu0 %v2722
    %2775 = vmatpush.bf16.msra.mxu0 %v2713
    %2776 = vmatmul.bf16.gmra.mxu0 %v2766
    %v2777 = vpop.f32.mrf.mxu0
    %v2778 = vadd.f32 0.0, %v2777
    %v2779 = vpop.f32.mrf.mxu0
    %2780 = vdwg.mxu0
    %v2781 = vpack.c.bf16 %v2778, %v2778
    %v2782 = vld [vmem:[%s6] sm:$0x8]
    %v2784 = vunpack.c.l.b16 %v2782
    %v2785 = vpack.c.b16 %v2784, %v2784
    %v2786 = vrot.slane %v2785, 3
    %v2788 = vsel %vm2716, %v2786, 0
    %2790 = vmatpush.bf16.msra.mxu0 0
    %2791 = vmatpush.bf16.msra.mxu0 0
    %2792 = vmatpush.bf16.msra.mxu0 0
    %2793 = vmatpush.bf16.msra.mxu0 0
    %2794 = vmatpush.bf16.msra.mxu0 0
    %2795 = vmatpush.bf16.msra.mxu0 0
    %2796 = vmatpush.bf16.msra.mxu0 %v2722
    %2797 = vmatpush.bf16.msra.mxu0 %v2713
    %2798 = vmatmul.bf16.gmra.mxu0 %v2788
    %v2799 = vpop.f32.mrf.mxu0
    %v2800 = vadd.f32 0.0, %v2799
    %v2801 = vpop.f32.mrf.mxu0
    %2802 = vdwg.mxu0
    %v2803 = vpack.c.bf16 %v2800, %v2800
    %v2804 = vld [vmem:[%s6 + $0x4] sm:$0x1]
    %v2806 = vsel %vm2716, %v2804, 0
    %2808 = vmatpush.bf16.msra.mxu0 0
    %2809 = vmatpush.bf16.msra.mxu0 0
    %2810 = vmatpush.bf16.msra.mxu0 0
    %2811 = vmatpush.bf16.msra.mxu0 0
    %2812 = vmatpush.bf16.msra.mxu0 0
    %2813 = vmatpush.bf16.msra.mxu0 0
    %2814 = vmatpush.bf16.msra.mxu0 %v2722
    %2815 = vmatpush.bf16.msra.mxu0 %v2713
    %2816 = vmatmul.bf16.gmra.mxu0 %v2806
    %v2817 = vpop.f32.mrf.mxu0
    %v2818 = vadd.f32 0.0, %v2817
    %v2819 = vpop.f32.mrf.mxu0
    %2820 = vdwg.mxu0
    %v2821 = vpack.c.bf16 %v2818, %v2818
    %v2822 = vld [vmem:[%s6 + $0x4] sm:$0x2]
    %v2824 = vunpack.c.l.b16 %v2822
    %v2825 = vpack.c.b16 %v2824, %v2824
    %v2826 = vrot.slane %v2825, 1
    %v2828 = vsel %vm2716, %v2826, 0
    %2830 = vmatpush.bf16.msra.mxu0 0
    %2831 = vmatpush.bf16.msra.mxu0 0
    %2832 = vmatpush.bf16.msra.mxu0 0
    %2833 = vmatpush.bf16.msra.mxu0 0
    %2834 = vmatpush.bf16.msra.mxu0 0
    %2835 = vmatpush.bf16.msra.mxu0 0
    %2836 = vmatpush.bf16.msra.mxu0 %v2722
    %2837 = vmatpush.bf16.msra.mxu0 %v2713
    %2838 = vmatmul.bf16.gmra.mxu0 %v2828
    %v2839 = vpop.f32.mrf.mxu0
    %v2840 = vadd.f32 0.0, %v2839
    %v2841 = vpop.f32.mrf.mxu0
    %2842 = vdwg.mxu0
    %v2843 = vpack.c.bf16 %v2840, %v2840
    %v2844 = vld [vmem:[%s6 + $0x4] sm:$0x4]
    %v2846 = vunpack.c.l.b16 %v2844
    %v2847 = vpack.c.b16 %v2846, %v2846
    %v2848 = vrot.slane %v2847, 2
    %v2850 = vsel %vm2716, %v2848, 0
    %2852 = vmatpush.bf16.msra.mxu0 0
    %2853 = vmatpush.bf16.msra.mxu0 0
    %2854 = vmatpush.bf16.msra.mxu0 0
    %2855 = vmatpush.bf16.msra.mxu0 0
    %2856 = vmatpush.bf16.msra.mxu0 0
    %2857 = vmatpush.bf16.msra.mxu0 0
    %2858 = vmatpush.bf16.msra.mxu0 %v2722
    %2859 = vmatpush.bf16.msra.mxu0 %v2713
    %2860 = vmatmul.bf16.gmra.mxu0 %v2850
    %v2861 = vpop.f32.mrf.mxu0
    %v2862 = vadd.f32 0.0, %v2861
    %v2863 = vpop.f32.mrf.mxu0
    %2864 = vdwg.mxu0
    %v2865 = vpack.c.bf16 %v2862, %v2862
    %v2866 = vld [vmem:[%s6 + $0x4] sm:$0x8]
    %v2868 = vunpack.c.l.b16 %v2866
    %v2869 = vpack.c.b16 %v2868, %v2868
    %v2870 = vrot.slane %v2869, 3
    %v2872 = vsel %vm2716, %v2870, 0
    %2874 = vmatpush.bf16.msra.mxu0 0
    %2875 = vmatpush.bf16.msra.mxu0 0
    %2876 = vmatpush.bf16.msra.mxu0 0
    %2877 = vmatpush.bf16.msra.mxu0 0
    %2878 = vmatpush.bf16.msra.mxu0 0
    %2879 = vmatpush.bf16.msra.mxu0 0
    %2880 = vmatpush.bf16.msra.mxu0 %v2722
    %2881 = vmatpush.bf16.msra.mxu0 %v2713
    %2882 = vmatmul.bf16.gmra.mxu0 %v2872
    %v2883 = vpop.f32.mrf.mxu0
    %v2884 = vadd.f32 0.0, %v2883
    %v2885 = vpop.f32.mrf.mxu0
    %2886 = vdwg.mxu0
    %v2887 = vpack.c.bf16 %v2884, %v2884
    %v2888 = vld [vmem:[%s6 + $0x8] sm:$0x1]
    %v2890 = vsel %vm2716, %v2888, 0
    %2892 = vmatpush.bf16.msra.mxu0 0
    %2893 = vmatpush.bf16.msra.mxu0 0
    %2894 = vmatpush.bf16.msra.mxu0 0
    %2895 = vmatpush.bf16.msra.mxu0 0
    %2896 = vmatpush.bf16.msra.mxu0 0
    %2897 = vmatpush.bf16.msra.mxu0 0
    %2898 = vmatpush.bf16.msra.mxu0 %v2722
    %2899 = vmatpush.bf16.msra.mxu0 %v2713
    %2900 = vmatmul.bf16.gmra.mxu0 %v2890
    %v2901 = vpop.f32.mrf.mxu0
    %v2902 = vadd.f32 0.0, %v2901
    %v2903 = vpop.f32.mrf.mxu0
    %2904 = vdwg.mxu0
    %v2905 = vpack.c.bf16 %v2902, %v2902
    %s2906 = smul.u32 4, 144
    %s2907 = smul.u32 %s2906, 1
    %s2908 = sshll.u32 %s2907, 4
    %2909 = dma.done [#allocation5], %s2908
    %v2910 = vld [vmem:[#allocation2] sm:$0xf]
    %v2911 = vld [vmem:[#allocation2 + $0x4] sm:$0xf]
    %v2912 = vld [vmem:[#allocation2 + $0x8] sm:$0xf]
    %v2913 = vld [vmem:[#allocation2 + $0xc] sm:$0xf]
    %v2914 = vld [vmem:[#allocation2 + $0x10] sm:$0xf]
    %v2915 = vld [vmem:[#allocation2 + $0x14] sm:$0xf]
    %v2916 = vld [vmem:[#allocation2 + $0x18] sm:$0xf]
    %v2917 = vld [vmem:[#allocation2 + $0x1c] sm:$0xf]
    %v2918 = vld [vmem:[#allocation2 + $0x20] sm:$0xf]
    %v2919 = vld [vmem:[#allocation2 + $0x24] sm:$0xf]
    %v2920 = vld [vmem:[#allocation2 + $0x28] sm:$0xf]
    %v2921 = vld [vmem:[#allocation2 + $0x2c] sm:$0xf]
    %v2922 = vld [vmem:[#allocation2 + $0x30] sm:$0xf]
    %v2923 = vld [vmem:[#allocation2 + $0x34] sm:$0xf]
    %v2924 = vld [vmem:[#allocation2 + $0x38] sm:$0xf]
    %v2925 = vld [vmem:[#allocation2 + $0x3c] sm:$0xf]
    %v2926 = vld [vmem:[#allocation2 + $0x40] sm:$0xf]
    %v2927 = vld [vmem:[#allocation2 + $0x44] sm:$0xf]
    %v2928 = vld [vmem:[#allocation2 + $0x48] sm:$0xf]
    %v2929 = vld [vmem:[#allocation2 + $0x4c] sm:$0xf]
    %v2930 = vld [vmem:[#allocation2 + $0x50] sm:$0xf]
    %v2931 = vld [vmem:[#allocation2 + $0x54] sm:$0xf]
    %v2932 = vld [vmem:[#allocation2 + $0x58] sm:$0xf]
    %v2933 = vld [vmem:[#allocation2 + $0x5c] sm:$0xf]
    %v2934 = vld [vmem:[#allocation2 + $0x60] sm:$0xf]
    %v2935 = vld [vmem:[#allocation2 + $0x64] sm:$0xf]
    %v2936 = vld [vmem:[#allocation2 + $0x68] sm:$0xf]
    %v2937 = vld [vmem:[#allocation2 + $0x6c] sm:$0xf]
    %v2938 = vld [vmem:[#allocation2 + $0x70] sm:$0xf]
    %v2939 = vld [vmem:[#allocation2 + $0x74] sm:$0xf]
    %v2940 = vld [vmem:[#allocation2 + $0x78] sm:$0xf]
    %v2941 = vld [vmem:[#allocation2 + $0x7c] sm:$0xf]
    %v2942 = vld [vmem:[#allocation2 + $0x80] sm:$0xf]
    %v2943 = vld [vmem:[#allocation2 + $0x84] sm:$0xf]
    %v2944 = vld [vmem:[#allocation2 + $0x88] sm:$0xf]
    %v2945 = vld [vmem:[#allocation2 + $0x8c] sm:$0xf]
    %v2946 = vld [vmem:[#allocation2 + $0x90] sm:$0xf]
    %v2947 = vld [vmem:[#allocation2 + $0x94] sm:$0xf]
    %v2948 = vld [vmem:[#allocation2 + $0x98] sm:$0xf]
    %v2949 = vld [vmem:[#allocation2 + $0x9c] sm:$0xf]
    %v2950 = vld [vmem:[#allocation2 + $0xa0] sm:$0xf]
    %v2951 = vld [vmem:[#allocation2 + $0xa4] sm:$0xf]
    %v2952 = vld [vmem:[#allocation2 + $0xa8] sm:$0xf]
    %v2953 = vld [vmem:[#allocation2 + $0xac] sm:$0xf]
    %v2954 = vld [vmem:[#allocation2 + $0xb0] sm:$0xf]
    %v2955 = vld [vmem:[#allocation2 + $0xb4] sm:$0xf]
    %v2956 = vld [vmem:[#allocation2 + $0xb8] sm:$0xf]
    %v2957 = vld [vmem:[#allocation2 + $0xbc] sm:$0xf]
    %v2958 = vld [vmem:[#allocation2 + $0xc0] sm:$0xf]
    %v2959 = vld [vmem:[#allocation2 + $0xc4] sm:$0xf]
    %v2960 = vld [vmem:[#allocation2 + $0xc8] sm:$0xf]
    %v2961 = vld [vmem:[#allocation2 + $0xcc] sm:$0xf]
    %v2962 = vld [vmem:[#allocation2 + $0xd0] sm:$0xf]
    %v2963 = vld [vmem:[#allocation2 + $0xd4] sm:$0xf]
    %v2964 = vld [vmem:[#allocation2 + $0xd8] sm:$0xf]
    %v2965 = vld [vmem:[#allocation2 + $0xdc] sm:$0xf]
    %v2966 = vld [vmem:[#allocation2 + $0xe0] sm:$0xf]
    %v2967 = vld [vmem:[#allocation2 + $0xe4] sm:$0xf]
    %v2968 = vld [vmem:[#allocation2 + $0xe8] sm:$0xf]
    %v2969 = vld [vmem:[#allocation2 + $0xec] sm:$0xf]
    %v2970 = vld [vmem:[#allocation2 + $0xf0] sm:$0xf]
    %v2971 = vld [vmem:[#allocation2 + $0xf4] sm:$0xf]
    %v2972 = vld [vmem:[#allocation2 + $0xf8] sm:$0xf]
    %v2973 = vld [vmem:[#allocation2 + $0xfc] sm:$0xf]
    %v2974 = vld [vmem:[#allocation2 + $0x100] sm:$0xf]
    %v2975 = vld [vmem:[#allocation2 + $0x104] sm:$0xf]
    %v2976 = vld [vmem:[#allocation2 + $0x108] sm:$0xf]
    %v2977 = vld [vmem:[#allocation2 + $0x10c] sm:$0xf]
    %v2978 = vld [vmem:[#allocation2 + $0x110] sm:$0xf]
    %v2979 = vld [vmem:[#allocation2 + $0x114] sm:$0xf]
    %v2980 = vld [vmem:[#allocation2 + $0x118] sm:$0xf]
    %v2981 = vld [vmem:[#allocation2 + $0x11c] sm:$0xf]
    %v2982 = vld [vmem:[#allocation2 + $0x120] sm:$0xf]
    %v2983 = vld [vmem:[#allocation2 + $0x124] sm:$0xf]
    %v2984 = vld [vmem:[#allocation2 + $0x128] sm:$0xf]
    %v2985 = vld [vmem:[#allocation2 + $0x12c] sm:$0xf]
    %v2986 = vld [vmem:[#allocation2 + $0x130] sm:$0xf]
    %v2987 = vld [vmem:[#allocation2 + $0x134] sm:$0xf]
    %v2988 = vld [vmem:[#allocation2 + $0x138] sm:$0xf]
    %v2989 = vld [vmem:[#allocation2 + $0x13c] sm:$0xf]
    %v2990 = vld [vmem:[#allocation2 + $0x140] sm:$0xf]
    %v2991 = vld [vmem:[#allocation2 + $0x144] sm:$0xf]
    %v2992 = vld [vmem:[#allocation2 + $0x148] sm:$0xf]
    %v2993 = vld [vmem:[#allocation2 + $0x14c] sm:$0xf]
    %v2994 = vld [vmem:[#allocation2 + $0x150] sm:$0xf]
    %v2995 = vld [vmem:[#allocation2 + $0x154] sm:$0xf]
    %v2996 = vld [vmem:[#allocation2 + $0x158] sm:$0xf]
    %v2997 = vld [vmem:[#allocation2 + $0x15c] sm:$0xf]
    %v2998 = vld [vmem:[#allocation2 + $0x160] sm:$0xf]
    %v2999 = vld [vmem:[#allocation2 + $0x164] sm:$0xf]
    %v3000 = vld [vmem:[#allocation2 + $0x168] sm:$0xf]
    %v3001 = vld [vmem:[#allocation2 + $0x16c] sm:$0xf]
    %v3002 = vld [vmem:[#allocation2 + $0x170] sm:$0xf]
    %v3003 = vld [vmem:[#allocation2 + $0x174] sm:$0xf]
    %v3004 = vld [vmem:[#allocation2 + $0x178] sm:$0xf]
    %v3005 = vld [vmem:[#allocation2 + $0x17c] sm:$0xf]
    %v3006 = vld [vmem:[#allocation2 + $0x180] sm:$0xf]
    %v3007 = vld [vmem:[#allocation2 + $0x184] sm:$0xf]
    %v3008 = vld [vmem:[#allocation2 + $0x188] sm:$0xf]
    %v3009 = vld [vmem:[#allocation2 + $0x18c] sm:$0xf]
    %v3010 = vld [vmem:[#allocation2 + $0x190] sm:$0xf]
    %v3011 = vld [vmem:[#allocation2 + $0x194] sm:$0xf]
    %v3012 = vld [vmem:[#allocation2 + $0x198] sm:$0xf]
    %v3013 = vld [vmem:[#allocation2 + $0x19c] sm:$0xf]
    %v3014 = vld [vmem:[#allocation2 + $0x1a0] sm:$0xf]
    %v3015 = vld [vmem:[#allocation2 + $0x1a4] sm:$0xf]
    %v3016 = vld [vmem:[#allocation2 + $0x1a8] sm:$0xf]
    %v3017 = vld [vmem:[#allocation2 + $0x1ac] sm:$0xf]
    %v3018 = vld [vmem:[#allocation2 + $0x1b0] sm:$0xf]
    %v3019 = vld [vmem:[#allocation2 + $0x1b4] sm:$0xf]
    %v3020 = vld [vmem:[#allocation2 + $0x1b8] sm:$0xf]
    %v3021 = vld [vmem:[#allocation2 + $0x1bc] sm:$0xf]
    %v3022 = vld [vmem:[#allocation2 + $0x1c0] sm:$0xf]
    %v3023 = vld [vmem:[#allocation2 + $0x1c4] sm:$0xf]
    %v3024 = vld [vmem:[#allocation2 + $0x1c8] sm:$0xf]
    %v3025 = vld [vmem:[#allocation2 + $0x1cc] sm:$0xf]
    %v3026 = vld [vmem:[#allocation2 + $0x1d0] sm:$0xf]
    %v3027 = vld [vmem:[#allocation2 + $0x1d4] sm:$0xf]
    %v3028 = vld [vmem:[#allocation2 + $0x1d8] sm:$0xf]
    %v3029 = vld [vmem:[#allocation2 + $0x1dc] sm:$0xf]
    %v3030 = vld [vmem:[#allocation2 + $0x1e0] sm:$0xf]
    %v3031 = vld [vmem:[#allocation2 + $0x1e4] sm:$0xf]
    %v3032 = vld [vmem:[#allocation2 + $0x1e8] sm:$0xf]
    %v3033 = vld [vmem:[#allocation2 + $0x1ec] sm:$0xf]
    %v3034 = vld [vmem:[#allocation2 + $0x1f0] sm:$0xf]
    %v3035 = vld [vmem:[#allocation2 + $0x1f4] sm:$0xf]
    %v3036 = vld [vmem:[#allocation2 + $0x1f8] sm:$0xf]
    %v3037 = vld [vmem:[#allocation2 + $0x1fc] sm:$0xf]
    %v3038 = vld [vmem:[#allocation2 + $0x200] sm:$0xf]
    %v3039 = vld [vmem:[#allocation2 + $0x204] sm:$0xf]
    %v3040 = vld [vmem:[#allocation2 + $0x208] sm:$0xf]
    %v3041 = vld [vmem:[#allocation2 + $0x20c] sm:$0xf]
    %v3042 = vld [vmem:[#allocation2 + $0x210] sm:$0xf]
    %v3043 = vld [vmem:[#allocation2 + $0x214] sm:$0xf]
    %v3044 = vld [vmem:[#allocation2 + $0x218] sm:$0xf]
    %v3045 = vld [vmem:[#allocation2 + $0x21c] sm:$0xf]
    %v3046 = vld [vmem:[#allocation2 + $0x220] sm:$0xf]
    %v3047 = vld [vmem:[#allocation2 + $0x224] sm:$0xf]
    %v3048 = vld [vmem:[#allocation2 + $0x228] sm:$0xf]
    %v3049 = vld [vmem:[#allocation2 + $0x22c] sm:$0xf]
    %v3050 = vld [vmem:[#allocation2 + $0x230] sm:$0xf]
    %v3051 = vld [vmem:[#allocation2 + $0x234] sm:$0xf]
    %v3052 = vld [vmem:[#allocation2 + $0x238] sm:$0xf]
    %v3053 = vld [vmem:[#allocation2 + $0x23c] sm:$0xf]
    %v3054 = vld [vmem:[%s8] sm:$0x1]
    %v3056 = vperm.slane %v3054, 0
    %v3202 = vunpack.c.l.b16 %v2910
    %v3203 = vunpack.c.l.b16 %v2911
    %v3204 = vunpack.c.l.b16 %v2912
    %v3205 = vunpack.c.l.b16 %v2913
    %v3206 = vunpack.c.l.b16 %v2914
    %v3207 = vunpack.c.l.b16 %v2915
    %v3208 = vunpack.c.l.b16 %v2916
    %v3209 = vunpack.c.l.b16 %v2917
    %v3210 = vunpack.c.l.b16 %v2918
    %v3211 = vunpack.c.l.b16 %v2919
    %v3212 = vunpack.c.l.b16 %v2920
    %v3213 = vunpack.c.l.b16 %v2921
    %v3214 = vunpack.c.l.b16 %v2922
    %v3215 = vunpack.c.l.b16 %v2923
    %v3216 = vunpack.c.l.b16 %v2924
    %v3217 = vunpack.c.l.b16 %v2925
    %v3218 = vunpack.c.l.b16 %v2926
    %v3219 = vunpack.c.l.b16 %v2927
    %v3220 = vunpack.c.l.b16 %v2928
    %v3221 = vunpack.c.l.b16 %v2929
    %v3222 = vunpack.c.l.b16 %v2930
    %v3223 = vunpack.c.l.b16 %v2931
    %v3224 = vunpack.c.l.b16 %v2932
    %v3225 = vunpack.c.l.b16 %v2933
    %v3226 = vunpack.c.l.b16 %v2934
    %v3227 = vunpack.c.l.b16 %v2935
    %v3228 = vunpack.c.l.b16 %v2936
    %v3229 = vunpack.c.l.b16 %v2937
    %v3230 = vunpack.c.l.b16 %v2938
    %v3231 = vunpack.c.l.b16 %v2939
    %v3232 = vunpack.c.l.b16 %v2940
    %v3233 = vunpack.c.l.b16 %v2941
    %v3234 = vunpack.c.l.b16 %v2942
    %v3235 = vunpack.c.l.b16 %v2943
    %v3236 = vunpack.c.l.b16 %v2944
    %v3237 = vunpack.c.l.b16 %v2945
    %v3238 = vunpack.c.l.b16 %v2946
    %v3239 = vunpack.c.l.b16 %v2947
    %v3240 = vunpack.c.l.b16 %v2948
    %v3241 = vunpack.c.l.b16 %v2949
    %v3242 = vunpack.c.l.b16 %v2950
    %v3243 = vunpack.c.l.b16 %v2951
    %v3244 = vunpack.c.l.b16 %v2952
    %v3245 = vunpack.c.l.b16 %v2953
    %v3246 = vunpack.c.l.b16 %v2954
    %v3247 = vunpack.c.l.b16 %v2955
    %v3248 = vunpack.c.l.b16 %v2956
    %v3249 = vunpack.c.l.b16 %v2957
    %v3250 = vunpack.c.l.b16 %v2958
    %v3251 = vunpack.c.l.b16 %v2959
    %v3252 = vunpack.c.l.b16 %v2960
    %v3253 = vunpack.c.l.b16 %v2961
    %v3254 = vunpack.c.l.b16 %v2962
    %v3255 = vunpack.c.l.b16 %v2963
    %v3256 = vunpack.c.l.b16 %v2964
    %v3257 = vunpack.c.l.b16 %v2965
    %v3258 = vunpack.c.l.b16 %v2966
    %v3259 = vunpack.c.l.b16 %v2967
    %v3260 = vunpack.c.l.b16 %v2968
    %v3261 = vunpack.c.l.b16 %v2969
    %v3262 = vunpack.c.l.b16 %v2970
    %v3263 = vunpack.c.l.b16 %v2971
    %v3264 = vunpack.c.l.b16 %v2972
    %v3265 = vunpack.c.l.b16 %v2973
    %v3266 = vunpack.c.l.b16 %v2974
    %v3267 = vunpack.c.l.b16 %v2975
    %v3268 = vunpack.c.l.b16 %v2976
    %v3269 = vunpack.c.l.b16 %v2977
    %v3270 = vunpack.c.l.b16 %v2978
    %v3271 = vunpack.c.l.b16 %v2979
    %v3272 = vunpack.c.l.b16 %v2980
    %v3273 = vunpack.c.l.b16 %v2981
    %v3274 = vunpack.c.l.b16 %v2982
    %v3275 = vunpack.c.l.b16 %v2983
    %v3276 = vunpack.c.l.b16 %v2984
    %v3277 = vunpack.c.l.b16 %v2985
    %v3278 = vunpack.c.l.b16 %v2986
    %v3279 = vunpack.c.l.b16 %v2987
    %v3280 = vunpack.c.l.b16 %v2988
    %v3281 = vunpack.c.l.b16 %v2989
    %v3282 = vunpack.c.l.b16 %v2990
    %v3283 = vunpack.c.l.b16 %v2991
    %v3284 = vunpack.c.l.b16 %v2992
    %v3285 = vunpack.c.l.b16 %v2993
    %v3286 = vunpack.c.l.b16 %v2994
    %v3287 = vunpack.c.l.b16 %v2995
    %v3288 = vunpack.c.l.b16 %v2996
    %v3289 = vunpack.c.l.b16 %v2997
    %v3290 = vunpack.c.l.b16 %v2998
    %v3291 = vunpack.c.l.b16 %v2999
    %v3292 = vunpack.c.l.b16 %v3000
    %v3293 = vunpack.c.l.b16 %v3001
    %v3294 = vunpack.c.l.b16 %v3002
    %v3295 = vunpack.c.l.b16 %v3003
    %v3296 = vunpack.c.l.b16 %v3004
    %v3297 = vunpack.c.l.b16 %v3005
    %v3298 = vunpack.c.l.b16 %v3006
    %v3299 = vunpack.c.l.b16 %v3007
    %v3300 = vunpack.c.l.b16 %v3008
    %v3301 = vunpack.c.l.b16 %v3009
    %v3302 = vunpack.c.l.b16 %v3010
    %v3303 = vunpack.c.l.b16 %v3011
    %v3304 = vunpack.c.l.b16 %v3012
    %v3305 = vunpack.c.l.b16 %v3013
    %v3306 = vunpack.c.l.b16 %v3014
    %v3307 = vunpack.c.l.b16 %v3015
    %v3308 = vunpack.c.l.b16 %v3016
    %v3309 = vunpack.c.l.b16 %v3017
    %v3310 = vunpack.c.l.b16 %v3018
    %v3311 = vunpack.c.l.b16 %v3019
    %v3312 = vunpack.c.l.b16 %v3020
    %v3313 = vunpack.c.l.b16 %v3021
    %v3314 = vunpack.c.l.b16 %v3022
    %v3315 = vunpack.c.l.b16 %v3023
    %v3316 = vunpack.c.l.b16 %v3024
    %v3317 = vunpack.c.l.b16 %v3025
    %v3318 = vunpack.c.l.b16 %v3026
    %v3319 = vunpack.c.l.b16 %v3027
    %v3320 = vunpack.c.l.b16 %v3028
    %v3321 = vunpack.c.l.b16 %v3029
    %v3322 = vunpack.c.l.b16 %v3030
    %v3323 = vunpack.c.l.b16 %v3031
    %v3324 = vunpack.c.l.b16 %v3032
    %v3325 = vunpack.c.l.b16 %v3033
    %v3326 = vunpack.c.l.b16 %v3034
    %v3327 = vunpack.c.l.b16 %v3035
    %v3328 = vunpack.c.l.b16 %v3036
    %v3329 = vunpack.c.l.b16 %v3037
    %v3330 = vunpack.c.l.b16 %v3038
    %v3331 = vunpack.c.l.b16 %v3039
    %v3332 = vunpack.c.l.b16 %v3040
    %v3333 = vunpack.c.l.b16 %v3041
    %v3334 = vunpack.c.l.b16 %v3042
    %v3335 = vunpack.c.l.b16 %v3043
    %v3336 = vunpack.c.l.b16 %v3044
    %v3337 = vunpack.c.l.b16 %v3045
    %v3338 = vunpack.c.l.b16 %v3046
    %v3339 = vunpack.c.l.b16 %v3047
    %v3340 = vunpack.c.l.b16 %v3048
    %v3341 = vunpack.c.l.b16 %v3049
    %v3342 = vunpack.c.l.b16 %v3050
    %v3343 = vunpack.c.l.b16 %v3051
    %v3344 = vunpack.c.l.b16 %v3052
    %v3345 = vunpack.c.l.b16 %v3053
    %v3346 = vpack.c.b16 %v3203, %v3202
    %v3347 = vpack.c.b16 %v3205, %v3204
    %v3348 = vpack.c.b16 %v3207, %v3206
    %v3349 = vpack.c.b16 %v3209, %v3208
    %v3350 = vpack.c.b16 %v3211, %v3210
    %v3351 = vpack.c.b16 %v3213, %v3212
    %v3352 = vpack.c.b16 %v3215, %v3214
    %v3353 = vpack.c.b16 %v3217, %v3216
    %v3354 = vpack.c.b16 %v3219, %v3218
    %v3355 = vpack.c.b16 %v3221, %v3220
    %v3356 = vpack.c.b16 %v3223, %v3222
    %v3357 = vpack.c.b16 %v3225, %v3224
    %v3358 = vpack.c.b16 %v3227, %v3226
    %v3359 = vpack.c.b16 %v3229, %v3228
    %v3360 = vpack.c.b16 %v3231, %v3230
    %v3361 = vpack.c.b16 %v3233, %v3232
    %v3362 = vpack.c.b16 %v3235, %v3234
    %v3363 = vpack.c.b16 %v3237, %v3236
    %v3364 = vpack.c.b16 %v3239, %v3238
    %v3365 = vpack.c.b16 %v3241, %v3240
    %v3366 = vpack.c.b16 %v3243, %v3242
    %v3367 = vpack.c.b16 %v3245, %v3244
    %v3368 = vpack.c.b16 %v3247, %v3246
    %v3369 = vpack.c.b16 %v3249, %v3248
    %v3370 = vpack.c.b16 %v3251, %v3250
    %v3371 = vpack.c.b16 %v3253, %v3252
    %v3372 = vpack.c.b16 %v3255, %v3254
    %v3373 = vpack.c.b16 %v3257, %v3256
    %v3374 = vpack.c.b16 %v3259, %v3258
    %v3375 = vpack.c.b16 %v3261, %v3260
    %v3376 = vpack.c.b16 %v3263, %v3262
    %v3377 = vpack.c.b16 %v3265, %v3264
    %v3378 = vpack.c.b16 %v3267, %v3266
    %v3379 = vpack.c.b16 %v3269, %v3268
    %v3380 = vpack.c.b16 %v3271, %v3270
    %v3381 = vpack.c.b16 %v3273, %v3272
    %v3382 = vpack.c.b16 %v3275, %v3274
    %v3383 = vpack.c.b16 %v3277, %v3276
    %v3384 = vpack.c.b16 %v3279, %v3278
    %v3385 = vpack.c.b16 %v3281, %v3280
    %v3386 = vpack.c.b16 %v3283, %v3282
    %v3387 = vpack.c.b16 %v3285, %v3284
    %v3388 = vpack.c.b16 %v3287, %v3286
    %v3389 = vpack.c.b16 %v3289, %v3288
    %v3390 = vpack.c.b16 %v3291, %v3290
    %v3391 = vpack.c.b16 %v3293, %v3292
    %v3392 = vpack.c.b16 %v3295, %v3294
    %v3393 = vpack.c.b16 %v3297, %v3296
    %v3394 = vpack.c.b16 %v3299, %v3298
    %v3395 = vpack.c.b16 %v3301, %v3300
    %v3396 = vpack.c.b16 %v3303, %v3302
    %v3397 = vpack.c.b16 %v3305, %v3304
    %v3398 = vpack.c.b16 %v3307, %v3306
    %v3399 = vpack.c.b16 %v3309, %v3308
    %v3400 = vpack.c.b16 %v3311, %v3310
    %v3401 = vpack.c.b16 %v3313, %v3312
    %v3402 = vpack.c.b16 %v3315, %v3314
    %v3403 = vpack.c.b16 %v3317, %v3316
    %v3404 = vpack.c.b16 %v3319, %v3318
    %v3405 = vpack.c.b16 %v3321, %v3320
    %v3406 = vpack.c.b16 %v3323, %v3322
    %v3407 = vpack.c.b16 %v3325, %v3324
    %v3408 = vpack.c.b16 %v3327, %v3326
    %v3409 = vpack.c.b16 %v3329, %v3328
    %v3410 = vpack.c.b16 %v3331, %v3330
    %v3411 = vpack.c.b16 %v3333, %v3332
    %v3412 = vpack.c.b16 %v3335, %v3334
    %v3413 = vpack.c.b16 %v3337, %v3336
    %v3414 = vpack.c.b16 %v3339, %v3338
    %v3415 = vpack.c.b16 %v3341, %v3340
    %v3416 = vpack.c.b16 %v3343, %v3342
    %v3417 = vpack.c.b16 %v3345, %v3344
    %3490 = vmatpush.bf16.msra.mxu0 %v3353
    %3491 = vmatpush.bf16.msra.mxu0 %v3352
    %3492 = vmatpush.bf16.msra.mxu0 %v3351
    %3493 = vmatpush.bf16.msra.mxu0 %v3350
    %3494 = vmatpush.bf16.msra.mxu0 %v3349
    %3495 = vmatpush.bf16.msra.mxu0 %v3348
    %3496 = vmatpush.bf16.msra.mxu0 %v3347
    %3497 = vmatpush.bf16.msra.mxu0 %v3346
    %3498 = vmatmul.bf16.gmra.mxu0 %v2737
    %v3499 = vpop.f32.mrf.mxu0
    %v3500 = vadd.f32 %v3056, %v3499
    %v3501 = vpop.f32.mrf.mxu0
    %3502 = vdwg.mxu0
    %3503 = vmatpush.bf16.msra.mxu0 %v3361
    %3504 = vmatpush.bf16.msra.mxu0 %v3360
    %3505 = vmatpush.bf16.msra.mxu0 %v3359
    %3506 = vmatpush.bf16.msra.mxu0 %v3358
    %3507 = vmatpush.bf16.msra.mxu0 %v3357
    %3508 = vmatpush.bf16.msra.mxu0 %v3356
    %3509 = vmatpush.bf16.msra.mxu0 %v3355
    %3510 = vmatpush.bf16.msra.mxu0 %v3354
    %3511 = vmatmul.bf16.gmra.mxu0 %v2759
    %v3512 = vpop.f32.mrf.mxu0
    %v3513 = vadd.f32 %v3500, %v3512
    %v3514 = vpop.f32.mrf.mxu0
    %3515 = vdwg.mxu0
    %3516 = vmatpush.bf16.msra.mxu0 %v3369
    %3517 = vmatpush.bf16.msra.mxu0 %v3368
    %3518 = vmatpush.bf16.msra.mxu0 %v3367
    %3519 = vmatpush.bf16.msra.mxu0 %v3366
    %3520 = vmatpush.bf16.msra.mxu0 %v3365
    %3521 = vmatpush.bf16.msra.mxu0 %v3364
    %3522 = vmatpush.bf16.msra.mxu0 %v3363
    %3523 = vmatpush.bf16.msra.mxu0 %v3362
    %3524 = vmatmul.bf16.gmra.mxu0 %v2781
    %v3525 = vpop.f32.mrf.mxu0
    %v3526 = vadd.f32 %v3513, %v3525
    %v3527 = vpop.f32.mrf.mxu0
    %3528 = vdwg.mxu0
    %3529 = vmatpush.bf16.msra.mxu0 %v3377
    %3530 = vmatpush.bf16.msra.mxu0 %v3376
    %3531 = vmatpush.bf16.msra.mxu0 %v3375
    %3532 = vmatpush.bf16.msra.mxu0 %v3374
    %3533 = vmatpush.bf16.msra.mxu0 %v3373
    %3534 = vmatpush.bf16.msra.mxu0 %v3372
    %3535 = vmatpush.bf16.msra.mxu0 %v3371
    %3536 = vmatpush.bf16.msra.mxu0 %v3370
    %3537 = vmatmul.bf16.gmra.mxu0 %v2803
    %v3538 = vpop.f32.mrf.mxu0
    %v3539 = vadd.f32 %v3526, %v3538
    %v3540 = vpop.f32.mrf.mxu0
    %3541 = vdwg.mxu0
    %3542 = vmatpush.bf16.msra.mxu0 %v3385
    %3543 = vmatpush.bf16.msra.mxu0 %v3384
    %3544 = vmatpush.bf16.msra.mxu0 %v3383
    %3545 = vmatpush.bf16.msra.mxu0 %v3382
    %3546 = vmatpush.bf16.msra.mxu0 %v3381
    %3547 = vmatpush.bf16.msra.mxu0 %v3380
    %3548 = vmatpush.bf16.msra.mxu0 %v3379
    %3549 = vmatpush.bf16.msra.mxu0 %v3378
    %3550 = vmatmul.bf16.gmra.mxu0 %v2821
    %v3551 = vpop.f32.mrf.mxu0
    %v3552 = vadd.f32 %v3539, %v3551
    %v3553 = vpop.f32.mrf.mxu0
    %3554 = vdwg.mxu0
    %3555 = vmatpush.bf16.msra.mxu0 %v3393
    %3556 = vmatpush.bf16.msra.mxu0 %v3392
    %3557 = vmatpush.bf16.msra.mxu0 %v3391
    %3558 = vmatpush.bf16.msra.mxu0 %v3390
    %3559 = vmatpush.bf16.msra.mxu0 %v3389
    %3560 = vmatpush.bf16.msra.mxu0 %v3388
    %3561 = vmatpush.bf16.msra.mxu0 %v3387
    %3562 = vmatpush.bf16.msra.mxu0 %v3386
    %3563 = vmatmul.bf16.gmra.mxu0 %v2843
    %v3564 = vpop.f32.mrf.mxu0
    %v3565 = vadd.f32 %v3552, %v3564
    %v3566 = vpop.f32.mrf.mxu0
    %3567 = vdwg.mxu0
    %3568 = vmatpush.bf16.msra.mxu0 %v3401
    %3569 = vmatpush.bf16.msra.mxu0 %v3400
    %3570 = vmatpush.bf16.msra.mxu0 %v3399
    %3571 = vmatpush.bf16.msra.mxu0 %v3398
    %3572 = vmatpush.bf16.msra.mxu0 %v3397
    %3573 = vmatpush.bf16.msra.mxu0 %v3396
    %3574 = vmatpush.bf16.msra.mxu0 %v3395
    %3575 = vmatpush.bf16.msra.mxu0 %v3394
    %3576 = vmatmul.bf16.gmra.mxu0 %v2865
    %v3577 = vpop.f32.mrf.mxu0
    %v3578 = vadd.f32 %v3565, %v3577
    %v3579 = vpop.f32.mrf.mxu0
    %3580 = vdwg.mxu0
    %3581 = vmatpush.bf16.msra.mxu0 %v3409
    %3582 = vmatpush.bf16.msra.mxu0 %v3408
    %3583 = vmatpush.bf16.msra.mxu0 %v3407
    %3584 = vmatpush.bf16.msra.mxu0 %v3406
    %3585 = vmatpush.bf16.msra.mxu0 %v3405
    %3586 = vmatpush.bf16.msra.mxu0 %v3404
    %3587 = vmatpush.bf16.msra.mxu0 %v3403
    %3588 = vmatpush.bf16.msra.mxu0 %v3402
    %3589 = vmatmul.bf16.gmra.mxu0 %v2887
    %v3590 = vpop.f32.mrf.mxu0
    %v3591 = vadd.f32 %v3578, %v3590
    %v3592 = vpop.f32.mrf.mxu0
    %3593 = vdwg.mxu0
    %3594 = vmatpush.bf16.msra.mxu0 %v3417
    %3595 = vmatpush.bf16.msra.mxu0 %v3416
    %3596 = vmatpush.bf16.msra.mxu0 %v3415
    %3597 = vmatpush.bf16.msra.mxu0 %v3414
    %3598 = vmatpush.bf16.msra.mxu0 %v3413
    %3599 = vmatpush.bf16.msra.mxu0 %v3412
    %3600 = vmatpush.bf16.msra.mxu0 %v3411
    %3601 = vmatpush.bf16.msra.mxu0 %v3410
    %3602 = vmatmul.bf16.gmra.mxu0 %v2905
    %v3603 = vpop.f32.mrf.mxu0
    %v3604 = vadd.f32 %v3591, %v3603
    %v3605 = vpop.f32.mrf.mxu0
    %3606 = vdwg.mxu0
    %v3607 = vmax.f32 %v3604, 0.0
    %v3608 = vpack.c.bf16 %v3607, %v3607
    %s3609 = smul.u32 4, 16
    %s3610 = smul.u32 %s3609, 7
    %s3611 = sshll.u32 %s3610, 4
    %3612 = dma.done %s203, %s3611
    %v3613 = vld [vmem:[#allocation3] sm:$0xff]
    %v3614 = vld [vmem:[#allocation3 + $0x8] sm:$0xff]
    %v3615 = vld [vmem:[#allocation3 + $0x10] sm:$0xff]
    %v3616 = vld [vmem:[#allocation3 + $0x18] sm:$0xf]
    %v3617 = vld [vmem:[#allocation3 + $0x1c] sm:$0xff]
    %v3618 = vld [vmem:[#allocation3 + $0x24] sm:$0xff]
    %v3619 = vld [vmem:[#allocation3 + $0x2c] sm:$0xff]
    %v3620 = vld [vmem:[#allocation3 + $0x34] sm:$0xf]
    %v3621 = vld [vmem:[#allocation3 + $0x38] sm:$0xff]
    %v3622 = vld [vmem:[#allocation3 + $0x40] sm:$0xff]
    %v3623 = vld [vmem:[#allocation3 + $0x48] sm:$0xff]
    %v3624 = vld [vmem:[#allocation3 + $0x50] sm:$0xf]
    %v3625 = vld [vmem:[#allocation3 + $0x54] sm:$0xff]
    %v3626 = vld [vmem:[#allocation3 + $0x5c] sm:$0xff]
    %v3627 = vld [vmem:[#allocation3 + $0x64] sm:$0xff]
    %v3628 = vld [vmem:[#allocation3 + $0x6c] sm:$0xf]
    %v3629 = vld [vmem:[#allocation3 + $0x70] sm:$0xff]
    %v3630 = vld [vmem:[#allocation3 + $0x78] sm:$0xff]
    %v3631 = vld [vmem:[#allocation3 + $0x80] sm:$0xff]
    %v3632 = vld [vmem:[#allocation3 + $0x88] sm:$0xf]
    %v3633 = vld [vmem:[#allocation3 + $0x8c] sm:$0xff]
    %v3634 = vld [vmem:[#allocation3 + $0x94] sm:$0xff]
    %v3635 = vld [vmem:[#allocation3 + $0x9c] sm:$0xff]
    %v3636 = vld [vmem:[#allocation3 + $0xa4] sm:$0xf]
    %v3637 = vld [vmem:[#allocation3 + $0xa8] sm:$0xff]
    %v3638 = vld [vmem:[#allocation3 + $0xb0] sm:$0xff]
    %v3639 = vld [vmem:[#allocation3 + $0xb8] sm:$0xff]
    %v3640 = vld [vmem:[#allocation3 + $0xc0] sm:$0xf]
    %v3641 = vld [vmem:[#allocation3 + $0xc4] sm:$0xff]
    %v3642 = vld [vmem:[#allocation3 + $0xcc] sm:$0xff]
    %v3643 = vld [vmem:[#allocation3 + $0xd4] sm:$0xff]
    %v3644 = vld [vmem:[#allocation3 + $0xdc] sm:$0xf]
    %v3645 = vld [vmem:[#allocation3 + $0xe0] sm:$0xff]
    %v3646 = vld [vmem:[#allocation3 + $0xe8] sm:$0xff]
    %v3647 = vld [vmem:[#allocation3 + $0xf0] sm:$0xff]
    %v3648 = vld [vmem:[#allocation3 + $0xf8] sm:$0xf]
    %v3649 = vld [vmem:[#allocation3 + $0xfc] sm:$0xff]
    %v3650 = vld [vmem:[#allocation3 + $0x104] sm:$0xff]
    %v3651 = vld [vmem:[#allocation3 + $0x10c] sm:$0xff]
    %v3652 = vld [vmem:[#allocation3 + $0x114] sm:$0xf]
    %v3653 = vld [vmem:[#allocation3 + $0x118] sm:$0xff]
    %v3654 = vld [vmem:[#allocation3 + $0x120] sm:$0xff]
    %v3655 = vld [vmem:[#allocation3 + $0x128] sm:$0xff]
    %v3656 = vld [vmem:[#allocation3 + $0x130] sm:$0xf]
    %v3657 = vld [vmem:[#allocation3 + $0x134] sm:$0xff]
    %v3658 = vld [vmem:[#allocation3 + $0x13c] sm:$0xff]
    %v3659 = vld [vmem:[#allocation3 + $0x144] sm:$0xff]
    %v3660 = vld [vmem:[#allocation3 + $0x14c] sm:$0xf]
    %v3661 = vld [vmem:[#allocation3 + $0x150] sm:$0xff]
    %v3662 = vld [vmem:[#allocation3 + $0x158] sm:$0xff]
    %v3663 = vld [vmem:[#allocation3 + $0x160] sm:$0xff]
    %v3664 = vld [vmem:[#allocation3 + $0x168] sm:$0xf]
    %v3665 = vld [vmem:[#allocation3 + $0x16c] sm:$0xff]
    %v3666 = vld [vmem:[#allocation3 + $0x174] sm:$0xff]
    %v3667 = vld [vmem:[#allocation3 + $0x17c] sm:$0xff]
    %v3668 = vld [vmem:[#allocation3 + $0x184] sm:$0xf]
    %v3669 = vld [vmem:[#allocation3 + $0x188] sm:$0xff]
    %v3670 = vld [vmem:[#allocation3 + $0x190] sm:$0xff]
    %v3671 = vld [vmem:[#allocation3 + $0x198] sm:$0xff]
    %v3672 = vld [vmem:[#allocation3 + $0x1a0] sm:$0xf]
    %v3673 = vld [vmem:[#allocation3 + $0x1a4] sm:$0xff]
    %v3674 = vld [vmem:[#allocation3 + $0x1ac] sm:$0xff]
    %v3675 = vld [vmem:[#allocation3 + $0x1b4] sm:$0xff]
    %v3676 = vld [vmem:[#allocation3 + $0x1bc] sm:$0xf]
    %v3677 = vld [vmem:[%s11] sm:$0xff]
    %v3679 = vperm.slane %v3677, 0
    %v3680 = vperm.slane %v3677, 1
    %v3681 = vperm.slane %v3677, 2
    %v3682 = vperm.slane %v3677, 3
    %v3683 = vperm.slane %v3677, 4
    %v3684 = vperm.slane %v3677, 5
    %v3685 = vperm.slane %v3677, 6
    %v3757 = vunpack.c.l.b16 %v3613
    %v3758 = vunpack.c.h.b16 %v3613
    %v3759 = vunpack.c.l.b16 %v3614
    %v3760 = vunpack.c.h.b16 %v3614
    %v3761 = vunpack.c.l.b16 %v3615
    %v3762 = vunpack.c.h.b16 %v3615
    %v3763 = vunpack.c.l.b16 %v3616
    %v3764 = vunpack.c.l.b16 %v3617
    %v3765 = vunpack.c.h.b16 %v3617
    %v3766 = vunpack.c.l.b16 %v3618
    %v3767 = vunpack.c.h.b16 %v3618
    %v3768 = vunpack.c.l.b16 %v3619
    %v3769 = vunpack.c.h.b16 %v3619
    %v3770 = vunpack.c.l.b16 %v3620
    %v3771 = vunpack.c.l.b16 %v3621
    %v3772 = vunpack.c.h.b16 %v3621
    %v3773 = vunpack.c.l.b16 %v3622
    %v3774 = vunpack.c.h.b16 %v3622
    %v3775 = vunpack.c.l.b16 %v3623
    %v3776 = vunpack.c.h.b16 %v3623
    %v3777 = vunpack.c.l.b16 %v3624
    %v3778 = vunpack.c.l.b16 %v3625
    %v3779 = vunpack.c.h.b16 %v3625
    %v3780 = vunpack.c.l.b16 %v3626
    %v3781 = vunpack.c.h.b16 %v3626
    %v3782 = vunpack.c.l.b16 %v3627
    %v3783 = vunpack.c.h.b16 %v3627
    %v3784 = vunpack.c.l.b16 %v3628
    %v3785 = vunpack.c.l.b16 %v3629
    %v3786 = vunpack.c.h.b16 %v3629
    %v3787 = vunpack.c.l.b16 %v3630
    %v3788 = vunpack.c.h.b16 %v3630
    %v3789 = vunpack.c.l.b16 %v3631
    %v3790 = vunpack.c.h.b16 %v3631
    %v3791 = vunpack.c.l.b16 %v3632
    %v3792 = vunpack.c.l.b16 %v3633
    %v3793 = vunpack.c.h.b16 %v3633
    %v3794 = vunpack.c.l.b16 %v3634
    %v3795 = vunpack.c.h.b16 %v3634
    %v3796 = vunpack.c.l.b16 %v3635
    %v3797 = vunpack.c.h.b16 %v3635
    %v3798 = vunpack.c.l.b16 %v3636
    %v3799 = vunpack.c.l.b16 %v3637
    %v3800 = vunpack.c.h.b16 %v3637
    %v3801 = vunpack.c.l.b16 %v3638
    %v3802 = vunpack.c.h.b16 %v3638
    %v3803 = vunpack.c.l.b16 %v3639
    %v3804 = vunpack.c.h.b16 %v3639
    %v3805 = vunpack.c.l.b16 %v3640
    %v3806 = vunpack.c.l.b16 %v3641
    %v3807 = vunpack.c.h.b16 %v3641
    %v3808 = vunpack.c.l.b16 %v3642
    %v3809 = vunpack.c.h.b16 %v3642
    %v3810 = vunpack.c.l.b16 %v3643
    %v3811 = vunpack.c.h.b16 %v3643
    %v3812 = vunpack.c.l.b16 %v3644
    %v3813 = vunpack.c.l.b16 %v3645
    %v3814 = vunpack.c.h.b16 %v3645
    %v3815 = vunpack.c.l.b16 %v3646
    %v3816 = vunpack.c.h.b16 %v3646
    %v3817 = vunpack.c.l.b16 %v3647
    %v3818 = vunpack.c.h.b16 %v3647
    %v3819 = vunpack.c.l.b16 %v3648
    %v3820 = vunpack.c.l.b16 %v3649
    %v3821 = vunpack.c.h.b16 %v3649
    %v3822 = vunpack.c.l.b16 %v3650
    %v3823 = vunpack.c.h.b16 %v3650
    %v3824 = vunpack.c.l.b16 %v3651
    %v3825 = vunpack.c.h.b16 %v3651
    %v3826 = vunpack.c.l.b16 %v3652
    %v3827 = vunpack.c.l.b16 %v3653
    %v3828 = vunpack.c.h.b16 %v3653
    %v3829 = vunpack.c.l.b16 %v3654
    %v3830 = vunpack.c.h.b16 %v3654
    %v3831 = vunpack.c.l.b16 %v3655
    %v3832 = vunpack.c.h.b16 %v3655
    %v3833 = vunpack.c.l.b16 %v3656
    %v3834 = vunpack.c.l.b16 %v3657
    %v3835 = vunpack.c.h.b16 %v3657
    %v3836 = vunpack.c.l.b16 %v3658
    %v3837 = vunpack.c.h.b16 %v3658
    %v3838 = vunpack.c.l.b16 %v3659
    %v3839 = vunpack.c.h.b16 %v3659
    %v3840 = vunpack.c.l.b16 %v3660
    %v3841 = vunpack.c.l.b16 %v3661
    %v3842 = vunpack.c.h.b16 %v3661
    %v3843 = vunpack.c.l.b16 %v3662
    %v3844 = vunpack.c.h.b16 %v3662
    %v3845 = vunpack.c.l.b16 %v3663
    %v3846 = vunpack.c.h.b16 %v3663
    %v3847 = vunpack.c.l.b16 %v3664
    %v3848 = vunpack.c.l.b16 %v3665
    %v3849 = vunpack.c.h.b16 %v3665
    %v3850 = vunpack.c.l.b16 %v3666
    %v3851 = vunpack.c.h.b16 %v3666
    %v3852 = vunpack.c.l.b16 %v3667
    %v3853 = vunpack.c.h.b16 %v3667
    %v3854 = vunpack.c.l.b16 %v3668
    %v3855 = vunpack.c.l.b16 %v3669
    %v3856 = vunpack.c.h.b16 %v3669
    %v3857 = vunpack.c.l.b16 %v3670
    %v3858 = vunpack.c.h.b16 %v3670
    %v3859 = vunpack.c.l.b16 %v3671
    %v3860 = vunpack.c.h.b16 %v3671
    %v3861 = vunpack.c.l.b16 %v3672
    %v3862 = vunpack.c.l.b16 %v3673
    %v3863 = vunpack.c.h.b16 %v3673
    %v3864 = vunpack.c.l.b16 %v3674
    %v3865 = vunpack.c.h.b16 %v3674
    %v3866 = vunpack.c.l.b16 %v3675
    %v3867 = vunpack.c.h.b16 %v3675
    %v3868 = vunpack.c.l.b16 %v3676
    %v3869 = vpack.c.b16 %v3764, %v3757
    %v3870 = vpack.c.b16 %v3765, %v3758
    %v3871 = vpack.c.b16 %v3766, %v3759
    %v3872 = vpack.c.b16 %v3767, %v3760
    %v3873 = vpack.c.b16 %v3768, %v3761
    %v3874 = vpack.c.b16 %v3769, %v3762
    %v3875 = vpack.c.b16 %v3770, %v3763
    %v3876 = vpack.c.b16 %v3778, %v3771
    %v3877 = vpack.c.b16 %v3779, %v3772
    %v3878 = vpack.c.b16 %v3780, %v3773
    %v3879 = vpack.c.b16 %v3781, %v3774
    %v3880 = vpack.c.b16 %v3782, %v3775
    %v3881 = vpack.c.b16 %v3783, %v3776
    %v3882 = vpack.c.b16 %v3784, %v3777
    %v3883 = vpack.c.b16 %v3792, %v3785
    %v3884 = vpack.c.b16 %v3793, %v3786
    %v3885 = vpack.c.b16 %v3794, %v3787
    %v3886 = vpack.c.b16 %v3795, %v3788
    %v3887 = vpack.c.b16 %v3796, %v3789
    %v3888 = vpack.c.b16 %v3797, %v3790
    %v3889 = vpack.c.b16 %v3798, %v3791
    %v3890 = vpack.c.b16 %v3806, %v3799
    %v3891 = vpack.c.b16 %v3807, %v3800
    %v3892 = vpack.c.b16 %v3808, %v3801
    %v3893 = vpack.c.b16 %v3809, %v3802
    %v3894 = vpack.c.b16 %v3810, %v3803
    %v3895 = vpack.c.b16 %v3811, %v3804
    %v3896 = vpack.c.b16 %v3812, %v3805
    %v3897 = vpack.c.b16 %v3820, %v3813
    %v3898 = vpack.c.b16 %v3821, %v3814
    %v3899 = vpack.c.b16 %v3822, %v3815
    %v3900 = vpack.c.b16 %v3823, %v3816
    %v3901 = vpack.c.b16 %v3824, %v3817
    %v3902 = vpack.c.b16 %v3825, %v3818
    %v3903 = vpack.c.b16 %v3826, %v3819
    %v3904 = vpack.c.b16 %v3834, %v3827
    %v3905 = vpack.c.b16 %v3835, %v3828
    %v3906 = vpack.c.b16 %v3836, %v3829
    %v3907 = vpack.c.b16 %v3837, %v3830
    %v3908 = vpack.c.b16 %v3838, %v3831
    %v3909 = vpack.c.b16 %v3839, %v3832
    %v3910 = vpack.c.b16 %v3840, %v3833
    %v3911 = vpack.c.b16 %v3848, %v3841
    %v3912 = vpack.c.b16 %v3849, %v3842
    %v3913 = vpack.c.b16 %v3850, %v3843
    %v3914 = vpack.c.b16 %v3851, %v3844
    %v3915 = vpack.c.b16 %v3852, %v3845
    %v3916 = vpack.c.b16 %v3853, %v3846
    %v3917 = vpack.c.b16 %v3854, %v3847
    %v3918 = vpack.c.b16 %v3862, %v3855
    %v3919 = vpack.c.b16 %v3863, %v3856
    %v3920 = vpack.c.b16 %v3864, %v3857
    %v3921 = vpack.c.b16 %v3865, %v3858
    %v3922 = vpack.c.b16 %v3866, %v3859
    %v3923 = vpack.c.b16 %v3867, %v3860
    %v3924 = vpack.c.b16 %v3868, %v3861
    %3981 = vmatpush.bf16.msra.mxu0 %v3918
    %3982 = vmatpush.bf16.msra.mxu0 %v3911
    %3983 = vmatpush.bf16.msra.mxu0 %v3904
    %3984 = vmatpush.bf16.msra.mxu0 %v3897
    %3985 = vmatpush.bf16.msra.mxu0 %v3890
    %3986 = vmatpush.bf16.msra.mxu0 %v3883
    %3987 = vmatpush.bf16.msra.mxu0 %v3876
    %3988 = vmatpush.bf16.msra.mxu0 %v3869
    %3989 = vmatmul.bf16.gmra.mxu0 %v3608
    %v3990 = vpop.f32.mrf.mxu0
    %v3991 = vadd.f32 %v3679, %v3990
    %v3992 = vpop.f32.mrf.mxu0
    %3993 = vdwg.mxu0
    %3994 = vmatpush.bf16.msra.mxu0 %v3919
    %3995 = vmatpush.bf16.msra.mxu0 %v3912
    %3996 = vmatpush.bf16.msra.mxu0 %v3905
    %3997 = vmatpush.bf16.msra.mxu0 %v3898
    %3998 = vmatpush.bf16.msra.mxu0 %v3891
    %3999 = vmatpush.bf16.msra.mxu0 %v3884
    %4000 = vmatpush.bf16.msra.mxu0 %v3877
    %4001 = vmatpush.bf16.msra.mxu0 %v3870
    %4002 = vmatmul.bf16.gmra.mxu0 %v3608
    %v4003 = vpop.f32.mrf.mxu0
    %v4004 = vadd.f32 %v3680, %v4003
    %v4005 = vpop.f32.mrf.mxu0
    %4006 = vdwg.mxu0
    %4007 = vmatpush.bf16.msra.mxu0 %v3920
    %4008 = vmatpush.bf16.msra.mxu0 %v3913
    %4009 = vmatpush.bf16.msra.mxu0 %v3906
    %4010 = vmatpush.bf16.msra.mxu0 %v3899
    %4011 = vmatpush.bf16.msra.mxu0 %v3892
    %4012 = vmatpush.bf16.msra.mxu0 %v3885
    %4013 = vmatpush.bf16.msra.mxu0 %v3878
    %4014 = vmatpush.bf16.msra.mxu0 %v3871
    %4015 = vmatmul.bf16.gmra.mxu0 %v3608
    %v4016 = vpop.f32.mrf.mxu0
    %v4017 = vadd.f32 %v3681, %v4016
    %v4018 = vpop.f32.mrf.mxu0
    %4019 = vdwg.mxu0
    %4020 = vmatpush.bf16.msra.mxu0 %v3921
    %4021 = vmatpush.bf16.msra.mxu0 %v3914
    %4022 = vmatpush.bf16.msra.mxu0 %v3907
    %4023 = vmatpush.bf16.msra.mxu0 %v3900
    %4024 = vmatpush.bf16.msra.mxu0 %v3893
    %4025 = vmatpush.bf16.msra.mxu0 %v3886
    %4026 = vmatpush.bf16.msra.mxu0 %v3879
    %4027 = vmatpush.bf16.msra.mxu0 %v3872
    %4028 = vmatmul.bf16.gmra.mxu0 %v3608
    %v4029 = vpop.f32.mrf.mxu0
    %v4030 = vadd.f32 %v3682, %v4029
    %v4031 = vpop.f32.mrf.mxu0
    %4032 = vdwg.mxu0
    %4033 = vmatpush.bf16.msra.mxu0 %v3922
    %4034 = vmatpush.bf16.msra.mxu0 %v3915
    %4035 = vmatpush.bf16.msra.mxu0 %v3908
    %4036 = vmatpush.bf16.msra.mxu0 %v3901
    %4037 = vmatpush.bf16.msra.mxu0 %v3894
    %4038 = vmatpush.bf16.msra.mxu0 %v3887
    %4039 = vmatpush.bf16.msra.mxu0 %v3880
    %4040 = vmatpush.bf16.msra.mxu0 %v3873
    %4041 = vmatmul.bf16.gmra.mxu0 %v3608
    %v4042 = vpop.f32.mrf.mxu0
    %v4043 = vadd.f32 %v3683, %v4042
    %v4044 = vpop.f32.mrf.mxu0
    %4045 = vdwg.mxu0
    %4046 = vmatpush.bf16.msra.mxu0 %v3923
    %4047 = vmatpush.bf16.msra.mxu0 %v3916
    %4048 = vmatpush.bf16.msra.mxu0 %v3909
    %4049 = vmatpush.bf16.msra.mxu0 %v3902
    %4050 = vmatpush.bf16.msra.mxu0 %v3895
    %4051 = vmatpush.bf16.msra.mxu0 %v3888
    %4052 = vmatpush.bf16.msra.mxu0 %v3881
    %4053 = vmatpush.bf16.msra.mxu0 %v3874
    %4054 = vmatmul.bf16.gmra.mxu0 %v3608
    %v4055 = vpop.f32.mrf.mxu0
    %v4056 = vadd.f32 %v3684, %v4055
    %v4057 = vpop.f32.mrf.mxu0
    %4058 = vdwg.mxu0
    %4059 = vmatpush.bf16.msra.mxu0 %v3924
    %4060 = vmatpush.bf16.msra.mxu0 %v3917
    %4061 = vmatpush.bf16.msra.mxu0 %v3910
    %4062 = vmatpush.bf16.msra.mxu0 %v3903
    %4063 = vmatpush.bf16.msra.mxu0 %v3896
    %4064 = vmatpush.bf16.msra.mxu0 %v3889
    %4065 = vmatpush.bf16.msra.mxu0 %v3882
    %4066 = vmatpush.bf16.msra.mxu0 %v3875
    %4067 = vmatmul.bf16.gmra.mxu0 %v3608
    %v4068 = vpop.f32.mrf.mxu0
    %v4069 = vadd.f32 %v3685, %v4068
    %v4070 = vpop.f32.mrf.mxu0
    %4071 = vdwg.mxu0
    %v4072 = vmax.f32 %v3991, 0.0
    %v4073 = vmax.f32 %v4004, 0.0
    %v4074 = vmax.f32 %v4017, 0.0
    %v4075 = vmax.f32 %v4030, 0.0
    %v4076 = vmax.f32 %v4043, 0.0
    %v4077 = vmax.f32 %v4056, 0.0
    %v4078 = vmax.f32 %v4069, 0.0
    %v4079 = vpack.c.bf16 %v4072, %v4072
    %v4080 = vpack.c.bf16 %v4073, %v4073
    %v4081 = vpack.c.bf16 %v4074, %v4074
    %v4082 = vpack.c.bf16 %v4075, %v4075
    %v4083 = vpack.c.bf16 %v4076, %v4076
    %v4084 = vpack.c.bf16 %v4077, %v4077
    %v4085 = vpack.c.bf16 %v4078, %v4078
    %s4086 = smul.u32 4, 112
    %s4087 = smul.u32 %s4086, 1
    %s4088 = sshll.u32 %s4087, 4
    %4089 = dma.done %s332, %s4088
    %v4090 = vld [vmem:[#allocation4] sm:$0xf]
    %v4091 = vld [vmem:[#allocation4 + $0x4] sm:$0xf]
    %v4092 = vld [vmem:[#allocation4 + $0x8] sm:$0xf]
    %v4093 = vld [vmem:[#allocation4 + $0xc] sm:$0xf]
    %v4094 = vld [vmem:[#allocation4 + $0x10] sm:$0xf]
    %v4095 = vld [vmem:[#allocation4 + $0x14] sm:$0xf]
    %v4096 = vld [vmem:[#allocation4 + $0x18] sm:$0xf]
    %v4097 = vld [vmem:[#allocation4 + $0x1c] sm:$0xf]
    %v4098 = vld [vmem:[#allocation4 + $0x20] sm:$0xf]
    %v4099 = vld [vmem:[#allocation4 + $0x24] sm:$0xf]
    %v4100 = vld [vmem:[#allocation4 + $0x28] sm:$0xf]
    %v4101 = vld [vmem:[#allocation4 + $0x2c] sm:$0xf]
    %v4102 = vld [vmem:[#allocation4 + $0x30] sm:$0xf]
    %v4103 = vld [vmem:[#allocation4 + $0x34] sm:$0xf]
    %v4104 = vld [vmem:[#allocation4 + $0x38] sm:$0xf]
    %v4105 = vld [vmem:[#allocation4 + $0x3c] sm:$0xf]
    %v4106 = vld [vmem:[#allocation4 + $0x40] sm:$0xf]
    %v4107 = vld [vmem:[#allocation4 + $0x44] sm:$0xf]
    %v4108 = vld [vmem:[#allocation4 + $0x48] sm:$0xf]
    %v4109 = vld [vmem:[#allocation4 + $0x4c] sm:$0xf]
    %v4110 = vld [vmem:[#allocation4 + $0x50] sm:$0xf]
    %v4111 = vld [vmem:[#allocation4 + $0x54] sm:$0xf]
    %v4112 = vld [vmem:[#allocation4 + $0x58] sm:$0xf]
    %v4113 = vld [vmem:[#allocation4 + $0x5c] sm:$0xf]
    %v4114 = vld [vmem:[#allocation4 + $0x60] sm:$0xf]
    %v4115 = vld [vmem:[#allocation4 + $0x64] sm:$0xf]
    %v4116 = vld [vmem:[#allocation4 + $0x68] sm:$0xf]
    %v4117 = vld [vmem:[#allocation4 + $0x6c] sm:$0xf]
    %v4118 = vld [vmem:[#allocation4 + $0x70] sm:$0xf]
    %v4119 = vld [vmem:[#allocation4 + $0x74] sm:$0xf]
    %v4120 = vld [vmem:[#allocation4 + $0x78] sm:$0xf]
    %v4121 = vld [vmem:[#allocation4 + $0x7c] sm:$0xf]
    %v4122 = vld [vmem:[#allocation4 + $0x80] sm:$0xf]
    %v4123 = vld [vmem:[#allocation4 + $0x84] sm:$0xf]
    %v4124 = vld [vmem:[#allocation4 + $0x88] sm:$0xf]
    %v4125 = vld [vmem:[#allocation4 + $0x8c] sm:$0xf]
    %v4126 = vld [vmem:[#allocation4 + $0x90] sm:$0xf]
    %v4127 = vld [vmem:[#allocation4 + $0x94] sm:$0xf]
    %v4128 = vld [vmem:[#allocation4 + $0x98] sm:$0xf]
    %v4129 = vld [vmem:[#allocation4 + $0x9c] sm:$0xf]
    %v4130 = vld [vmem:[#allocation4 + $0xa0] sm:$0xf]
    %v4131 = vld [vmem:[#allocation4 + $0xa4] sm:$0xf]
    %v4132 = vld [vmem:[#allocation4 + $0xa8] sm:$0xf]
    %v4133 = vld [vmem:[#allocation4 + $0xac] sm:$0xf]
    %v4134 = vld [vmem:[#allocation4 + $0xb0] sm:$0xf]
    %v4135 = vld [vmem:[#allocation4 + $0xb4] sm:$0xf]
    %v4136 = vld [vmem:[#allocation4 + $0xb8] sm:$0xf]
    %v4137 = vld [vmem:[#allocation4 + $0xbc] sm:$0xf]
    %v4138 = vld [vmem:[#allocation4 + $0xc0] sm:$0xf]
    %v4139 = vld [vmem:[#allocation4 + $0xc4] sm:$0xf]
    %v4140 = vld [vmem:[#allocation4 + $0xc8] sm:$0xf]
    %v4141 = vld [vmem:[#allocation4 + $0xcc] sm:$0xf]
    %v4142 = vld [vmem:[#allocation4 + $0xd0] sm:$0xf]
    %v4143 = vld [vmem:[#allocation4 + $0xd4] sm:$0xf]
    %v4144 = vld [vmem:[#allocation4 + $0xd8] sm:$0xf]
    %v4145 = vld [vmem:[#allocation4 + $0xdc] sm:$0xf]
    %v4146 = vld [vmem:[#allocation4 + $0xe0] sm:$0xf]
    %v4147 = vld [vmem:[#allocation4 + $0xe4] sm:$0xf]
    %v4148 = vld [vmem:[#allocation4 + $0xe8] sm:$0xf]
    %v4149 = vld [vmem:[#allocation4 + $0xec] sm:$0xf]
    %v4150 = vld [vmem:[#allocation4 + $0xf0] sm:$0xf]
    %v4151 = vld [vmem:[#allocation4 + $0xf4] sm:$0xf]
    %v4152 = vld [vmem:[#allocation4 + $0xf8] sm:$0xf]
    %v4153 = vld [vmem:[#allocation4 + $0xfc] sm:$0xf]
    %v4154 = vld [vmem:[#allocation4 + $0x100] sm:$0xf]
    %v4155 = vld [vmem:[#allocation4 + $0x104] sm:$0xf]
    %v4156 = vld [vmem:[#allocation4 + $0x108] sm:$0xf]
    %v4157 = vld [vmem:[#allocation4 + $0x10c] sm:$0xf]
    %v4158 = vld [vmem:[#allocation4 + $0x110] sm:$0xf]
    %v4159 = vld [vmem:[#allocation4 + $0x114] sm:$0xf]
    %v4160 = vld [vmem:[#allocation4 + $0x118] sm:$0xf]
    %v4161 = vld [vmem:[#allocation4 + $0x11c] sm:$0xf]
    %v4162 = vld [vmem:[#allocation4 + $0x120] sm:$0xf]
    %v4163 = vld [vmem:[#allocation4 + $0x124] sm:$0xf]
    %v4164 = vld [vmem:[#allocation4 + $0x128] sm:$0xf]
    %v4165 = vld [vmem:[#allocation4 + $0x12c] sm:$0xf]
    %v4166 = vld [vmem:[#allocation4 + $0x130] sm:$0xf]
    %v4167 = vld [vmem:[#allocation4 + $0x134] sm:$0xf]
    %v4168 = vld [vmem:[#allocation4 + $0x138] sm:$0xf]
    %v4169 = vld [vmem:[#allocation4 + $0x13c] sm:$0xf]
    %v4170 = vld [vmem:[#allocation4 + $0x140] sm:$0xf]
    %v4171 = vld [vmem:[#allocation4 + $0x144] sm:$0xf]
    %v4172 = vld [vmem:[#allocation4 + $0x148] sm:$0xf]
    %v4173 = vld [vmem:[#allocation4 + $0x14c] sm:$0xf]
    %v4174 = vld [vmem:[#allocation4 + $0x150] sm:$0xf]
    %v4175 = vld [vmem:[#allocation4 + $0x154] sm:$0xf]
    %v4176 = vld [vmem:[#allocation4 + $0x158] sm:$0xf]
    %v4177 = vld [vmem:[#allocation4 + $0x15c] sm:$0xf]
    %v4178 = vld [vmem:[#allocation4 + $0x160] sm:$0xf]
    %v4179 = vld [vmem:[#allocation4 + $0x164] sm:$0xf]
    %v4180 = vld [vmem:[#allocation4 + $0x168] sm:$0xf]
    %v4181 = vld [vmem:[#allocation4 + $0x16c] sm:$0xf]
    %v4182 = vld [vmem:[#allocation4 + $0x170] sm:$0xf]
    %v4183 = vld [vmem:[#allocation4 + $0x174] sm:$0xf]
    %v4184 = vld [vmem:[#allocation4 + $0x178] sm:$0xf]
    %v4185 = vld [vmem:[#allocation4 + $0x17c] sm:$0xf]
    %v4186 = vld [vmem:[#allocation4 + $0x180] sm:$0xf]
    %v4187 = vld [vmem:[#allocation4 + $0x184] sm:$0xf]
    %v4188 = vld [vmem:[#allocation4 + $0x188] sm:$0xf]
    %v4189 = vld [vmem:[#allocation4 + $0x18c] sm:$0xf]
    %v4190 = vld [vmem:[#allocation4 + $0x190] sm:$0xf]
    %v4191 = vld [vmem:[#allocation4 + $0x194] sm:$0xf]
    %v4192 = vld [vmem:[#allocation4 + $0x198] sm:$0xf]
    %v4193 = vld [vmem:[#allocation4 + $0x19c] sm:$0xf]
    %v4194 = vld [vmem:[#allocation4 + $0x1a0] sm:$0xf]
    %v4195 = vld [vmem:[#allocation4 + $0x1a4] sm:$0xf]
    %v4196 = vld [vmem:[#allocation4 + $0x1a8] sm:$0xf]
    %v4197 = vld [vmem:[#allocation4 + $0x1ac] sm:$0xf]
    %v4198 = vld [vmem:[#allocation4 + $0x1b0] sm:$0xf]
    %v4199 = vld [vmem:[#allocation4 + $0x1b4] sm:$0xf]
    %v4200 = vld [vmem:[#allocation4 + $0x1b8] sm:$0xf]
    %v4201 = vld [vmem:[#allocation4 + $0x1bc] sm:$0xf]
    %v4202 = vld [vmem:[%s13] sm:$0x1]
    %v4204 = vperm.slane %v4202, 0
    %v4318 = vunpack.c.l.b16 %v4090
    %v4319 = vunpack.c.l.b16 %v4091
    %v4320 = vunpack.c.l.b16 %v4092
    %v4321 = vunpack.c.l.b16 %v4093
    %v4322 = vunpack.c.l.b16 %v4094
    %v4323 = vunpack.c.l.b16 %v4095
    %v4324 = vunpack.c.l.b16 %v4096
    %v4325 = vunpack.c.l.b16 %v4097
    %v4326 = vunpack.c.l.b16 %v4098
    %v4327 = vunpack.c.l.b16 %v4099
    %v4328 = vunpack.c.l.b16 %v4100
    %v4329 = vunpack.c.l.b16 %v4101
    %v4330 = vunpack.c.l.b16 %v4102
    %v4331 = vunpack.c.l.b16 %v4103
    %v4332 = vunpack.c.l.b16 %v4104
    %v4333 = vunpack.c.l.b16 %v4105
    %v4334 = vunpack.c.l.b16 %v4106
    %v4335 = vunpack.c.l.b16 %v4107
    %v4336 = vunpack.c.l.b16 %v4108
    %v4337 = vunpack.c.l.b16 %v4109
    %v4338 = vunpack.c.l.b16 %v4110
    %v4339 = vunpack.c.l.b16 %v4111
    %v4340 = vunpack.c.l.b16 %v4112
    %v4341 = vunpack.c.l.b16 %v4113
    %v4342 = vunpack.c.l.b16 %v4114
    %v4343 = vunpack.c.l.b16 %v4115
    %v4344 = vunpack.c.l.b16 %v4116
    %v4345 = vunpack.c.l.b16 %v4117
    %v4346 = vunpack.c.l.b16 %v4118
    %v4347 = vunpack.c.l.b16 %v4119
    %v4348 = vunpack.c.l.b16 %v4120
    %v4349 = vunpack.c.l.b16 %v4121
    %v4350 = vunpack.c.l.b16 %v4122
    %v4351 = vunpack.c.l.b16 %v4123
    %v4352 = vunpack.c.l.b16 %v4124
    %v4353 = vunpack.c.l.b16 %v4125
    %v4354 = vunpack.c.l.b16 %v4126
    %v4355 = vunpack.c.l.b16 %v4127
    %v4356 = vunpack.c.l.b16 %v4128
    %v4357 = vunpack.c.l.b16 %v4129
    %v4358 = vunpack.c.l.b16 %v4130
    %v4359 = vunpack.c.l.b16 %v4131
    %v4360 = vunpack.c.l.b16 %v4132
    %v4361 = vunpack.c.l.b16 %v4133
    %v4362 = vunpack.c.l.b16 %v4134
    %v4363 = vunpack.c.l.b16 %v4135
    %v4364 = vunpack.c.l.b16 %v4136
    %v4365 = vunpack.c.l.b16 %v4137
    %v4366 = vunpack.c.l.b16 %v4138
    %v4367 = vunpack.c.l.b16 %v4139
    %v4368 = vunpack.c.l.b16 %v4140
    %v4369 = vunpack.c.l.b16 %v4141
    %v4370 = vunpack.c.l.b16 %v4142
    %v4371 = vunpack.c.l.b16 %v4143
    %v4372 = vunpack.c.l.b16 %v4144
    %v4373 = vunpack.c.l.b16 %v4145
    %v4374 = vunpack.c.l.b16 %v4146
    %v4375 = vunpack.c.l.b16 %v4147
    %v4376 = vunpack.c.l.b16 %v4148
    %v4377 = vunpack.c.l.b16 %v4149
    %v4378 = vunpack.c.l.b16 %v4150
    %v4379 = vunpack.c.l.b16 %v4151
    %v4380 = vunpack.c.l.b16 %v4152
    %v4381 = vunpack.c.l.b16 %v4153
    %v4382 = vunpack.c.l.b16 %v4154
    %v4383 = vunpack.c.l.b16 %v4155
    %v4384 = vunpack.c.l.b16 %v4156
    %v4385 = vunpack.c.l.b16 %v4157
    %v4386 = vunpack.c.l.b16 %v4158
    %v4387 = vunpack.c.l.b16 %v4159
    %v4388 = vunpack.c.l.b16 %v4160
    %v4389 = vunpack.c.l.b16 %v4161
    %v4390 = vunpack.c.l.b16 %v4162
    %v4391 = vunpack.c.l.b16 %v4163
    %v4392 = vunpack.c.l.b16 %v4164
    %v4393 = vunpack.c.l.b16 %v4165
    %v4394 = vunpack.c.l.b16 %v4166
    %v4395 = vunpack.c.l.b16 %v4167
    %v4396 = vunpack.c.l.b16 %v4168
    %v4397 = vunpack.c.l.b16 %v4169
    %v4398 = vunpack.c.l.b16 %v4170
    %v4399 = vunpack.c.l.b16 %v4171
    %v4400 = vunpack.c.l.b16 %v4172
    %v4401 = vunpack.c.l.b16 %v4173
    %v4402 = vunpack.c.l.b16 %v4174
    %v4403 = vunpack.c.l.b16 %v4175
    %v4404 = vunpack.c.l.b16 %v4176
    %v4405 = vunpack.c.l.b16 %v4177
    %v4406 = vunpack.c.l.b16 %v4178
    %v4407 = vunpack.c.l.b16 %v4179
    %v4408 = vunpack.c.l.b16 %v4180
    %v4409 = vunpack.c.l.b16 %v4181
    %v4410 = vunpack.c.l.b16 %v4182
    %v4411 = vunpack.c.l.b16 %v4183
    %v4412 = vunpack.c.l.b16 %v4184
    %v4413 = vunpack.c.l.b16 %v4185
    %v4414 = vunpack.c.l.b16 %v4186
    %v4415 = vunpack.c.l.b16 %v4187
    %v4416 = vunpack.c.l.b16 %v4188
    %v4417 = vunpack.c.l.b16 %v4189
    %v4418 = vunpack.c.l.b16 %v4190
    %v4419 = vunpack.c.l.b16 %v4191
    %v4420 = vunpack.c.l.b16 %v4192
    %v4421 = vunpack.c.l.b16 %v4193
    %v4422 = vunpack.c.l.b16 %v4194
    %v4423 = vunpack.c.l.b16 %v4195
    %v4424 = vunpack.c.l.b16 %v4196
    %v4425 = vunpack.c.l.b16 %v4197
    %v4426 = vunpack.c.l.b16 %v4198
    %v4427 = vunpack.c.l.b16 %v4199
    %v4428 = vunpack.c.l.b16 %v4200
    %v4429 = vunpack.c.l.b16 %v4201
    %v4430 = vpack.c.b16 %v4319, %v4318
    %v4431 = vpack.c.b16 %v4321, %v4320
    %v4432 = vpack.c.b16 %v4323, %v4322
    %v4433 = vpack.c.b16 %v4325, %v4324
    %v4434 = vpack.c.b16 %v4327, %v4326
    %v4435 = vpack.c.b16 %v4329, %v4328
    %v4436 = vpack.c.b16 %v4331, %v4330
    %v4437 = vpack.c.b16 %v4333, %v4332
    %v4438 = vpack.c.b16 %v4335, %v4334
    %v4439 = vpack.c.b16 %v4337, %v4336
    %v4440 = vpack.c.b16 %v4339, %v4338
    %v4441 = vpack.c.b16 %v4341, %v4340
    %v4442 = vpack.c.b16 %v4343, %v4342
    %v4443 = vpack.c.b16 %v4345, %v4344
    %v4444 = vpack.c.b16 %v4347, %v4346
    %v4445 = vpack.c.b16 %v4349, %v4348
    %v4446 = vpack.c.b16 %v4351, %v4350
    %v4447 = vpack.c.b16 %v4353, %v4352
    %v4448 = vpack.c.b16 %v4355, %v4354
    %v4449 = vpack.c.b16 %v4357, %v4356
    %v4450 = vpack.c.b16 %v4359, %v4358
    %v4451 = vpack.c.b16 %v4361, %v4360
    %v4452 = vpack.c.b16 %v4363, %v4362
    %v4453 = vpack.c.b16 %v4365, %v4364
    %v4454 = vpack.c.b16 %v4367, %v4366
    %v4455 = vpack.c.b16 %v4369, %v4368
    %v4456 = vpack.c.b16 %v4371, %v4370
    %v4457 = vpack.c.b16 %v4373, %v4372
    %v4458 = vpack.c.b16 %v4375, %v4374
    %v4459 = vpack.c.b16 %v4377, %v4376
    %v4460 = vpack.c.b16 %v4379, %v4378
    %v4461 = vpack.c.b16 %v4381, %v4380
    %v4462 = vpack.c.b16 %v4383, %v4382
    %v4463 = vpack.c.b16 %v4385, %v4384
    %v4464 = vpack.c.b16 %v4387, %v4386
    %v4465 = vpack.c.b16 %v4389, %v4388
    %v4466 = vpack.c.b16 %v4391, %v4390
    %v4467 = vpack.c.b16 %v4393, %v4392
    %v4468 = vpack.c.b16 %v4395, %v4394
    %v4469 = vpack.c.b16 %v4397, %v4396
    %v4470 = vpack.c.b16 %v4399, %v4398
    %v4471 = vpack.c.b16 %v4401, %v4400
    %v4472 = vpack.c.b16 %v4403, %v4402
    %v4473 = vpack.c.b16 %v4405, %v4404
    %v4474 = vpack.c.b16 %v4407, %v4406
    %v4475 = vpack.c.b16 %v4409, %v4408
    %v4476 = vpack.c.b16 %v4411, %v4410
    %v4477 = vpack.c.b16 %v4413, %v4412
    %v4478 = vpack.c.b16 %v4415, %v4414
    %v4479 = vpack.c.b16 %v4417, %v4416
    %v4480 = vpack.c.b16 %v4419, %v4418
    %v4481 = vpack.c.b16 %v4421, %v4420
    %v4482 = vpack.c.b16 %v4423, %v4422
    %v4483 = vpack.c.b16 %v4425, %v4424
    %v4484 = vpack.c.b16 %v4427, %v4426
    %v4485 = vpack.c.b16 %v4429, %v4428
    %4542 = vmatpush.bf16.msra.mxu0 %v4437
    %4543 = vmatpush.bf16.msra.mxu0 %v4436
    %4544 = vmatpush.bf16.msra.mxu0 %v4435
    %4545 = vmatpush.bf16.msra.mxu0 %v4434
    %4546 = vmatpush.bf16.msra.mxu0 %v4433
    %4547 = vmatpush.bf16.msra.mxu0 %v4432
    %4548 = vmatpush.bf16.msra.mxu0 %v4431
    %4549 = vmatpush.bf16.msra.mxu0 %v4430
    %4550 = vmatmul.bf16.gmra.mxu0 %v4079
    %v4551 = vpop.f32.mrf.mxu0
    %v4552 = vadd.f32 %v4204, %v4551
    %v4553 = vpop.f32.mrf.mxu0
    %4554 = vdwg.mxu0
    %4555 = vmatpush.bf16.msra.mxu0 %v4445
    %4556 = vmatpush.bf16.msra.mxu0 %v4444
    %4557 = vmatpush.bf16.msra.mxu0 %v4443
    %4558 = vmatpush.bf16.msra.mxu0 %v4442
    %4559 = vmatpush.bf16.msra.mxu0 %v4441
    %4560 = vmatpush.bf16.msra.mxu0 %v4440
    %4561 = vmatpush.bf16.msra.mxu0 %v4439
    %4562 = vmatpush.bf16.msra.mxu0 %v4438
    %4563 = vmatmul.bf16.gmra.mxu0 %v4080
    %v4564 = vpop.f32.mrf.mxu0
    %v4565 = vadd.f32 %v4552, %v4564
    %v4566 = vpop.f32.mrf.mxu0
    %4567 = vdwg.mxu0
    %4568 = vmatpush.bf16.msra.mxu0 %v4453
    %4569 = vmatpush.bf16.msra.mxu0 %v4452
    %4570 = vmatpush.bf16.msra.mxu0 %v4451
    %4571 = vmatpush.bf16.msra.mxu0 %v4450
    %4572 = vmatpush.bf16.msra.mxu0 %v4449
    %4573 = vmatpush.bf16.msra.mxu0 %v4448
    %4574 = vmatpush.bf16.msra.mxu0 %v4447
    %4575 = vmatpush.bf16.msra.mxu0 %v4446
    %4576 = vmatmul.bf16.gmra.mxu0 %v4081
    %v4577 = vpop.f32.mrf.mxu0
    %v4578 = vadd.f32 %v4565, %v4577
    %v4579 = vpop.f32.mrf.mxu0
    %4580 = vdwg.mxu0
    %4581 = vmatpush.bf16.msra.mxu0 %v4461
    %4582 = vmatpush.bf16.msra.mxu0 %v4460
    %4583 = vmatpush.bf16.msra.mxu0 %v4459
    %4584 = vmatpush.bf16.msra.mxu0 %v4458
    %4585 = vmatpush.bf16.msra.mxu0 %v4457
    %4586 = vmatpush.bf16.msra.mxu0 %v4456
    %4587 = vmatpush.bf16.msra.mxu0 %v4455
    %4588 = vmatpush.bf16.msra.mxu0 %v4454
    %4589 = vmatmul.bf16.gmra.mxu0 %v4082
    %v4590 = vpop.f32.mrf.mxu0
    %v4591 = vadd.f32 %v4578, %v4590
    %v4592 = vpop.f32.mrf.mxu0
    %4593 = vdwg.mxu0
    %4594 = vmatpush.bf16.msra.mxu0 %v4469
    %4595 = vmatpush.bf16.msra.mxu0 %v4468
    %4596 = vmatpush.bf16.msra.mxu0 %v4467
    %4597 = vmatpush.bf16.msra.mxu0 %v4466
    %4598 = vmatpush.bf16.msra.mxu0 %v4465
    %4599 = vmatpush.bf16.msra.mxu0 %v4464
    %4600 = vmatpush.bf16.msra.mxu0 %v4463
    %4601 = vmatpush.bf16.msra.mxu0 %v4462
    %4602 = vmatmul.bf16.gmra.mxu0 %v4083
    %v4603 = vpop.f32.mrf.mxu0
    %v4604 = vadd.f32 %v4591, %v4603
    %v4605 = vpop.f32.mrf.mxu0
    %4606 = vdwg.mxu0
    %4607 = vmatpush.bf16.msra.mxu0 %v4477
    %4608 = vmatpush.bf16.msra.mxu0 %v4476
    %4609 = vmatpush.bf16.msra.mxu0 %v4475
    %4610 = vmatpush.bf16.msra.mxu0 %v4474
    %4611 = vmatpush.bf16.msra.mxu0 %v4473
    %4612 = vmatpush.bf16.msra.mxu0 %v4472
    %4613 = vmatpush.bf16.msra.mxu0 %v4471
    %4614 = vmatpush.bf16.msra.mxu0 %v4470
    %4615 = vmatmul.bf16.gmra.mxu0 %v4084
    %v4616 = vpop.f32.mrf.mxu0
    %v4617 = vadd.f32 %v4604, %v4616
    %v4618 = vpop.f32.mrf.mxu0
    %4619 = vdwg.mxu0
    %4620 = vmatpush.bf16.msra.mxu0 %v4485
    %4621 = vmatpush.bf16.msra.mxu0 %v4484
    %4622 = vmatpush.bf16.msra.mxu0 %v4483
    %4623 = vmatpush.bf16.msra.mxu0 %v4482
    %4624 = vmatpush.bf16.msra.mxu0 %v4481
    %4625 = vmatpush.bf16.msra.mxu0 %v4480
    %4626 = vmatpush.bf16.msra.mxu0 %v4479
    %4627 = vmatpush.bf16.msra.mxu0 %v4478
    %4628 = vmatmul.bf16.gmra.mxu0 %v4085
    %v4629 = vpop.f32.mrf.mxu0
    %v4630 = vadd.f32 %v4617, %v4629
    %v4631 = vpop.f32.mrf.mxu0
    %4632 = vdwg.mxu0
    %4633 = vst [vmem:[#allocation6] sm:$0x3] %v4630
    // Predicated region
    $region103: #{custom_solver_forward.1} parent=1 // pred_check
      _
    $region104: #{custom_solver_forward.1} parent=1 // pred_check_branch
      %4635 = sbr.rel (0) target = $region106
    $region105: #{custom_solver_forward.1} parent=1 // pred_region
      %4637 = vsyncadd [#allocation7], 0
      %s4639 = sshll.u32 [#allocation6], 4
      %s4640 = int_to_ptr.vmem [resolvable:$true] %s4639
      %s4641 = sshll.u32 %s14, 4
      %s4642 = int_to_ptr.hbm [resolvable:$true] %s4641
      %4644 = dma.vmem_to_hbm [thread:$0]  %s4640, 32, %s4642, [#allocation7]
    $region106: #{custom_solver_forward.1} parent=1 // pred_fallthru
      _
    // Predicated region
    $region107: #{custom_solver_forward.1} parent=1 // pred_check
      _
    $region108: #{custom_solver_forward.1} parent=1 // pred_check_branch
      %4646 = sbr.rel (0) target = $region110
    $region109: #{custom_solver_forward.1} parent=1 // pred_region
      %4648 = dma.done [#allocation7], 32
    $region110: #{custom_solver_forward.1} parent=1 // pred_fallthru
      _
    %4649 = vsyncpa [#allocation7], 1
  %4650 = vsyncmov [#allocation5]
  %s4651 = vpop.sfrf %4650
  %p4652 = scmp.eq.s32.totalorder %s4651, 0
  %p4653 = pneg %p4652
  %4655 = shalt.err (%p4653)
  %s4656 = scalar_lea.sflag [#allocation5], 1
  %4657 = vsyncmov %s4656
  %s4658 = vpop.sfrf %4657
  %p4659 = scmp.eq.s32.totalorder %s4658, 0
  %p4660 = pneg %p4659
  %4662 = shalt.err (%p4660)
  %s4663 = scalar_lea.sflag [#allocation5], 2
  %4664 = vsyncmov %s4663
  %s4665 = vpop.sfrf %4664
  %p4666 = scmp.eq.s32.totalorder %s4665, 0
  %p4667 = pneg %p4666
  %4669 = shalt.err (%p4667)

</llo_original>
